<compile_context>
chip_gen: v7x
topology: tpu7x:2x2x1
jax: 0.10.0
libtpu: 0.0.40
codegen_flags: <defaults>
</compile_context>

<pallas_src>
import functools

import jax
import jax.numpy as jnp
from jax.experimental import pallas as pl
from jax.experimental.pallas import tpu as pltpu

_HP = jax.lax.Precision.HIGHEST


def _leaky_relu(x, negative_slope):
    return jnp.where(x >= 0, x, negative_slope * x)


def _f2g_kernel(x_ref, pre_fea_ref, weight_ref, spf_ref,
                w1_ref, b1_ref, w2_ref, b2_ref, graph_ref, *, n, hid, spatial):
    """Whole forward in one grid step.

    x_ref:       (N, C, L)   feature maps (channel-sublane, spatial-lane)
    pre_fea_ref: (C, K)      graph projection parameter
    weight_ref:  (C, Hid)    node-feature parameter
    spf_ref:     (C, S)      source pre_fea
    w1/b1/w2/b2: transfer-MLP params (torch Linear layout: (out, in))
    graph_ref:   (N, K, Hid) relu'd graph-node features
    """
    # ---- transfer MLP (folded into the kernel). NOTE: nn.LeakyReLU(True)
    # binds True to negative_slope == 1.0 (identity); we match the source.
    spf = spf_ref[...]                                              # (C, S)
    h1 = jax.lax.dot_general(spf, w1_ref[...], (((1,), (1,)), ((), ())),
                             precision=_HP, preferred_element_type=jnp.float32)
    h1 = _leaky_relu(h1 + b1_ref[...], 1.0)                         # (C, S)
    h2 = jax.lax.dot_general(h1, w2_ref[...], (((1,), (1,)), ((), ())),
                             precision=_HP, preferred_element_type=jnp.float32)
    h2 = _leaky_relu(h2 + b2_ref[...], 1.0)                         # (C, K)
    pre_fea_eff = pre_fea_ref[...] + h2                             # (C, K)

    # Fused transposed params: rows [:hid] = weight^T, rows [hid:] = pre_fea_eff^T.
    # hid is a multiple of 8, so both row slices stay on sublane-tile boundaries.
    pw = jnp.concatenate([weight_ref[...], pre_fea_eff], axis=1).T  # (Hid+K, C)

    # Lane-pack all batches into one (C, N*L) operand -> 128-lane-dense MXU op.
    x_packed = jnp.concatenate([x_ref[i] for i in range(n)], axis=-1)  # (C, N*L)

    # Single fused MXU pass over the activation.
    out_t = jnp.dot(pw, x_packed, precision=_HP,
                    preferred_element_type=jnp.float32)             # (Hid+K, N*L)
    wn_t = out_t[:hid, :]                                           # (Hid, N*L) = weight_node^T
    s_t = out_t[hid:, :]                                            # (K,   N*L) = fea_node^T

    # Softmax over nodes (sublane axis K); exact divide (no approx reciprocal).
    m = jnp.max(s_t, axis=0, keepdims=True)                         # (1, N*L)
    e = jnp.exp(s_t - m)                                            # (K, N*L)
    p_t = e / jnp.sum(e, axis=0, keepdims=True)                     # (K, N*L)

    # Per-batch contraction over that batch's L lanes:
    #   graph[i] = relu(p_i^T wn_i) computed as relu(wn_i . p_i^T)^T so the
    #   operand that needs transposing is the 7-row p_t, not the 32-row wn_t;
    #   the (Hid, K) result transpose is independent of L.
    for i in range(n):
        sl = slice(i * spatial, (i + 1) * spatial)
        g_t = jax.lax.dot_general(wn_t[:, sl], p_t[:, sl],
                                  (((1,), (1,)), ((), ())),
                                  precision=_HP,
                                  preferred_element_type=jnp.float32)  # (Hid, K)
        graph_ref[i] = jnp.maximum(g_t, 0.0).T.astype(graph_ref.dtype)


@jax.jit
def featuremaps_to_graph_transfer(x_nchw, pre_fea, weight, source_pre_fea,
                                  w1, b1, w2, b2):
    """Forward. x_nchw: (N, C, H, W). Returns graph_node of shape (N, K, Hid)."""
    n, c, h, w = x_nchw.shape
    L = h * w
    k = pre_fea.shape[1]
    hid = weight.shape[1]
    s = source_pre_fea.shape[1]

    # Free metadata reshapes only — no wrapper compute, no HBM transposes.
    x_ncl = x_nchw.reshape(n, c, L)
    b1_2d = b1.reshape(1, s)
    b2_2d = b2.reshape(1, k)

    kernel = functools.partial(_f2g_kernel, n=n, hid=hid, spatial=L)
    graph = pl.pallas_call(
        kernel,
        out_shape=jax.ShapeDtypeStruct((n, k, hid), x_nchw.dtype),
        grid_spec=pltpu.PrefetchScalarGridSpec(
            num_scalar_prefetch=0,
            grid=(1,),  # single step: whole problem is ~20 KB / ~0.4 MFLOP
            in_specs=[
                pl.BlockSpec((n, c, L), lambda i: (0, 0, 0)),   # feature maps
                pl.BlockSpec((c, k), lambda i: (0, 0)),         # pre_fea
                pl.BlockSpec((c, hid), lambda i: (0, 0)),       # weight
                pl.BlockSpec((c, s), lambda i: (0, 0)),         # source_pre_fea
                pl.BlockSpec((s, s), lambda i: (0, 0)),         # w1
                pl.BlockSpec((1, s), lambda i: (0, 0)),         # b1
                pl.BlockSpec((k, s), lambda i: (0, 0)),         # w2
                pl.BlockSpec((1, k), lambda i: (0, 0)),         # b2
            ],
            out_specs=pl.BlockSpec((n, k, hid), lambda i: (0, 0, 0)),
        ),
        compiler_params=pltpu.CompilerParams(
            # single-step grid: megacore split buys nothing at this size
            dimension_semantics=("arbitrary",),
        ),
    )(x_ncl, pre_fea, weight, source_pre_fea, w1, b1_2d, w2, b2_2d)
    return graph


def _xavier_uniform(key, shape, dtype=jnp.float32):
    fan_out, fan_in = shape[0], shape[1]
    bound = (6.0 / (fan_in + fan_out)) ** 0.5
    return jax.random.uniform(key, shape, dtype, minval=-bound, maxval=bound)


def _reference(x_nchw, pre_fea, weight, source_pre_fea, w1, b1, w2, b2):
    n, c, h, w = x_nchw.shape
    L = h * w
    h1 = _leaky_relu(jnp.matmul(source_pre_fea, w1.T, precision=_HP) + b1[None, :], 1.0)
    h2 = _leaky_relu(jnp.matmul(h1, w2.T, precision=_HP) + b2[None, :], 1.0)
    pre_fea_eff = pre_fea + h2
    x1 = jnp.transpose(x_nchw.reshape(n, c, L), (0, 2, 1))          # (n, L, c)
    fea_node = jnp.einsum("nlc,ck->nlk", x1, pre_fea_eff, precision=_HP)
    weight_node = jnp.einsum("nlc,ch->nlh", x1, weight, precision=_HP)
    p = jax.nn.softmax(fea_node, axis=-1)
    return jax.nn.relu(jnp.einsum("nlk,nlh->nkh", p, weight_node, precision=_HP))


if __name__ == "__main__":
    # shapes consistent with the module: input_channels=32, hidden_layers=32,
    # nodes=7, source_nodes=20, batch=2, spatial 8x8
    N, C, H, W = 2, 32, 8, 8
    HIDDEN, NODES, SOURCE = 32, 7, 20

    key = jax.random.PRNGKey(0)
    kx, kp, kw, ks, k1, k2, k3, k4 = jax.random.split(key, 8)
    x = jax.random.normal(kx, (N, C, H, W), dtype=jnp.float32)
    pre_fea = _xavier_uniform(kp, (C, NODES))
    weight = _xavier_uniform(kw, (C, HIDDEN))
    source_pre_fea = jax.random.normal(ks, (C, SOURCE), dtype=jnp.float32)
    # transfer MLP params (torch nn.Linear layout: (out_features, in_features))
    w1 = _xavier_uniform(k1, (SOURCE, SOURCE))
    b1 = 0.1 * jax.random.normal(k2, (SOURCE,), dtype=jnp.float32)
    w2 = _xavier_uniform(k3, (NODES, SOURCE))
    b2 = 0.1 * jax.random.normal(k4, (NODES,), dtype=jnp.float32)

    graph_node = featuremaps_to_graph_transfer(
        x, pre_fea, weight, source_pre_fea, w1, b1, w2, b2)
    graph_node = jax.block_until_ready(graph_node)

    ref_graph = _reference(x, pre_fea, weight, source_pre_fea, w1, b1, w2, b2)
    assert graph_node.shape == (N, NODES, HIDDEN)
    err = float(jnp.max(jnp.abs(graph_node - ref_graph)))
    # exact softmax divide + HIGHEST-precision matmuls -> tight tolerance
    assert jnp.allclose(graph_node, ref_graph, atol=1e-3, rtol=1e-3), err

    print("KERNEL_OK")
</pallas_src>

<mosaic_0001>
module attributes {stable_mosaic.version = 11 : i64} {
  func.func @_f2g_kernel(%arg0: i32, %arg1: memref<2x32x64xf32, #tpu.memory_space<vmem>>, %arg2: memref<32x7xf32, #tpu.memory_space<vmem>>, %arg3: memref<32x32xf32, #tpu.memory_space<vmem>>, %arg4: memref<32x20xf32, #tpu.memory_space<vmem>>, %arg5: memref<20x20xf32, #tpu.memory_space<vmem>>, %arg6: memref<1x20xf32, #tpu.memory_space<vmem>>, %arg7: memref<7x20xf32, #tpu.memory_space<vmem>>, %arg8: memref<1x7xf32, #tpu.memory_space<vmem>>, %arg9: memref<2x7x32xf32, #tpu.memory_space<vmem>>) attributes {dimension_semantics = [#tpu.dimension_semantics<arbitrary>], iteration_bounds = array<i64: 1>, scalar_prefetch = 0 : i64, scratch_operands = 0 : i64, tpu.core_type = #tpu.core_type<tc>, window_params = [{pipeline_mode = #tpu.pipeline_mode<synchronous>, transform_indices = @transform_0, window_bounds = array<i64: 2, 32, 64>}, {pipeline_mode = #tpu.pipeline_mode<synchronous>, transform_indices = @transform_1, window_bounds = array<i64: 32, 7>}, {pipeline_mode = #tpu.pipeline_mode<synchronous>, transform_indices = @transform_2, window_bounds = array<i64: 32, 32>}, {pipeline_mode = #tpu.pipeline_mode<synchronous>, transform_indices = @transform_3, window_bounds = array<i64: 32, 20>}, {pipeline_mode = #tpu.pipeline_mode<synchronous>, transform_indices = @transform_4, window_bounds = array<i64: 20, 20>}, {pipeline_mode = #tpu.pipeline_mode<synchronous>, transform_indices = @transform_5, window_bounds = array<i64: 1, 20>}, {pipeline_mode = #tpu.pipeline_mode<synchronous>, transform_indices = @transform_6, window_bounds = array<i64: 7, 20>}, {pipeline_mode = #tpu.pipeline_mode<synchronous>, transform_indices = @transform_7, window_bounds = array<i64: 1, 7>}, {pipeline_mode = #tpu.pipeline_mode<synchronous>, transform_indices = @transform_8, window_bounds = array<i64: 2, 7, 32>}]} {
    %c0 = arith.constant 0 : index
    %c0_0 = arith.constant 0 : index
    %0 = vector.load %arg4[%c0, %c0_0] : memref<32x20xf32, #tpu.memory_space<vmem>>, vector<32x20xf32>
    %c0_1 = arith.constant 0 : index
    %c0_2 = arith.constant 0 : index
    %1 = vector.load %arg5[%c0_1, %c0_2] : memref<20x20xf32, #tpu.memory_space<vmem>>, vector<20x20xf32>
    %cst = arith.constant dense<0.000000e+00> : vector<32x20xf32>
    %2 = tpu.matmul %0, %1, %cst {dimension_numbers = #tpu.dot_dimension_numbers<[1], [1], [0], [0], [0, 0, 1, 0], [], []>, precision = #tpu.contract_precision<fp32>} : vector<32x20xf32>, vector<20x20xf32>, vector<32x20xf32> -> vector<32x20xf32>
    %c0_3 = arith.constant 0 : index
    %c0_4 = arith.constant 0 : index
    %3 = vector.load %arg6[%c0_3, %c0_4] : memref<1x20xf32, #tpu.memory_space<vmem>>, vector<1x20xf32>
    %4 = vector.broadcast %3 : vector<1x20xf32> to vector<32x20xf32>
    %5 = arith.addf %2, %4 : vector<32x20xf32>
    %cst_5 = arith.constant 0.000000e+00 : f32
    %6 = vector.broadcast %cst_5 : f32 to vector<32x20xf32>
    %7 = arith.cmpf oge, %5, %6 : vector<32x20xf32>
    %cst_6 = arith.constant 1.000000e+00 : f32
    %8 = vector.broadcast %cst_6 : f32 to vector<32x20xf32>
    %9 = arith.mulf %8, %5 : vector<32x20xf32>
    %10 = arith.select %7, %5, %9 : vector<32x20xi1>, vector<32x20xf32>
    %c0_7 = arith.constant 0 : index
    %c0_8 = arith.constant 0 : index
    %11 = vector.load %arg7[%c0_7, %c0_8] : memref<7x20xf32, #tpu.memory_space<vmem>>, vector<7x20xf32>
    %cst_9 = arith.constant dense<0.000000e+00> : vector<32x7xf32>
    %12 = tpu.matmul %10, %11, %cst_9 {dimension_numbers = #tpu.dot_dimension_numbers<[1], [1], [0], [0], [0, 0, 1, 0], [], []>, precision = #tpu.contract_precision<fp32>} : vector<32x20xf32>, vector<7x20xf32>, vector<32x7xf32> -> vector<32x7xf32>
    %c0_10 = arith.constant 0 : index
    %c0_11 = arith.constant 0 : index
    %13 = vector.load %arg8[%c0_10, %c0_11] : memref<1x7xf32, #tpu.memory_space<vmem>>, vector<1x7xf32>
    %14 = vector.broadcast %13 : vector<1x7xf32> to vector<32x7xf32>
    %15 = arith.addf %12, %14 : vector<32x7xf32>
    %cst_12 = arith.constant 0.000000e+00 : f32
    %16 = vector.broadcast %cst_12 : f32 to vector<32x7xf32>
    %17 = arith.cmpf oge, %15, %16 : vector<32x7xf32>
    %cst_13 = arith.constant 1.000000e+00 : f32
    %18 = vector.broadcast %cst_13 : f32 to vector<32x7xf32>
    %19 = arith.mulf %18, %15 : vector<32x7xf32>
    %20 = arith.select %17, %15, %19 : vector<32x7xi1>, vector<32x7xf32>
    %c0_14 = arith.constant 0 : index
    %c0_15 = arith.constant 0 : index
    %21 = vector.load %arg2[%c0_14, %c0_15] : memref<32x7xf32, #tpu.memory_space<vmem>>, vector<32x7xf32>
    %22 = arith.addf %21, %20 : vector<32x7xf32>
    %c0_16 = arith.constant 0 : index
    %c0_17 = arith.constant 0 : index
    %23 = vector.load %arg3[%c0_16, %c0_17] : memref<32x32xf32, #tpu.memory_space<vmem>>, vector<32x32xf32>
    %24 = tpu.concatenate %23, %22 in 1 : vector<32x32xf32>, vector<32x7xf32> -> vector<32x39xf32>
    %25 = tpu.transpose %24, [1, 0] : vector<32x39xf32> -> vector<39x32xf32>
    %c0_18 = arith.constant 0 : index
    %c0_19 = arith.constant 0 : index
    %c0_20 = arith.constant 0 : index
    %26 = vector.load %arg1[%c0_18, %c0_19, %c0_20] : memref<2x32x64xf32, #tpu.memory_space<vmem>>, vector<1x32x64xf32>
    %27 = vector.shape_cast %26 : vector<1x32x64xf32> to vector<32x64xf32>
    %c1 = arith.constant 1 : index
    %c0_21 = arith.constant 0 : index
    %c0_22 = arith.constant 0 : index
    %28 = vector.load %arg1[%c1, %c0_21, %c0_22] : memref<2x32x64xf32, #tpu.memory_space<vmem>>, vector<1x32x64xf32>
    %29 = vector.shape_cast %28 : vector<1x32x64xf32> to vector<32x64xf32>
    %30 = tpu.concatenate %27, %29 in 1 : vector<32x64xf32>, vector<32x64xf32> -> vector<32x128xf32>
    %cst_23 = arith.constant dense<0.000000e+00> : vector<39x128xf32>
    %31 = tpu.matmul %25, %30, %cst_23 {dimension_numbers = #tpu.dot_dimension_numbers<[1], [0], [0], [1], [0, 0, 1, 1], [], []>, precision = #tpu.contract_precision<fp32>} : vector<39x32xf32>, vector<32x128xf32>, vector<39x128xf32> -> vector<39x128xf32>
    %32 = vector.extract_strided_slice %31 {offsets = [0, 0], sizes = [32, 128], strides = [1, 1]} : vector<39x128xf32> to vector<32x128xf32>
    %33 = vector.extract_strided_slice %31 {offsets = [32, 0], sizes = [7, 128], strides = [1, 1]} : vector<39x128xf32> to vector<7x128xf32>
    %cst_24 = arith.constant dense<0xFF800000> : vector<128xf32>
    %34 = vector.multi_reduction <maximumf>, %33, %cst_24 [0] : vector<7x128xf32> to vector<128xf32>
    %35 = vector.shape_cast %34 : vector<128xf32> to vector<1x128xf32>
    %36 = vector.broadcast %35 : vector<1x128xf32> to vector<7x128xf32>
    %37 = arith.subf %33, %36 : vector<7x128xf32>
    %38 = math.exp %37 : vector<7x128xf32>
    %cst_25 = arith.constant dense<0.000000e+00> : vector<128xf32>
    %39 = vector.multi_reduction <add>, %38, %cst_25 [0] : vector<7x128xf32> to vector<128xf32>
    %40 = vector.shape_cast %39 : vector<128xf32> to vector<1x128xf32>
    %41 = vector.broadcast %40 : vector<1x128xf32> to vector<7x128xf32>
    %42 = arith.divf %38, %41 : vector<7x128xf32>
    %43 = vector.extract_strided_slice %32 {offsets = [0, 0], sizes = [32, 64], strides = [1, 1]} : vector<32x128xf32> to vector<32x64xf32>
    %44 = vector.extract_strided_slice %42 {offsets = [0, 0], sizes = [7, 64], strides = [1, 1]} : vector<7x128xf32> to vector<7x64xf32>
    %cst_26 = arith.constant dense<0.000000e+00> : vector<32x7xf32>
    %45 = tpu.matmul %43, %44, %cst_26 {dimension_numbers = #tpu.dot_dimension_numbers<[1], [1], [0], [0], [0, 0, 1, 0], [], []>, precision = #tpu.contract_precision<fp32>} : vector<32x64xf32>, vector<7x64xf32>, vector<32x7xf32> -> vector<32x7xf32>
    %cst_27 = arith.constant 0.000000e+00 : f32
    %46 = vector.broadcast %cst_27 : f32 to vector<32x7xf32>
    %47 = arith.maximumf %45, %46 : vector<32x7xf32>
    %48 = tpu.transpose %47, [1, 0] : vector<32x7xf32> -> vector<7x32xf32>
    %c0_28 = arith.constant 0 : index
    %c0_29 = arith.constant 0 : index
    %c0_30 = arith.constant 0 : index
    %49 = vector.load %arg9[%c0_28, %c0_29, %c0_30] : memref<2x7x32xf32, #tpu.memory_space<vmem>>, vector<1x7x32xf32>
    %50 = vector.shape_cast %49 : vector<1x7x32xf32> to vector<7x32xf32>
    %51 = vector.shape_cast %48 : vector<7x32xf32> to vector<1x7x32xf32>
    tpu.vector_store %arg9[%c0_28, %c0_29, %c0_30], %51 {strides = array<i32>} : memref<2x7x32xf32, #tpu.memory_space<vmem>>, vector<1x7x32xf32>,
    %52 = vector.extract_strided_slice %32 {offsets = [0, 64], sizes = [32, 64], strides = [1, 1]} : vector<32x128xf32> to vector<32x64xf32>
    %53 = vector.extract_strided_slice %42 {offsets = [0, 64], sizes = [7, 64], strides = [1, 1]} : vector<7x128xf32> to vector<7x64xf32>
    %cst_31 = arith.constant dense<0.000000e+00> : vector<32x7xf32>
    %54 = tpu.matmul %52, %53, %cst_31 {dimension_numbers = #tpu.dot_dimension_numbers<[1], [1], [0], [0], [0, 0, 1, 0], [], []>, precision = #tpu.contract_precision<fp32>} : vector<32x64xf32>, vector<7x64xf32>, vector<32x7xf32> -> vector<32x7xf32>
    %cst_32 = arith.constant 0.000000e+00 : f32
    %55 = vector.broadcast %cst_32 : f32 to vector<32x7xf32>
    %56 = arith.maximumf %54, %55 : vector<32x7xf32>
    %57 = tpu.transpose %56, [1, 0] : vector<32x7xf32> -> vector<7x32xf32>
    %c1_33 = arith.constant 1 : index
    %c0_34 = arith.constant 0 : index
    %c0_35 = arith.constant 0 : index
    %58 = vector.load %arg9[%c1_33, %c0_34, %c0_35] : memref<2x7x32xf32, #tpu.memory_space<vmem>>, vector<1x7x32xf32>
    %59 = vector.shape_cast %58 : vector<1x7x32xf32> to vector<7x32xf32>
    %60 = vector.shape_cast %57 : vector<7x32xf32> to vector<1x7x32xf32>
    tpu.vector_store %arg9[%c1_33, %c0_34, %c0_35], %60 {strides = array<i32>} : memref<2x7x32xf32, #tpu.memory_space<vmem>>, vector<1x7x32xf32>,
    return
  }
  func.func @transform_0(%arg0: i32) -> (i32, i32, i32) {
    %c0_i32 = arith.constant 0 : i32
    %c0_i32_0 = arith.constant 0 : i32
    %c0_i32_1 = arith.constant 0 : i32
    %c0_i32_2 = arith.constant 0 : i32
    return %c0_i32, %c0_i32_0, %c0_i32_1 : i32, i32, i32
  }
  func.func @transform_1(%arg0: i32) -> (i32, i32) {
    %c0_i32 = arith.constant 0 : i32
    %c0_i32_0 = arith.constant 0 : i32
    %c0_i32_1 = arith.constant 0 : i32
    return %c0_i32, %c0_i32_0 : i32, i32
  }
  func.func @transform_2(%arg0: i32) -> (i32, i32) {
    %c0_i32 = arith.constant 0 : i32
    %c0_i32_0 = arith.constant 0 : i32
    %c0_i32_1 = arith.constant 0 : i32
    return %c0_i32, %c0_i32_0 : i32, i32
  }
  func.func @transform_3(%arg0: i32) -> (i32, i32) {
    %c0_i32 = arith.constant 0 : i32
    %c0_i32_0 = arith.constant 0 : i32
    %c0_i32_1 = arith.constant 0 : i32
    return %c0_i32, %c0_i32_0 : i32, i32
  }
  func.func @transform_4(%arg0: i32) -> (i32, i32) {
    %c0_i32 = arith.constant 0 : i32
    %c0_i32_0 = arith.constant 0 : i32
    %c0_i32_1 = arith.constant 0 : i32
    return %c0_i32, %c0_i32_0 : i32, i32
  }
  func.func @transform_5(%arg0: i32) -> (i32, i32) {
    %c0_i32 = arith.constant 0 : i32
    %c0_i32_0 = arith.constant 0 : i32
    %c0_i32_1 = arith.constant 0 : i32
    return %c0_i32, %c0_i32_0 : i32, i32
  }
  func.func @transform_6(%arg0: i32) -> (i32, i32) {
    %c0_i32 = arith.constant 0 : i32
    %c0_i32_0 = arith.constant 0 : i32
    %c0_i32_1 = arith.constant 0 : i32
    return %c0_i32, %c0_i32_0 : i32, i32
  }
  func.func @transform_7(%arg0: i32) -> (i32, i32) {
    %c0_i32 = arith.constant 0 : i32
    %c0_i32_0 = arith.constant 0 : i32
    %c0_i32_1 = arith.constant 0 : i32
    return %c0_i32, %c0_i32_0 : i32, i32
  }
  func.func @transform_8(%arg0: i32) -> (i32, i32, i32) {
    %c0_i32 = arith.constant 0 : i32
    %c0_i32_0 = arith.constant 0 : i32
    %c0_i32_1 = arith.constant 0 : i32
    %c0_i32_2 = arith.constant 0 : i32
    return %c0_i32, %c0_i32_0, %c0_i32_1 : i32, i32, i32
  }
}

</mosaic_0001>

<llo_original>
// kernel: featuremaps_to_graph_transfer.1
$region0: #{featuremaps_to_graph_transfer.1}
  #allocation0 [shape = 'u32[]', space=smem, size = 0x4, offset = 0x4, fixed_abs, tag = 'smem constant byte address 0x4 - core index']
  #allocation1 [shape = 'u32[144,128]{1,0:T(1,128)}', space=vmem, size = 0x12000, scoped, tag = 'internal scratch']
  %s0 = inlined_call_operand.vmem [shape: f32[2,32,64], index: 0, kind: input, shape index: {}]
  %s1 = inlined_call_operand.vmem [shape: f32[32,7], index: 1, kind: input, shape index: {}]
  %s2 = inlined_call_operand.vmem [shape: f32[32,32], index: 2, kind: input, shape index: {}]
  %s3 = inlined_call_operand.vmem [shape: f32[32,20], index: 3, kind: input, shape index: {}]
  %s4 = inlined_call_operand.vmem [shape: f32[20,20], index: 4, kind: input, shape index: {}]
  %s5 = inlined_call_operand.vmem [shape: f32[1,20], index: 5, kind: input, shape index: {}]
  %s6 = inlined_call_operand.vmem [shape: f32[7,20], index: 6, kind: input, shape index: {}]
  %s7 = inlined_call_operand.vmem [shape: f32[1,7], index: 7, kind: input, shape index: {}]
  %s8 = inlined_call_operand.vmem [shape: f32[2,7,32], index: 8, kind: output, shape index: {}]
  %s9 = sld [smem:[#allocation0]]
  $region42: #{featuremaps_to_graph_transfer.1} parent=0
    _
  %s11 = ssub.s32 1, %s9
  %s12 = scalar_select 0, %s11, %s9
  // Predicated region
  $region2: #{featuremaps_to_graph_transfer.1} parent=0 // pred_check
    _
  $region3: #{featuremaps_to_graph_transfer.1} parent=0 // pred_check_branch
    %14 = sbr.rel (0) target = $region5
  $region4: #{featuremaps_to_graph_transfer.1} parent=0 // pred_region
    _
  $region5: #{featuremaps_to_graph_transfer.1} parent=0 // pred_fallthru
    _
  // Predicated region
  $region6: #{featuremaps_to_graph_transfer.1} parent=0 // pred_check
    _
  $region7: #{featuremaps_to_graph_transfer.1} parent=0 // pred_check_branch
    %16 = sbr.rel (0) target = $region9
  $region8: #{featuremaps_to_graph_transfer.1} parent=0 // pred_region
    _
  $region9: #{featuremaps_to_graph_transfer.1} parent=0 // pred_fallthru
    _
  // Predicated region
  $region10: #{featuremaps_to_graph_transfer.1} parent=0 // pred_check
    _
  $region11: #{featuremaps_to_graph_transfer.1} parent=0 // pred_check_branch
    %18 = sbr.rel (0) target = $region13
  $region12: #{featuremaps_to_graph_transfer.1} parent=0 // pred_region
    _
  $region13: #{featuremaps_to_graph_transfer.1} parent=0 // pred_fallthru
    _
  // Predicated region
  $region14: #{featuremaps_to_graph_transfer.1} parent=0 // pred_check
    _
  $region15: #{featuremaps_to_graph_transfer.1} parent=0 // pred_check_branch
    %20 = sbr.rel (0) target = $region17
  $region16: #{featuremaps_to_graph_transfer.1} parent=0 // pred_region
    _
  $region17: #{featuremaps_to_graph_transfer.1} parent=0 // pred_fallthru
    _
  // Predicated region
  $region18: #{featuremaps_to_graph_transfer.1} parent=0 // pred_check
    _
  $region19: #{featuremaps_to_graph_transfer.1} parent=0 // pred_check_branch
    %22 = sbr.rel (0) target = $region21
  $region20: #{featuremaps_to_graph_transfer.1} parent=0 // pred_region
    _
  $region21: #{featuremaps_to_graph_transfer.1} parent=0 // pred_fallthru
    _
  // Predicated region
  $region22: #{featuremaps_to_graph_transfer.1} parent=0 // pred_check
    _
  $region23: #{featuremaps_to_graph_transfer.1} parent=0 // pred_check_branch
    %24 = sbr.rel (0) target = $region25
  $region24: #{featuremaps_to_graph_transfer.1} parent=0 // pred_region
    _
  $region25: #{featuremaps_to_graph_transfer.1} parent=0 // pred_fallthru
    _
  // Predicated region
  $region26: #{featuremaps_to_graph_transfer.1} parent=0 // pred_check
    _
  $region27: #{featuremaps_to_graph_transfer.1} parent=0 // pred_check_branch
    %26 = sbr.rel (0) target = $region29
  $region28: #{featuremaps_to_graph_transfer.1} parent=0 // pred_region
    _
  $region29: #{featuremaps_to_graph_transfer.1} parent=0 // pred_fallthru
    _
  // Predicated region
  $region30: #{featuremaps_to_graph_transfer.1} parent=0 // pred_check
    _
  $region31: #{featuremaps_to_graph_transfer.1} parent=0 // pred_check_branch
    %28 = sbr.rel (0) target = $region33
  $region32: #{featuremaps_to_graph_transfer.1} parent=0 // pred_region
    _
  $region33: #{featuremaps_to_graph_transfer.1} parent=0 // pred_fallthru
    _
  %v29 = vld [vmem:[%s3] sm:$0xff]
  %v30 = vld [vmem:[%s3 + $0x8] sm:$0xff]
  %v31 = vld [vmem:[%s3 + $0x10] sm:$0xff]
  %v32 = vld [vmem:[%s3 + $0x18] sm:$0xff]
  %v33 = vld [vmem:[%s4] sm:$0xff]
  %v34 = vld [vmem:[%s4 + $0x8] sm:$0xff]
  %v35 = vld [vmem:[%s4 + $0x10] sm:$0xf]
  %v36 = vld [vmem:[%s5] sm:$0x1]
  %v38 = vlaneseq
  %v39 = vshrl.u32 %v38, 7
  %v40 = vsub.s32 0, %v39
  %v41 = vrot.slane %v36, %v40
  %vm43 = vcmask 162816
  %v45 = vsel %vm43, %v29, 0
  %v48 = vsel %vm43, %v30, 0
  %v51 = vsel %vm43, %v31, 0
  %v54 = vsel %vm43, %v32, 0
  %v57 = vsel %vm43, %v33, 0
  %v60 = vsel %vm43, %v34, 0
  %v63 = vsel %vm43, %v35, 0
  %65 = vmatprep.subr.mxu0 0.0
  %v66 = vand.u32 %v57, 4294901760
  %67 = vmatpush1.xpose.msra.mxu0 %v66
  %68 = vmatprep.subr.mxu0 0.0
  %v69 = vand.u32 %v60, 4294901760
  %70 = vmatpush1.xpose.msra.mxu0 %v69
  %71 = vmatprep.subr.mxu0 0.0
  %v72 = vand.u32 %v63, 4294901760
  %73 = vmatpush1.xpose.msra.mxu0 %v72
  %74 = vmatprep.subr.mxu0 0.0
  %75 = vmatpush1.xpose.msra.mxu0 0.0
  %76 = vmatprep.subr.mxu0 0.0
  %77 = vmatpush1.xpose.msra.mxu0 0.0
  %78 = vmatprep.subr.mxu0 0.0
  %79 = vmatpush1.xpose.msra.mxu0 0.0
  %80 = vmatprep.subr.mxu0 0.0
  %81 = vmatpush1.xpose.msra.mxu0 0.0
  %82 = vmatprep.subr.mxu0 0.0
  %83 = vmatpush1.xpose.msra.mxu0 0.0
  %84 = vmatprep.subr.mxu0 0.0
  %85 = vmatpush1.xpose.msra.mxu0 0.0
  %86 = vmatprep.subr.mxu0 0.0
  %87 = vmatpush1.xpose.msra.mxu0 0.0
  %88 = vmatprep.subr.mxu0 0.0
  %89 = vmatpush1.xpose.msra.mxu0 0.0
  %90 = vmatprep.subr.mxu0 0.0
  %91 = vmatpush1.xpose.msra.mxu0 0.0
  %92 = vmatprep.subr.mxu0 0.0
  %93 = vmatpush1.xpose.msra.mxu0 0.0
  %94 = vmatprep.subr.mxu0 0.0
  %95 = vmatpush1.xpose.msra.mxu0 0.0
  %96 = vmatprep.subr.mxu0 0.0
  %97 = vmatpush1.xpose.msra.mxu0 0.0
  %98 = vmatprep.subr.mxu0 0.0
  %99 = vmatpush1.xpose.msra.mxu0 0.0
  %100 = vmatprep.subr.mxu0 0.0
  %101 = vmatpush1.xpose.msra.mxu0 0.0
  %102 = vmatprep.subr.mxu0 0.0
  %103 = vmatpush1.xpose.msra.mxu0 0.0
  %104 = vmatprep.subr.mxu0 0.0
  %105 = vmatpush1.xpose.msra.mxu0 0.0
  %106 = vmatprep.subr.mxu0 0.0
  %107 = vmatpush1.xpose.msra.mxu0 0.0
  %108 = vmatprep.subr.mxu0 0.0
  %109 = vmatpush1.xpose.msra.mxu0 0.0
  %110 = vmatprep.subr.mxu0 0.0
  %111 = vmatpush1.xpose.msra.mxu0 0.0
  %112 = vmatprep.subr.mxu0 0.0
  %113 = vmatpush1.xpose.msra.mxu0 0.0
  %114 = vmatprep.subr.mxu0 0.0
  %115 = vmatpush1.xpose.msra.mxu0 0.0
  %116 = vmatprep.subr.mxu0 0.0
  %117 = vmatpush1.xpose.msra.mxu0 0.0
  %118 = vmatprep.subr.mxu0 0.0
  %119 = vmatpush1.xpose.msra.mxu0 0.0
  %120 = vmatprep.subr.mxu0 0.0
  %121 = vmatpush1.xpose.msra.mxu0 0.0
  %122 = vmatprep.subr.mxu0 0.0
  %123 = vmatpush1.xpose.msra.mxu0 0.0
  %124 = vmatprep.subr.mxu0 0.0
  %125 = vmatpush1.xpose.msra.mxu0 0.0
  %126 = vmatprep.subr.mxu0 0.0
  %127 = vmatpush1.xpose.msra.mxu0 0.0
  %128 = vmatprep.subr.mxu0 0.0
  %129 = vmatpush1.xpose.msra.mxu0 0.0
  %130 = vmatprep.subr.mxu0 0.0
  %131 = vmatpush1.xpose.msra.mxu0 0.0
  %132 = vmatprep.mubr.f32.mxu0 0.0
  %v133 = vand.u32 %v45, 4294901760
  %v134 = vsub.f32 %v45, %v133
  %v135 = vand.u32 %v134, 4294901760
  %v136 = vsub.f32 %v134, %v135
  %v137 = vand.u32 %v136, 4294901760
  %138 = vmatmul.mubr.f32.gmra.mrb[0].mxu0 %v137
  %v139 = vpop.f32.mrb[0].mxu0
  %v140 = vadd.f32 %v41, %v139
  %v141 = vpop.f32.mrb[0].mxu0
  %142 = vmatprep.mubr.f32.mxu0 0.0
  %v143 = vand.u32 %v48, 4294901760
  %v144 = vsub.f32 %v48, %v143
  %v145 = vand.u32 %v144, 4294901760
  %v146 = vsub.f32 %v144, %v145
  %v147 = vand.u32 %v146, 4294901760
  %148 = vmatmul.mubr.f32.gmra.mrb[0].mxu0 %v147
  %v149 = vpop.f32.mrb[0].mxu0
  %v150 = vadd.f32 %v41, %v149
  %v151 = vpop.f32.mrb[0].mxu0
  %152 = vmatprep.mubr.f32.mxu0 0.0
  %v153 = vand.u32 %v51, 4294901760
  %v154 = vsub.f32 %v51, %v153
  %v155 = vand.u32 %v154, 4294901760
  %v156 = vsub.f32 %v154, %v155
  %v157 = vand.u32 %v156, 4294901760
  %158 = vmatmul.mubr.f32.gmra.mrb[0].mxu0 %v157
  %v159 = vpop.f32.mrb[0].mxu0
  %v160 = vadd.f32 %v41, %v159
  %v161 = vpop.f32.mrb[0].mxu0
  %162 = vmatprep.mubr.f32.mxu0 0.0
  %v163 = vand.u32 %v54, 4294901760
  %v164 = vsub.f32 %v54, %v163
  %v165 = vand.u32 %v164, 4294901760
  %v166 = vsub.f32 %v164, %v165
  %v167 = vand.u32 %v166, 4294901760
  %168 = vmatmul.mubr.f32.gmra.mrb[0].mxu0 %v167
  %v169 = vpop.f32.mrb[0].mxu0
  %v170 = vadd.f32 %v41, %v169
  %v171 = vpop.f32.mrb[0].mxu0
  %172 = vdwg.mxu0
  %173 = vmatprep.subr.mxu0 0.0
  %v174 = vand.u32 %v57, 4294901760
  %v175 = vsub.f32 %v57, %v174
  %v176 = vand.u32 %v175, 4294901760
  %v177 = vsub.f32 %v175, %v176
  %v178 = vand.u32 %v177, 4294901760
  %179 = vmatpush1.xpose.msra.mxu0 %v178
  %180 = vmatprep.subr.mxu0 0.0
  %v181 = vand.u32 %v60, 4294901760
  %v182 = vsub.f32 %v60, %v181
  %v183 = vand.u32 %v182, 4294901760
  %v184 = vsub.f32 %v182, %v183
  %v185 = vand.u32 %v184, 4294901760
  %186 = vmatpush1.xpose.msra.mxu0 %v185
  %187 = vmatprep.subr.mxu0 0.0
  %v188 = vand.u32 %v63, 4294901760
  %v189 = vsub.f32 %v63, %v188
  %v190 = vand.u32 %v189, 4294901760
  %v191 = vsub.f32 %v189, %v190
  %v192 = vand.u32 %v191, 4294901760
  %193 = vmatpush1.xpose.msra.mxu0 %v192
  %194 = vmatprep.subr.mxu0 0.0
  %195 = vmatpush1.xpose.msra.mxu0 0.0
  %196 = vmatprep.subr.mxu0 0.0
  %197 = vmatpush1.xpose.msra.mxu0 0.0
  %198 = vmatprep.subr.mxu0 0.0
  %199 = vmatpush1.xpose.msra.mxu0 0.0
  %200 = vmatprep.subr.mxu0 0.0
  %201 = vmatpush1.xpose.msra.mxu0 0.0
  %202 = vmatprep.subr.mxu0 0.0
  %203 = vmatpush1.xpose.msra.mxu0 0.0
  %204 = vmatprep.subr.mxu0 0.0
  %205 = vmatpush1.xpose.msra.mxu0 0.0
  %206 = vmatprep.subr.mxu0 0.0
  %207 = vmatpush1.xpose.msra.mxu0 0.0
  %208 = vmatprep.subr.mxu0 0.0
  %209 = vmatpush1.xpose.msra.mxu0 0.0
  %210 = vmatprep.subr.mxu0 0.0
  %211 = vmatpush1.xpose.msra.mxu0 0.0
  %212 = vmatprep.subr.mxu0 0.0
  %213 = vmatpush1.xpose.msra.mxu0 0.0
  %214 = vmatprep.subr.mxu0 0.0
  %215 = vmatpush1.xpose.msra.mxu0 0.0
  %216 = vmatprep.subr.mxu0 0.0
  %217 = vmatpush1.xpose.msra.mxu0 0.0
  %218 = vmatprep.subr.mxu0 0.0
  %219 = vmatpush1.xpose.msra.mxu0 0.0
  %220 = vmatprep.subr.mxu0 0.0
  %221 = vmatpush1.xpose.msra.mxu0 0.0
  %222 = vmatprep.subr.mxu0 0.0
  %223 = vmatpush1.xpose.msra.mxu0 0.0
  %224 = vmatprep.subr.mxu0 0.0
  %225 = vmatpush1.xpose.msra.mxu0 0.0
  %226 = vmatprep.subr.mxu0 0.0
  %227 = vmatpush1.xpose.msra.mxu0 0.0
  %228 = vmatprep.subr.mxu0 0.0
  %229 = vmatpush1.xpose.msra.mxu0 0.0
  %230 = vmatprep.subr.mxu0 0.0
  %231 = vmatpush1.xpose.msra.mxu0 0.0
  %232 = vmatprep.subr.mxu0 0.0
  %233 = vmatpush1.xpose.msra.mxu0 0.0
  %234 = vmatprep.subr.mxu0 0.0
  %235 = vmatpush1.xpose.msra.mxu0 0.0
  %236 = vmatprep.subr.mxu0 0.0
  %237 = vmatpush1.xpose.msra.mxu0 0.0
  %238 = vmatprep.subr.mxu0 0.0
  %239 = vmatpush1.xpose.msra.mxu0 0.0
  %240 = vmatprep.subr.mxu0 0.0
  %241 = vmatpush1.xpose.msra.mxu0 0.0
  %242 = vmatprep.subr.mxu0 0.0
  %243 = vmatpush1.xpose.msra.mxu0 0.0
  %244 = vmatprep.subr.mxu0 0.0
  %245 = vmatpush1.xpose.msra.mxu0 0.0
  %246 = vmatprep.subr.mxu0 0.0
  %247 = vmatpush1.xpose.msra.mxu0 0.0
  %248 = vmatprep.subr.mxu0 0.0
  %249 = vmatpush1.xpose.msra.mxu0 0.0
  %250 = vmatprep.subr.mxu0 0.0
  %251 = vmatpush1.xpose.msra.mxu0 0.0
  %252 = vmatprep.mubr.f32.mxu0 0.0
  %v253 = vand.u32 %v45, 4294901760
  %254 = vmatmul.mubr.f32.gmra.mrb[0].mxu0 %v253
  %v255 = vpop.f32.mrb[0].mxu0
  %v256 = vadd.f32 %v140, %v255
  %v257 = vpop.f32.mrb[0].mxu0
  %258 = vmatprep.mubr.f32.mxu0 0.0
  %v259 = vand.u32 %v48, 4294901760
  %260 = vmatmul.mubr.f32.gmra.mrb[0].mxu0 %v259
  %v261 = vpop.f32.mrb[0].mxu0
  %v262 = vadd.f32 %v150, %v261
  %v263 = vpop.f32.mrb[0].mxu0
  %264 = vmatprep.mubr.f32.mxu0 0.0
  %v265 = vand.u32 %v51, 4294901760
  %266 = vmatmul.mubr.f32.gmra.mrb[0].mxu0 %v265
  %v267 = vpop.f32.mrb[0].mxu0
  %v268 = vadd.f32 %v160, %v267
  %v269 = vpop.f32.mrb[0].mxu0
  %270 = vmatprep.mubr.f32.mxu0 0.0
  %v271 = vand.u32 %v54, 4294901760
  %272 = vmatmul.mubr.f32.gmra.mrb[0].mxu0 %v271
  %v273 = vpop.f32.mrb[0].mxu0
  %v274 = vadd.f32 %v170, %v273
  %v275 = vpop.f32.mrb[0].mxu0
  %276 = vdwg.mxu0
  %277 = vmatprep.subr.mxu0 0.0
  %v278 = vand.u32 %v57, 4294901760
  %v279 = vsub.f32 %v57, %v278
  %280 = vmatpush1.xpose.msra.mxu0 %v279
  %281 = vmatprep.subr.mxu0 0.0
  %v282 = vand.u32 %v60, 4294901760
  %v283 = vsub.f32 %v60, %v282
  %284 = vmatpush1.xpose.msra.mxu0 %v283
  %285 = vmatprep.subr.mxu0 0.0
  %v286 = vand.u32 %v63, 4294901760
  %v287 = vsub.f32 %v63, %v286
  %288 = vmatpush1.xpose.msra.mxu0 %v287
  %289 = vmatprep.subr.mxu0 0.0
  %290 = vmatpush1.xpose.msra.mxu0 0.0
  %291 = vmatprep.subr.mxu0 0.0
  %292 = vmatpush1.xpose.msra.mxu0 0.0
  %293 = vmatprep.subr.mxu0 0.0
  %294 = vmatpush1.xpose.msra.mxu0 0.0
  %295 = vmatprep.subr.mxu0 0.0
  %296 = vmatpush1.xpose.msra.mxu0 0.0
  %297 = vmatprep.subr.mxu0 0.0
  %298 = vmatpush1.xpose.msra.mxu0 0.0
  %299 = vmatprep.subr.mxu0 0.0
  %300 = vmatpush1.xpose.msra.mxu0 0.0
  %301 = vmatprep.subr.mxu0 0.0
  %302 = vmatpush1.xpose.msra.mxu0 0.0
  %303 = vmatprep.subr.mxu0 0.0
  %304 = vmatpush1.xpose.msra.mxu0 0.0
  %305 = vmatprep.subr.mxu0 0.0
  %306 = vmatpush1.xpose.msra.mxu0 0.0
  %307 = vmatprep.subr.mxu0 0.0
  %308 = vmatpush1.xpose.msra.mxu0 0.0
  %309 = vmatprep.subr.mxu0 0.0
  %310 = vmatpush1.xpose.msra.mxu0 0.0
  %311 = vmatprep.subr.mxu0 0.0
  %312 = vmatpush1.xpose.msra.mxu0 0.0
  %313 = vmatprep.subr.mxu0 0.0
  %314 = vmatpush1.xpose.msra.mxu0 0.0
  %315 = vmatprep.subr.mxu0 0.0
  %316 = vmatpush1.xpose.msra.mxu0 0.0
  %317 = vmatprep.subr.mxu0 0.0
  %318 = vmatpush1.xpose.msra.mxu0 0.0
  %319 = vmatprep.subr.mxu0 0.0
  %320 = vmatpush1.xpose.msra.mxu0 0.0
  %321 = vmatprep.subr.mxu0 0.0
  %322 = vmatpush1.xpose.msra.mxu0 0.0
  %323 = vmatprep.subr.mxu0 0.0
  %324 = vmatpush1.xpose.msra.mxu0 0.0
  %325 = vmatprep.subr.mxu0 0.0
  %326 = vmatpush1.xpose.msra.mxu0 0.0
  %327 = vmatprep.subr.mxu0 0.0
  %328 = vmatpush1.xpose.msra.mxu0 0.0
  %329 = vmatprep.subr.mxu0 0.0
  %330 = vmatpush1.xpose.msra.mxu0 0.0
  %331 = vmatprep.subr.mxu0 0.0
  %332 = vmatpush1.xpose.msra.mxu0 0.0
  %333 = vmatprep.subr.mxu0 0.0
  %334 = vmatpush1.xpose.msra.mxu0 0.0
  %335 = vmatprep.subr.mxu0 0.0
  %336 = vmatpush1.xpose.msra.mxu0 0.0
  %337 = vmatprep.subr.mxu0 0.0
  %338 = vmatpush1.xpose.msra.mxu0 0.0
  %339 = vmatprep.subr.mxu0 0.0
  %340 = vmatpush1.xpose.msra.mxu0 0.0
  %341 = vmatprep.subr.mxu0 0.0
  %342 = vmatpush1.xpose.msra.mxu0 0.0
  %343 = vmatprep.subr.mxu0 0.0
  %344 = vmatpush1.xpose.msra.mxu0 0.0
  %345 = vmatprep.subr.mxu0 0.0
  %346 = vmatpush1.xpose.msra.mxu0 0.0
  %347 = vmatprep.mubr.f32.mxu0 0.0
  %v348 = vand.u32 %v45, 4294901760
  %v349 = vsub.f32 %v45, %v348
  %350 = vmatmul.mubr.f32.gmra.mrb[0].mxu0 %v349
  %v351 = vpop.f32.mrb[0].mxu0
  %v352 = vadd.f32 %v256, %v351
  %v353 = vpop.f32.mrb[0].mxu0
  %354 = vmatprep.mubr.f32.mxu0 0.0
  %v355 = vand.u32 %v48, 4294901760
  %v356 = vsub.f32 %v48, %v355
  %357 = vmatmul.mubr.f32.gmra.mrb[0].mxu0 %v356
  %v358 = vpop.f32.mrb[0].mxu0
  %v359 = vadd.f32 %v262, %v358
  %v360 = vpop.f32.mrb[0].mxu0
  %361 = vmatprep.mubr.f32.mxu0 0.0
  %v362 = vand.u32 %v51, 4294901760
  %v363 = vsub.f32 %v51, %v362
  %364 = vmatmul.mubr.f32.gmra.mrb[0].mxu0 %v363
  %v365 = vpop.f32.mrb[0].mxu0
  %v366 = vadd.f32 %v268, %v365
  %v367 = vpop.f32.mrb[0].mxu0
  %368 = vmatprep.mubr.f32.mxu0 0.0
  %v369 = vand.u32 %v54, 4294901760
  %v370 = vsub.f32 %v54, %v369
  %371 = vmatmul.mubr.f32.gmra.mrb[0].mxu0 %v370
  %v372 = vpop.f32.mrb[0].mxu0
  %v373 = vadd.f32 %v274, %v372
  %v374 = vpop.f32.mrb[0].mxu0
  %375 = vdwg.mxu0
  %376 = vmatprep.subr.mxu0 0.0
  %v377 = vand.u32 %v57, 4294901760
  %378 = vmatpush1.xpose.msra.mxu0 %v377
  %379 = vmatprep.subr.mxu0 0.0
  %v380 = vand.u32 %v60, 4294901760
  %381 = vmatpush1.xpose.msra.mxu0 %v380
  %382 = vmatprep.subr.mxu0 0.0
  %v383 = vand.u32 %v63, 4294901760
  %384 = vmatpush1.xpose.msra.mxu0 %v383
  %385 = vmatprep.subr.mxu0 0.0
  %386 = vmatpush1.xpose.msra.mxu0 0.0
  %387 = vmatprep.subr.mxu0 0.0
  %388 = vmatpush1.xpose.msra.mxu0 0.0
  %389 = vmatprep.subr.mxu0 0.0
  %390 = vmatpush1.xpose.msra.mxu0 0.0
  %391 = vmatprep.subr.mxu0 0.0
  %392 = vmatpush1.xpose.msra.mxu0 0.0
  %393 = vmatprep.subr.mxu0 0.0
  %394 = vmatpush1.xpose.msra.mxu0 0.0
  %395 = vmatprep.subr.mxu0 0.0
  %396 = vmatpush1.xpose.msra.mxu0 0.0
  %397 = vmatprep.subr.mxu0 0.0
  %398 = vmatpush1.xpose.msra.mxu0 0.0
  %399 = vmatprep.subr.mxu0 0.0
  %400 = vmatpush1.xpose.msra.mxu0 0.0
  %401 = vmatprep.subr.mxu0 0.0
  %402 = vmatpush1.xpose.msra.mxu0 0.0
  %403 = vmatprep.subr.mxu0 0.0
  %404 = vmatpush1.xpose.msra.mxu0 0.0
  %405 = vmatprep.subr.mxu0 0.0
  %406 = vmatpush1.xpose.msra.mxu0 0.0
  %407 = vmatprep.subr.mxu0 0.0
  %408 = vmatpush1.xpose.msra.mxu0 0.0
  %409 = vmatprep.subr.mxu0 0.0
  %410 = vmatpush1.xpose.msra.mxu0 0.0
  %411 = vmatprep.subr.mxu0 0.0
  %412 = vmatpush1.xpose.msra.mxu0 0.0
  %413 = vmatprep.subr.mxu0 0.0
  %414 = vmatpush1.xpose.msra.mxu0 0.0
  %415 = vmatprep.subr.mxu0 0.0
  %416 = vmatpush1.xpose.msra.mxu0 0.0
  %417 = vmatprep.subr.mxu0 0.0
  %418 = vmatpush1.xpose.msra.mxu0 0.0
  %419 = vmatprep.subr.mxu0 0.0
  %420 = vmatpush1.xpose.msra.mxu0 0.0
  %421 = vmatprep.subr.mxu0 0.0
  %422 = vmatpush1.xpose.msra.mxu0 0.0
  %423 = vmatprep.subr.mxu0 0.0
  %424 = vmatpush1.xpose.msra.mxu0 0.0
  %425 = vmatprep.subr.mxu0 0.0
  %426 = vmatpush1.xpose.msra.mxu0 0.0
  %427 = vmatprep.subr.mxu0 0.0
  %428 = vmatpush1.xpose.msra.mxu0 0.0
  %429 = vmatprep.subr.mxu0 0.0
  %430 = vmatpush1.xpose.msra.mxu0 0.0
  %431 = vmatprep.subr.mxu0 0.0
  %432 = vmatpush1.xpose.msra.mxu0 0.0
  %433 = vmatprep.subr.mxu0 0.0
  %434 = vmatpush1.xpose.msra.mxu0 0.0
  %435 = vmatprep.subr.mxu0 0.0
  %436 = vmatpush1.xpose.msra.mxu0 0.0
  %437 = vmatprep.subr.mxu0 0.0
  %438 = vmatpush1.xpose.msra.mxu0 0.0
  %439 = vmatprep.subr.mxu0 0.0
  %440 = vmatpush1.xpose.msra.mxu0 0.0
  %441 = vmatprep.subr.mxu0 0.0
  %442 = vmatpush1.xpose.msra.mxu0 0.0
  %443 = vmatprep.mubr.f32.mxu0 0.0
  %v444 = vand.u32 %v45, 4294901760
  %v445 = vsub.f32 %v45, %v444
  %v446 = vand.u32 %v445, 4294901760
  %447 = vmatmul.mubr.f32.gmra.mrb[0].mxu0 %v446
  %v448 = vpop.f32.mrb[0].mxu0
  %v449 = vadd.f32 %v352, %v448
  %v450 = vpop.f32.mrb[0].mxu0
  %451 = vmatprep.mubr.f32.mxu0 0.0
  %v452 = vand.u32 %v48, 4294901760
  %v453 = vsub.f32 %v48, %v452
  %v454 = vand.u32 %v453, 4294901760
  %455 = vmatmul.mubr.f32.gmra.mrb[0].mxu0 %v454
  %v456 = vpop.f32.mrb[0].mxu0
  %v457 = vadd.f32 %v359, %v456
  %v458 = vpop.f32.mrb[0].mxu0
  %459 = vmatprep.mubr.f32.mxu0 0.0
  %v460 = vand.u32 %v51, 4294901760
  %v461 = vsub.f32 %v51, %v460
  %v462 = vand.u32 %v461, 4294901760
  %463 = vmatmul.mubr.f32.gmra.mrb[0].mxu0 %v462
  %v464 = vpop.f32.mrb[0].mxu0
  %v465 = vadd.f32 %v366, %v464
  %v466 = vpop.f32.mrb[0].mxu0
  %467 = vmatprep.mubr.f32.mxu0 0.0
  %v468 = vand.u32 %v54, 4294901760
  %v469 = vsub.f32 %v54, %v468
  %v470 = vand.u32 %v469, 4294901760
  %471 = vmatmul.mubr.f32.gmra.mrb[0].mxu0 %v470
  %v472 = vpop.f32.mrb[0].mxu0
  %v473 = vadd.f32 %v373, %v472
  %v474 = vpop.f32.mrb[0].mxu0
  %475 = vdwg.mxu0
  %476 = vmatprep.subr.mxu0 0.0
  %v477 = vand.u32 %v57, 4294901760
  %v478 = vsub.f32 %v57, %v477
  %v479 = vand.u32 %v478, 4294901760
  %480 = vmatpush1.xpose.msra.mxu0 %v479
  %481 = vmatprep.subr.mxu0 0.0
  %v482 = vand.u32 %v60, 4294901760
  %v483 = vsub.f32 %v60, %v482
  %v484 = vand.u32 %v483, 4294901760
  %485 = vmatpush1.xpose.msra.mxu0 %v484
  %486 = vmatprep.subr.mxu0 0.0
  %v487 = vand.u32 %v63, 4294901760
  %v488 = vsub.f32 %v63, %v487
  %v489 = vand.u32 %v488, 4294901760
  %490 = vmatpush1.xpose.msra.mxu0 %v489
  %491 = vmatprep.subr.mxu0 0.0
  %492 = vmatpush1.xpose.msra.mxu0 0.0
  %493 = vmatprep.subr.mxu0 0.0
  %494 = vmatpush1.xpose.msra.mxu0 0.0
  %495 = vmatprep.subr.mxu0 0.0
  %496 = vmatpush1.xpose.msra.mxu0 0.0
  %497 = vmatprep.subr.mxu0 0.0
  %498 = vmatpush1.xpose.msra.mxu0 0.0
  %499 = vmatprep.subr.mxu0 0.0
  %500 = vmatpush1.xpose.msra.mxu0 0.0
  %501 = vmatprep.subr.mxu0 0.0
  %502 = vmatpush1.xpose.msra.mxu0 0.0
  %503 = vmatprep.subr.mxu0 0.0
  %504 = vmatpush1.xpose.msra.mxu0 0.0
  %505 = vmatprep.subr.mxu0 0.0
  %506 = vmatpush1.xpose.msra.mxu0 0.0
  %507 = vmatprep.subr.mxu0 0.0
  %508 = vmatpush1.xpose.msra.mxu0 0.0
  %509 = vmatprep.subr.mxu0 0.0
  %510 = vmatpush1.xpose.msra.mxu0 0.0
  %511 = vmatprep.subr.mxu0 0.0
  %512 = vmatpush1.xpose.msra.mxu0 0.0
  %513 = vmatprep.subr.mxu0 0.0
  %514 = vmatpush1.xpose.msra.mxu0 0.0
  %515 = vmatprep.subr.mxu0 0.0
  %516 = vmatpush1.xpose.msra.mxu0 0.0
  %517 = vmatprep.subr.mxu0 0.0
  %518 = vmatpush1.xpose.msra.mxu0 0.0
  %519 = vmatprep.subr.mxu0 0.0
  %520 = vmatpush1.xpose.msra.mxu0 0.0
  %521 = vmatprep.subr.mxu0 0.0
  %522 = vmatpush1.xpose.msra.mxu0 0.0
  %523 = vmatprep.subr.mxu0 0.0
  %524 = vmatpush1.xpose.msra.mxu0 0.0
  %525 = vmatprep.subr.mxu0 0.0
  %526 = vmatpush1.xpose.msra.mxu0 0.0
  %527 = vmatprep.subr.mxu0 0.0
  %528 = vmatpush1.xpose.msra.mxu0 0.0
  %529 = vmatprep.subr.mxu0 0.0
  %530 = vmatpush1.xpose.msra.mxu0 0.0
  %531 = vmatprep.subr.mxu0 0.0
  %532 = vmatpush1.xpose.msra.mxu0 0.0
  %533 = vmatprep.subr.mxu0 0.0
  %534 = vmatpush1.xpose.msra.mxu0 0.0
  %535 = vmatprep.subr.mxu0 0.0
  %536 = vmatpush1.xpose.msra.mxu0 0.0
  %537 = vmatprep.subr.mxu0 0.0
  %538 = vmatpush1.xpose.msra.mxu0 0.0
  %539 = vmatprep.subr.mxu0 0.0
  %540 = vmatpush1.xpose.msra.mxu0 0.0
  %541 = vmatprep.subr.mxu0 0.0
  %542 = vmatpush1.xpose.msra.mxu0 0.0
  %543 = vmatprep.subr.mxu0 0.0
  %544 = vmatpush1.xpose.msra.mxu0 0.0
  %545 = vmatprep.subr.mxu0 0.0
  %546 = vmatpush1.xpose.msra.mxu0 0.0
  %547 = vmatprep.subr.mxu0 0.0
  %548 = vmatpush1.xpose.msra.mxu0 0.0
  %549 = vmatprep.mubr.f32.mxu0 0.0
  %v550 = vand.u32 %v45, 4294901760
  %551 = vmatmul.mubr.f32.gmra.mrb[0].mxu0 %v550
  %v552 = vpop.f32.mrb[0].mxu0
  %v553 = vadd.f32 %v449, %v552
  %v554 = vpop.f32.mrb[0].mxu0
  %555 = vmatprep.mubr.f32.mxu0 0.0
  %v556 = vand.u32 %v48, 4294901760
  %557 = vmatmul.mubr.f32.gmra.mrb[0].mxu0 %v556
  %v558 = vpop.f32.mrb[0].mxu0
  %v559 = vadd.f32 %v457, %v558
  %v560 = vpop.f32.mrb[0].mxu0
  %561 = vmatprep.mubr.f32.mxu0 0.0
  %v562 = vand.u32 %v51, 4294901760
  %563 = vmatmul.mubr.f32.gmra.mrb[0].mxu0 %v562
  %v564 = vpop.f32.mrb[0].mxu0
  %v565 = vadd.f32 %v465, %v564
  %v566 = vpop.f32.mrb[0].mxu0
  %567 = vmatprep.mubr.f32.mxu0 0.0
  %v568 = vand.u32 %v54, 4294901760
  %569 = vmatmul.mubr.f32.gmra.mrb[0].mxu0 %v568
  %v570 = vpop.f32.mrb[0].mxu0
  %v571 = vadd.f32 %v473, %v570
  %v572 = vpop.f32.mrb[0].mxu0
  %573 = vdwg.mxu0
  %574 = vmatprep.subr.mxu0 0.0
  %v575 = vand.u32 %v57, 4294901760
  %576 = vmatpush1.xpose.msra.mxu0 %v575
  %577 = vmatprep.subr.mxu0 0.0
  %v578 = vand.u32 %v60, 4294901760
  %579 = vmatpush1.xpose.msra.mxu0 %v578
  %580 = vmatprep.subr.mxu0 0.0
  %v581 = vand.u32 %v63, 4294901760
  %582 = vmatpush1.xpose.msra.mxu0 %v581
  %583 = vmatprep.subr.mxu0 0.0
  %584 = vmatpush1.xpose.msra.mxu0 0.0
  %585 = vmatprep.subr.mxu0 0.0
  %586 = vmatpush1.xpose.msra.mxu0 0.0
  %587 = vmatprep.subr.mxu0 0.0
  %588 = vmatpush1.xpose.msra.mxu0 0.0
  %589 = vmatprep.subr.mxu0 0.0
  %590 = vmatpush1.xpose.msra.mxu0 0.0
  %591 = vmatprep.subr.mxu0 0.0
  %592 = vmatpush1.xpose.msra.mxu0 0.0
  %593 = vmatprep.subr.mxu0 0.0
  %594 = vmatpush1.xpose.msra.mxu0 0.0
  %595 = vmatprep.subr.mxu0 0.0
  %596 = vmatpush1.xpose.msra.mxu0 0.0
  %597 = vmatprep.subr.mxu0 0.0
  %598 = vmatpush1.xpose.msra.mxu0 0.0
  %599 = vmatprep.subr.mxu0 0.0
  %600 = vmatpush1.xpose.msra.mxu0 0.0
  %601 = vmatprep.subr.mxu0 0.0
  %602 = vmatpush1.xpose.msra.mxu0 0.0
  %603 = vmatprep.subr.mxu0 0.0
  %604 = vmatpush1.xpose.msra.mxu0 0.0
  %605 = vmatprep.subr.mxu0 0.0
  %606 = vmatpush1.xpose.msra.mxu0 0.0
  %607 = vmatprep.subr.mxu0 0.0
  %608 = vmatpush1.xpose.msra.mxu0 0.0
  %609 = vmatprep.subr.mxu0 0.0
  %610 = vmatpush1.xpose.msra.mxu0 0.0
  %611 = vmatprep.subr.mxu0 0.0
  %612 = vmatpush1.xpose.msra.mxu0 0.0
  %613 = vmatprep.subr.mxu0 0.0
  %614 = vmatpush1.xpose.msra.mxu0 0.0
  %615 = vmatprep.subr.mxu0 0.0
  %616 = vmatpush1.xpose.msra.mxu0 0.0
  %617 = vmatprep.subr.mxu0 0.0
  %618 = vmatpush1.xpose.msra.mxu0 0.0
  %619 = vmatprep.subr.mxu0 0.0
  %620 = vmatpush1.xpose.msra.mxu0 0.0
  %621 = vmatprep.subr.mxu0 0.0
  %622 = vmatpush1.xpose.msra.mxu0 0.0
  %623 = vmatprep.subr.mxu0 0.0
  %624 = vmatpush1.xpose.msra.mxu0 0.0
  %625 = vmatprep.subr.mxu0 0.0
  %626 = vmatpush1.xpose.msra.mxu0 0.0
  %627 = vmatprep.subr.mxu0 0.0
  %628 = vmatpush1.xpose.msra.mxu0 0.0
  %629 = vmatprep.subr.mxu0 0.0
  %630 = vmatpush1.xpose.msra.mxu0 0.0
  %631 = vmatprep.subr.mxu0 0.0
  %632 = vmatpush1.xpose.msra.mxu0 0.0
  %633 = vmatprep.subr.mxu0 0.0
  %634 = vmatpush1.xpose.msra.mxu0 0.0
  %635 = vmatprep.subr.mxu0 0.0
  %636 = vmatpush1.xpose.msra.mxu0 0.0
  %637 = vmatprep.subr.mxu0 0.0
  %638 = vmatpush1.xpose.msra.mxu0 0.0
  %639 = vmatprep.subr.mxu0 0.0
  %640 = vmatpush1.xpose.msra.mxu0 0.0
  %641 = vmatprep.mubr.f32.mxu0 0.0
  %v642 = vand.u32 %v45, 4294901760
  %643 = vmatmul.mubr.f32.gmra.mrb[0].mxu0 %v642
  %v644 = vpop.f32.mrb[0].mxu0
  %v645 = vadd.f32 %v553, %v644
  %v646 = vpop.f32.mrb[0].mxu0
  %647 = vmatprep.mubr.f32.mxu0 0.0
  %v648 = vand.u32 %v48, 4294901760
  %649 = vmatmul.mubr.f32.gmra.mrb[0].mxu0 %v648
  %v650 = vpop.f32.mrb[0].mxu0
  %v651 = vadd.f32 %v559, %v650
  %v652 = vpop.f32.mrb[0].mxu0
  %653 = vmatprep.mubr.f32.mxu0 0.0
  %v654 = vand.u32 %v51, 4294901760
  %655 = vmatmul.mubr.f32.gmra.mrb[0].mxu0 %v654
  %v656 = vpop.f32.mrb[0].mxu0
  %v657 = vadd.f32 %v565, %v656
  %v658 = vpop.f32.mrb[0].mxu0
  %659 = vmatprep.mubr.f32.mxu0 0.0
  %v660 = vand.u32 %v54, 4294901760
  %661 = vmatmul.mubr.f32.gmra.mrb[0].mxu0 %v660
  %v662 = vpop.f32.mrb[0].mxu0
  %v663 = vadd.f32 %v571, %v662
  %v664 = vpop.f32.mrb[0].mxu0
  %665 = vdwg.mxu0
  %v666 = vld [vmem:[%s6] sm:$0x7f]
  %v667 = vld [vmem:[%s7] sm:$0x1]
  %v669 = vlaneseq
  %v670 = vshrl.u32 %v669, 7
  %v671 = vsub.s32 0, %v670
  %v672 = vrot.slane %v667, %v671
  %v675 = vsel %vm43, %v645, 0
  %v678 = vsel %vm43, %v651, 0
  %v681 = vsel %vm43, %v657, 0
  %v684 = vsel %vm43, %v663, 0
  %v687 = vsel %vm43, %v666, 0
  %689 = vmatprep.subr.mxu0 0.0
  %v690 = vand.u32 %v687, 4294901760
  %691 = vmatpush1.xpose.msra.mxu0 %v690
  %692 = vmatprep.subr.mxu0 0.0
  %693 = vmatpush1.xpose.msra.mxu0 0.0
  %694 = vmatprep.subr.mxu0 0.0
  %695 = vmatpush1.xpose.msra.mxu0 0.0
  %696 = vmatprep.subr.mxu0 0.0
  %697 = vmatpush1.xpose.msra.mxu0 0.0
  %698 = vmatprep.subr.mxu0 0.0
  %699 = vmatpush1.xpose.msra.mxu0 0.0
  %700 = vmatprep.subr.mxu0 0.0
  %701 = vmatpush1.xpose.msra.mxu0 0.0
  %702 = vmatprep.subr.mxu0 0.0
  %703 = vmatpush1.xpose.msra.mxu0 0.0
  %704 = vmatprep.subr.mxu0 0.0
  %705 = vmatpush1.xpose.msra.mxu0 0.0
  %706 = vmatprep.subr.mxu0 0.0
  %707 = vmatpush1.xpose.msra.mxu0 0.0
  %708 = vmatprep.subr.mxu0 0.0
  %709 = vmatpush1.xpose.msra.mxu0 0.0
  %710 = vmatprep.subr.mxu0 0.0
  %711 = vmatpush1.xpose.msra.mxu0 0.0
  %712 = vmatprep.subr.mxu0 0.0
  %713 = vmatpush1.xpose.msra.mxu0 0.0
  %714 = vmatprep.subr.mxu0 0.0
  %715 = vmatpush1.xpose.msra.mxu0 0.0
  %716 = vmatprep.subr.mxu0 0.0
  %717 = vmatpush1.xpose.msra.mxu0 0.0
  %718 = vmatprep.subr.mxu0 0.0
  %719 = vmatpush1.xpose.msra.mxu0 0.0
  %720 = vmatprep.subr.mxu0 0.0
  %721 = vmatpush1.xpose.msra.mxu0 0.0
  %722 = vmatprep.subr.mxu0 0.0
  %723 = vmatpush1.xpose.msra.mxu0 0.0
  %724 = vmatprep.subr.mxu0 0.0
  %725 = vmatpush1.xpose.msra.mxu0 0.0
  %726 = vmatprep.subr.mxu0 0.0
  %727 = vmatpush1.xpose.msra.mxu0 0.0
  %728 = vmatprep.subr.mxu0 0.0
  %729 = vmatpush1.xpose.msra.mxu0 0.0
  %730 = vmatprep.subr.mxu0 0.0
  %731 = vmatpush1.xpose.msra.mxu0 0.0
  %732 = vmatprep.subr.mxu0 0.0
  %733 = vmatpush1.xpose.msra.mxu0 0.0
  %734 = vmatprep.subr.mxu0 0.0
  %735 = vmatpush1.xpose.msra.mxu0 0.0
  %736 = vmatprep.subr.mxu0 0.0
  %737 = vmatpush1.xpose.msra.mxu0 0.0
  %738 = vmatprep.subr.mxu0 0.0
  %739 = vmatpush1.xpose.msra.mxu0 0.0
  %740 = vmatprep.subr.mxu0 0.0
  %741 = vmatpush1.xpose.msra.mxu0 0.0
  %742 = vmatprep.subr.mxu0 0.0
  %743 = vmatpush1.xpose.msra.mxu0 0.0
  %744 = vmatprep.subr.mxu0 0.0
  %745 = vmatpush1.xpose.msra.mxu0 0.0
  %746 = vmatprep.subr.mxu0 0.0
  %747 = vmatpush1.xpose.msra.mxu0 0.0
  %748 = vmatprep.subr.mxu0 0.0
  %749 = vmatpush1.xpose.msra.mxu0 0.0
  %750 = vmatprep.subr.mxu0 0.0
  %751 = vmatpush1.xpose.msra.mxu0 0.0
  %752 = vmatprep.subr.mxu0 0.0
  %753 = vmatpush1.xpose.msra.mxu0 0.0
  %754 = vmatprep.mubr.f32.mxu0 0.0
  %v755 = vand.u32 %v675, 4294901760
  %v756 = vsub.f32 %v675, %v755
  %v757 = vand.u32 %v756, 4294901760
  %v758 = vsub.f32 %v756, %v757
  %v759 = vand.u32 %v758, 4294901760
  %760 = vmatmul.mubr.f32.gmra.mrb[0].mxu0 %v759
  %v761 = vpop.f32.mrb[0].mxu0
  %v762 = vadd.f32 %v672, %v761
  %v763 = vpop.f32.mrb[0].mxu0
  %764 = vmatprep.mubr.f32.mxu0 0.0
  %v765 = vand.u32 %v678, 4294901760
  %v766 = vsub.f32 %v678, %v765
  %v767 = vand.u32 %v766, 4294901760
  %v768 = vsub.f32 %v766, %v767
  %v769 = vand.u32 %v768, 4294901760
  %770 = vmatmul.mubr.f32.gmra.mrb[0].mxu0 %v769
  %v771 = vpop.f32.mrb[0].mxu0
  %v772 = vadd.f32 %v672, %v771
  %v773 = vpop.f32.mrb[0].mxu0
  %774 = vmatprep.mubr.f32.mxu0 0.0
  %v775 = vand.u32 %v681, 4294901760
  %v776 = vsub.f32 %v681, %v775
  %v777 = vand.u32 %v776, 4294901760
  %v778 = vsub.f32 %v776, %v777
  %v779 = vand.u32 %v778, 4294901760
  %780 = vmatmul.mubr.f32.gmra.mrb[0].mxu0 %v779
  %v781 = vpop.f32.mrb[0].mxu0
  %v782 = vadd.f32 %v672, %v781
  %v783 = vpop.f32.mrb[0].mxu0
  %784 = vmatprep.mubr.f32.mxu0 0.0
  %v785 = vand.u32 %v684, 4294901760
  %v786 = vsub.f32 %v684, %v785
  %v787 = vand.u32 %v786, 4294901760
  %v788 = vsub.f32 %v786, %v787
  %v789 = vand.u32 %v788, 4294901760
  %790 = vmatmul.mubr.f32.gmra.mrb[0].mxu0 %v789
  %v791 = vpop.f32.mrb[0].mxu0
  %v792 = vadd.f32 %v672, %v791
  %v793 = vpop.f32.mrb[0].mxu0
  %794 = vdwg.mxu0
  %795 = vmatprep.subr.mxu0 0.0
  %v796 = vand.u32 %v687, 4294901760
  %v797 = vsub.f32 %v687, %v796
  %v798 = vand.u32 %v797, 4294901760
  %v799 = vsub.f32 %v797, %v798
  %v800 = vand.u32 %v799, 4294901760
  %801 = vmatpush1.xpose.msra.mxu0 %v800
  %802 = vmatprep.subr.mxu0 0.0
  %803 = vmatpush1.xpose.msra.mxu0 0.0
  %804 = vmatprep.subr.mxu0 0.0
  %805 = vmatpush1.xpose.msra.mxu0 0.0
  %806 = vmatprep.subr.mxu0 0.0
  %807 = vmatpush1.xpose.msra.mxu0 0.0
  %808 = vmatprep.subr.mxu0 0.0
  %809 = vmatpush1.xpose.msra.mxu0 0.0
  %810 = vmatprep.subr.mxu0 0.0
  %811 = vmatpush1.xpose.msra.mxu0 0.0
  %812 = vmatprep.subr.mxu0 0.0
  %813 = vmatpush1.xpose.msra.mxu0 0.0
  %814 = vmatprep.subr.mxu0 0.0
  %815 = vmatpush1.xpose.msra.mxu0 0.0
  %816 = vmatprep.subr.mxu0 0.0
  %817 = vmatpush1.xpose.msra.mxu0 0.0
  %818 = vmatprep.subr.mxu0 0.0
  %819 = vmatpush1.xpose.msra.mxu0 0.0
  %820 = vmatprep.subr.mxu0 0.0
  %821 = vmatpush1.xpose.msra.mxu0 0.0
  %822 = vmatprep.subr.mxu0 0.0
  %823 = vmatpush1.xpose.msra.mxu0 0.0
  %824 = vmatprep.subr.mxu0 0.0
  %825 = vmatpush1.xpose.msra.mxu0 0.0
  %826 = vmatprep.subr.mxu0 0.0
  %827 = vmatpush1.xpose.msra.mxu0 0.0
  %828 = vmatprep.subr.mxu0 0.0
  %829 = vmatpush1.xpose.msra.mxu0 0.0
  %830 = vmatprep.subr.mxu0 0.0
  %831 = vmatpush1.xpose.msra.mxu0 0.0
  %832 = vmatprep.subr.mxu0 0.0
  %833 = vmatpush1.xpose.msra.mxu0 0.0
  %834 = vmatprep.subr.mxu0 0.0
  %835 = vmatpush1.xpose.msra.mxu0 0.0
  %836 = vmatprep.subr.mxu0 0.0
  %837 = vmatpush1.xpose.msra.mxu0 0.0
  %838 = vmatprep.subr.mxu0 0.0
  %839 = vmatpush1.xpose.msra.mxu0 0.0
  %840 = vmatprep.subr.mxu0 0.0
  %841 = vmatpush1.xpose.msra.mxu0 0.0
  %842 = vmatprep.subr.mxu0 0.0
  %843 = vmatpush1.xpose.msra.mxu0 0.0
  %844 = vmatprep.subr.mxu0 0.0
  %845 = vmatpush1.xpose.msra.mxu0 0.0
  %846 = vmatprep.subr.mxu0 0.0
  %847 = vmatpush1.xpose.msra.mxu0 0.0
  %848 = vmatprep.subr.mxu0 0.0
  %849 = vmatpush1.xpose.msra.mxu0 0.0
  %850 = vmatprep.subr.mxu0 0.0
  %851 = vmatpush1.xpose.msra.mxu0 0.0
  %852 = vmatprep.subr.mxu0 0.0
  %853 = vmatpush1.xpose.msra.mxu0 0.0
  %854 = vmatprep.subr.mxu0 0.0
  %855 = vmatpush1.xpose.msra.mxu0 0.0
  %856 = vmatprep.subr.mxu0 0.0
  %857 = vmatpush1.xpose.msra.mxu0 0.0
  %858 = vmatprep.subr.mxu0 0.0
  %859 = vmatpush1.xpose.msra.mxu0 0.0
  %860 = vmatprep.subr.mxu0 0.0
  %861 = vmatpush1.xpose.msra.mxu0 0.0
  %862 = vmatprep.subr.mxu0 0.0
  %863 = vmatpush1.xpose.msra.mxu0 0.0
  %864 = vmatprep.mubr.f32.mxu0 0.0
  %v865 = vand.u32 %v675, 4294901760
  %866 = vmatmul.mubr.f32.gmra.mrb[0].mxu0 %v865
  %v867 = vpop.f32.mrb[0].mxu0
  %v868 = vadd.f32 %v762, %v867
  %v869 = vpop.f32.mrb[0].mxu0
  %870 = vmatprep.mubr.f32.mxu0 0.0
  %v871 = vand.u32 %v678, 4294901760
  %872 = vmatmul.mubr.f32.gmra.mrb[0].mxu0 %v871
  %v873 = vpop.f32.mrb[0].mxu0
  %v874 = vadd.f32 %v772, %v873
  %v875 = vpop.f32.mrb[0].mxu0
  %876 = vmatprep.mubr.f32.mxu0 0.0
  %v877 = vand.u32 %v681, 4294901760
  %878 = vmatmul.mubr.f32.gmra.mrb[0].mxu0 %v877
  %v879 = vpop.f32.mrb[0].mxu0
  %v880 = vadd.f32 %v782, %v879
  %v881 = vpop.f32.mrb[0].mxu0
  %882 = vmatprep.mubr.f32.mxu0 0.0
  %v883 = vand.u32 %v684, 4294901760
  %884 = vmatmul.mubr.f32.gmra.mrb[0].mxu0 %v883
  %v885 = vpop.f32.mrb[0].mxu0
  %v886 = vadd.f32 %v792, %v885
  %v887 = vpop.f32.mrb[0].mxu0
  %888 = vdwg.mxu0
  %889 = vmatprep.subr.mxu0 0.0
  %v890 = vand.u32 %v687, 4294901760
  %v891 = vsub.f32 %v687, %v890
  %892 = vmatpush1.xpose.msra.mxu0 %v891
  %893 = vmatprep.subr.mxu0 0.0
  %894 = vmatpush1.xpose.msra.mxu0 0.0
  %895 = vmatprep.subr.mxu0 0.0
  %896 = vmatpush1.xpose.msra.mxu0 0.0
  %897 = vmatprep.subr.mxu0 0.0
  %898 = vmatpush1.xpose.msra.mxu0 0.0
  %899 = vmatprep.subr.mxu0 0.0
  %900 = vmatpush1.xpose.msra.mxu0 0.0
  %901 = vmatprep.subr.mxu0 0.0
  %902 = vmatpush1.xpose.msra.mxu0 0.0
  %903 = vmatprep.subr.mxu0 0.0
  %904 = vmatpush1.xpose.msra.mxu0 0.0
  %905 = vmatprep.subr.mxu0 0.0
  %906 = vmatpush1.xpose.msra.mxu0 0.0
  %907 = vmatprep.subr.mxu0 0.0
  %908 = vmatpush1.xpose.msra.mxu0 0.0
  %909 = vmatprep.subr.mxu0 0.0
  %910 = vmatpush1.xpose.msra.mxu0 0.0
  %911 = vmatprep.subr.mxu0 0.0
  %912 = vmatpush1.xpose.msra.mxu0 0.0
  %913 = vmatprep.subr.mxu0 0.0
  %914 = vmatpush1.xpose.msra.mxu0 0.0
  %915 = vmatprep.subr.mxu0 0.0
  %916 = vmatpush1.xpose.msra.mxu0 0.0
  %917 = vmatprep.subr.mxu0 0.0
  %918 = vmatpush1.xpose.msra.mxu0 0.0
  %919 = vmatprep.subr.mxu0 0.0
  %920 = vmatpush1.xpose.msra.mxu0 0.0
  %921 = vmatprep.subr.mxu0 0.0
  %922 = vmatpush1.xpose.msra.mxu0 0.0
  %923 = vmatprep.subr.mxu0 0.0
  %924 = vmatpush1.xpose.msra.mxu0 0.0
  %925 = vmatprep.subr.mxu0 0.0
  %926 = vmatpush1.xpose.msra.mxu0 0.0
  %927 = vmatprep.subr.mxu0 0.0
  %928 = vmatpush1.xpose.msra.mxu0 0.0
  %929 = vmatprep.subr.mxu0 0.0
  %930 = vmatpush1.xpose.msra.mxu0 0.0
  %931 = vmatprep.subr.mxu0 0.0
  %932 = vmatpush1.xpose.msra.mxu0 0.0
  %933 = vmatprep.subr.mxu0 0.0
  %934 = vmatpush1.xpose.msra.mxu0 0.0
  %935 = vmatprep.subr.mxu0 0.0
  %936 = vmatpush1.xpose.msra.mxu0 0.0
  %937 = vmatprep.subr.mxu0 0.0
  %938 = vmatpush1.xpose.msra.mxu0 0.0
  %939 = vmatprep.subr.mxu0 0.0
  %940 = vmatpush1.xpose.msra.mxu0 0.0
  %941 = vmatprep.subr.mxu0 0.0
  %942 = vmatpush1.xpose.msra.mxu0 0.0
  %943 = vmatprep.subr.mxu0 0.0
  %944 = vmatpush1.xpose.msra.mxu0 0.0
  %945 = vmatprep.subr.mxu0 0.0
  %946 = vmatpush1.xpose.msra.mxu0 0.0
  %947 = vmatprep.subr.mxu0 0.0
  %948 = vmatpush1.xpose.msra.mxu0 0.0
  %949 = vmatprep.subr.mxu0 0.0
  %950 = vmatpush1.xpose.msra.mxu0 0.0
  %951 = vmatprep.subr.mxu0 0.0
  %952 = vmatpush1.xpose.msra.mxu0 0.0
  %953 = vmatprep.subr.mxu0 0.0
  %954 = vmatpush1.xpose.msra.mxu0 0.0
  %955 = vmatprep.mubr.f32.mxu0 0.0
  %v956 = vand.u32 %v675, 4294901760
  %v957 = vsub.f32 %v675, %v956
  %958 = vmatmul.mubr.f32.gmra.mrb[0].mxu0 %v957
  %v959 = vpop.f32.mrb[0].mxu0
  %v960 = vadd.f32 %v868, %v959
  %v961 = vpop.f32.mrb[0].mxu0
  %962 = vmatprep.mubr.f32.mxu0 0.0
  %v963 = vand.u32 %v678, 4294901760
  %v964 = vsub.f32 %v678, %v963
  %965 = vmatmul.mubr.f32.gmra.mrb[0].mxu0 %v964
  %v966 = vpop.f32.mrb[0].mxu0
  %v967 = vadd.f32 %v874, %v966
  %v968 = vpop.f32.mrb[0].mxu0
  %969 = vmatprep.mubr.f32.mxu0 0.0
  %v970 = vand.u32 %v681, 4294901760
  %v971 = vsub.f32 %v681, %v970
  %972 = vmatmul.mubr.f32.gmra.mrb[0].mxu0 %v971
  %v973 = vpop.f32.mrb[0].mxu0
  %v974 = vadd.f32 %v880, %v973
  %v975 = vpop.f32.mrb[0].mxu0
  %976 = vmatprep.mubr.f32.mxu0 0.0
  %v977 = vand.u32 %v684, 4294901760
  %v978 = vsub.f32 %v684, %v977
  %979 = vmatmul.mubr.f32.gmra.mrb[0].mxu0 %v978
  %v980 = vpop.f32.mrb[0].mxu0
  %v981 = vadd.f32 %v886, %v980
  %v982 = vpop.f32.mrb[0].mxu0
  %983 = vdwg.mxu0
  %984 = vmatprep.subr.mxu0 0.0
  %v985 = vand.u32 %v687, 4294901760
  %986 = vmatpush1.xpose.msra.mxu0 %v985
  %987 = vmatprep.subr.mxu0 0.0
  %988 = vmatpush1.xpose.msra.mxu0 0.0
  %989 = vmatprep.subr.mxu0 0.0
  %990 = vmatpush1.xpose.msra.mxu0 0.0
  %991 = vmatprep.subr.mxu0 0.0
  %992 = vmatpush1.xpose.msra.mxu0 0.0
  %993 = vmatprep.subr.mxu0 0.0
  %994 = vmatpush1.xpose.msra.mxu0 0.0
  %995 = vmatprep.subr.mxu0 0.0
  %996 = vmatpush1.xpose.msra.mxu0 0.0
  %997 = vmatprep.subr.mxu0 0.0
  %998 = vmatpush1.xpose.msra.mxu0 0.0
  %999 = vmatprep.subr.mxu0 0.0
  %1000 = vmatpush1.xpose.msra.mxu0 0.0
  %1001 = vmatprep.subr.mxu0 0.0
  %1002 = vmatpush1.xpose.msra.mxu0 0.0
  %1003 = vmatprep.subr.mxu0 0.0
  %1004 = vmatpush1.xpose.msra.mxu0 0.0
  %1005 = vmatprep.subr.mxu0 0.0
  %1006 = vmatpush1.xpose.msra.mxu0 0.0
  %1007 = vmatprep.subr.mxu0 0.0
  %1008 = vmatpush1.xpose.msra.mxu0 0.0
  %1009 = vmatprep.subr.mxu0 0.0
  %1010 = vmatpush1.xpose.msra.mxu0 0.0
  %1011 = vmatprep.subr.mxu0 0.0
  %1012 = vmatpush1.xpose.msra.mxu0 0.0
  %1013 = vmatprep.subr.mxu0 0.0
  %1014 = vmatpush1.xpose.msra.mxu0 0.0
  %1015 = vmatprep.subr.mxu0 0.0
  %1016 = vmatpush1.xpose.msra.mxu0 0.0
  %1017 = vmatprep.subr.mxu0 0.0
  %1018 = vmatpush1.xpose.msra.mxu0 0.0
  %1019 = vmatprep.subr.mxu0 0.0
  %1020 = vmatpush1.xpose.msra.mxu0 0.0
  %1021 = vmatprep.subr.mxu0 0.0
  %1022 = vmatpush1.xpose.msra.mxu0 0.0
  %1023 = vmatprep.subr.mxu0 0.0
  %1024 = vmatpush1.xpose.msra.mxu0 0.0
  %1025 = vmatprep.subr.mxu0 0.0
  %1026 = vmatpush1.xpose.msra.mxu0 0.0
  %1027 = vmatprep.subr.mxu0 0.0
  %1028 = vmatpush1.xpose.msra.mxu0 0.0
  %1029 = vmatprep.subr.mxu0 0.0
  %1030 = vmatpush1.xpose.msra.mxu0 0.0
  %1031 = vmatprep.subr.mxu0 0.0
  %1032 = vmatpush1.xpose.msra.mxu0 0.0
  %1033 = vmatprep.subr.mxu0 0.0
  %1034 = vmatpush1.xpose.msra.mxu0 0.0
  %1035 = vmatprep.subr.mxu0 0.0
  %1036 = vmatpush1.xpose.msra.mxu0 0.0
  %1037 = vmatprep.subr.mxu0 0.0
  %1038 = vmatpush1.xpose.msra.mxu0 0.0
  %1039 = vmatprep.subr.mxu0 0.0
  %1040 = vmatpush1.xpose.msra.mxu0 0.0
  %1041 = vmatprep.subr.mxu0 0.0
  %1042 = vmatpush1.xpose.msra.mxu0 0.0
  %1043 = vmatprep.subr.mxu0 0.0
  %1044 = vmatpush1.xpose.msra.mxu0 0.0
  %1045 = vmatprep.subr.mxu0 0.0
  %1046 = vmatpush1.xpose.msra.mxu0 0.0
  %1047 = vmatprep.subr.mxu0 0.0
  %1048 = vmatpush1.xpose.msra.mxu0 0.0
  %1049 = vmatprep.mubr.f32.mxu0 0.0
  %v1050 = vand.u32 %v675, 4294901760
  %v1051 = vsub.f32 %v675, %v1050
  %v1052 = vand.u32 %v1051, 4294901760
  %1053 = vmatmul.mubr.f32.gmra.mrb[0].mxu0 %v1052
  %v1054 = vpop.f32.mrb[0].mxu0
  %v1055 = vadd.f32 %v960, %v1054
  %v1056 = vpop.f32.mrb[0].mxu0
  %1057 = vmatprep.mubr.f32.mxu0 0.0
  %v1058 = vand.u32 %v678, 4294901760
  %v1059 = vsub.f32 %v678, %v1058
  %v1060 = vand.u32 %v1059, 4294901760
  %1061 = vmatmul.mubr.f32.gmra.mrb[0].mxu0 %v1060
  %v1062 = vpop.f32.mrb[0].mxu0
  %v1063 = vadd.f32 %v967, %v1062
  %v1064 = vpop.f32.mrb[0].mxu0
  %1065 = vmatprep.mubr.f32.mxu0 0.0
  %v1066 = vand.u32 %v681, 4294901760
  %v1067 = vsub.f32 %v681, %v1066
  %v1068 = vand.u32 %v1067, 4294901760
  %1069 = vmatmul.mubr.f32.gmra.mrb[0].mxu0 %v1068
  %v1070 = vpop.f32.mrb[0].mxu0
  %v1071 = vadd.f32 %v974, %v1070
  %v1072 = vpop.f32.mrb[0].mxu0
  %1073 = vmatprep.mubr.f32.mxu0 0.0
  %v1074 = vand.u32 %v684, 4294901760
  %v1075 = vsub.f32 %v684, %v1074
  %v1076 = vand.u32 %v1075, 4294901760
  %1077 = vmatmul.mubr.f32.gmra.mrb[0].mxu0 %v1076
  %v1078 = vpop.f32.mrb[0].mxu0
  %v1079 = vadd.f32 %v981, %v1078
  %v1080 = vpop.f32.mrb[0].mxu0
  %1081 = vdwg.mxu0
  %1082 = vmatprep.subr.mxu0 0.0
  %v1083 = vand.u32 %v687, 4294901760
  %v1084 = vsub.f32 %v687, %v1083
  %v1085 = vand.u32 %v1084, 4294901760
  %1086 = vmatpush1.xpose.msra.mxu0 %v1085
  %1087 = vmatprep.subr.mxu0 0.0
  %1088 = vmatpush1.xpose.msra.mxu0 0.0
  %1089 = vmatprep.subr.mxu0 0.0
  %1090 = vmatpush1.xpose.msra.mxu0 0.0
  %1091 = vmatprep.subr.mxu0 0.0
  %1092 = vmatpush1.xpose.msra.mxu0 0.0
  %1093 = vmatprep.subr.mxu0 0.0
  %1094 = vmatpush1.xpose.msra.mxu0 0.0
  %1095 = vmatprep.subr.mxu0 0.0
  %1096 = vmatpush1.xpose.msra.mxu0 0.0
  %1097 = vmatprep.subr.mxu0 0.0
  %1098 = vmatpush1.xpose.msra.mxu0 0.0
  %1099 = vmatprep.subr.mxu0 0.0
  %1100 = vmatpush1.xpose.msra.mxu0 0.0
  %1101 = vmatprep.subr.mxu0 0.0
  %1102 = vmatpush1.xpose.msra.mxu0 0.0
  %1103 = vmatprep.subr.mxu0 0.0
  %1104 = vmatpush1.xpose.msra.mxu0 0.0
  %1105 = vmatprep.subr.mxu0 0.0
  %1106 = vmatpush1.xpose.msra.mxu0 0.0
  %1107 = vmatprep.subr.mxu0 0.0
  %1108 = vmatpush1.xpose.msra.mxu0 0.0
  %1109 = vmatprep.subr.mxu0 0.0
  %1110 = vmatpush1.xpose.msra.mxu0 0.0
  %1111 = vmatprep.subr.mxu0 0.0
  %1112 = vmatpush1.xpose.msra.mxu0 0.0
  %1113 = vmatprep.subr.mxu0 0.0
  %1114 = vmatpush1.xpose.msra.mxu0 0.0
  %1115 = vmatprep.subr.mxu0 0.0
  %1116 = vmatpush1.xpose.msra.mxu0 0.0
  %1117 = vmatprep.subr.mxu0 0.0
  %1118 = vmatpush1.xpose.msra.mxu0 0.0
  %1119 = vmatprep.subr.mxu0 0.0
  %1120 = vmatpush1.xpose.msra.mxu0 0.0
  %1121 = vmatprep.subr.mxu0 0.0
  %1122 = vmatpush1.xpose.msra.mxu0 0.0
  %1123 = vmatprep.subr.mxu0 0.0
  %1124 = vmatpush1.xpose.msra.mxu0 0.0
  %1125 = vmatprep.subr.mxu0 0.0
  %1126 = vmatpush1.xpose.msra.mxu0 0.0
  %1127 = vmatprep.subr.mxu0 0.0
  %1128 = vmatpush1.xpose.msra.mxu0 0.0
  %1129 = vmatprep.subr.mxu0 0.0
  %1130 = vmatpush1.xpose.msra.mxu0 0.0
  %1131 = vmatprep.subr.mxu0 0.0
  %1132 = vmatpush1.xpose.msra.mxu0 0.0
  %1133 = vmatprep.subr.mxu0 0.0
  %1134 = vmatpush1.xpose.msra.mxu0 0.0
  %1135 = vmatprep.subr.mxu0 0.0
  %1136 = vmatpush1.xpose.msra.mxu0 0.0
  %1137 = vmatprep.subr.mxu0 0.0
  %1138 = vmatpush1.xpose.msra.mxu0 0.0
  %1139 = vmatprep.subr.mxu0 0.0
  %1140 = vmatpush1.xpose.msra.mxu0 0.0
  %1141 = vmatprep.subr.mxu0 0.0
  %1142 = vmatpush1.xpose.msra.mxu0 0.0
  %1143 = vmatprep.subr.mxu0 0.0
  %1144 = vmatpush1.xpose.msra.mxu0 0.0
  %1145 = vmatprep.subr.mxu0 0.0
  %1146 = vmatpush1.xpose.msra.mxu0 0.0
  %1147 = vmatprep.subr.mxu0 0.0
  %1148 = vmatpush1.xpose.msra.mxu0 0.0
  %1149 = vmatprep.mubr.f32.mxu0 0.0
  %v1150 = vand.u32 %v675, 4294901760
  %1151 = vmatmul.mubr.f32.gmra.mrb[0].mxu0 %v1150
  %v1152 = vpop.f32.mrb[0].mxu0
  %v1153 = vadd.f32 %v1055, %v1152
  %v1154 = vpop.f32.mrb[0].mxu0
  %1155 = vmatprep.mubr.f32.mxu0 0.0
  %v1156 = vand.u32 %v678, 4294901760
  %1157 = vmatmul.mubr.f32.gmra.mrb[0].mxu0 %v1156
  %v1158 = vpop.f32.mrb[0].mxu0
  %v1159 = vadd.f32 %v1063, %v1158
  %v1160 = vpop.f32.mrb[0].mxu0
  %1161 = vmatprep.mubr.f32.mxu0 0.0
  %v1162 = vand.u32 %v681, 4294901760
  %1163 = vmatmul.mubr.f32.gmra.mrb[0].mxu0 %v1162
  %v1164 = vpop.f32.mrb[0].mxu0
  %v1165 = vadd.f32 %v1071, %v1164
  %v1166 = vpop.f32.mrb[0].mxu0
  %1167 = vmatprep.mubr.f32.mxu0 0.0
  %v1168 = vand.u32 %v684, 4294901760
  %1169 = vmatmul.mubr.f32.gmra.mrb[0].mxu0 %v1168
  %v1170 = vpop.f32.mrb[0].mxu0
  %v1171 = vadd.f32 %v1079, %v1170
  %v1172 = vpop.f32.mrb[0].mxu0
  %1173 = vdwg.mxu0
  %1174 = vmatprep.subr.mxu0 0.0
  %v1175 = vand.u32 %v687, 4294901760
  %1176 = vmatpush1.xpose.msra.mxu0 %v1175
  %1177 = vmatprep.subr.mxu0 0.0
  %1178 = vmatpush1.xpose.msra.mxu0 0.0
  %1179 = vmatprep.subr.mxu0 0.0
  %1180 = vmatpush1.xpose.msra.mxu0 0.0
  %1181 = vmatprep.subr.mxu0 0.0
  %1182 = vmatpush1.xpose.msra.mxu0 0.0
  %1183 = vmatprep.subr.mxu0 0.0
  %1184 = vmatpush1.xpose.msra.mxu0 0.0
  %1185 = vmatprep.subr.mxu0 0.0
  %1186 = vmatpush1.xpose.msra.mxu0 0.0
  %1187 = vmatprep.subr.mxu0 0.0
  %1188 = vmatpush1.xpose.msra.mxu0 0.0
  %1189 = vmatprep.subr.mxu0 0.0
  %1190 = vmatpush1.xpose.msra.mxu0 0.0
  %1191 = vmatprep.subr.mxu0 0.0
  %1192 = vmatpush1.xpose.msra.mxu0 0.0
  %1193 = vmatprep.subr.mxu0 0.0
  %1194 = vmatpush1.xpose.msra.mxu0 0.0
  %1195 = vmatprep.subr.mxu0 0.0
  %1196 = vmatpush1.xpose.msra.mxu0 0.0
  %1197 = vmatprep.subr.mxu0 0.0
  %1198 = vmatpush1.xpose.msra.mxu0 0.0
  %1199 = vmatprep.subr.mxu0 0.0
  %1200 = vmatpush1.xpose.msra.mxu0 0.0
  %1201 = vmatprep.subr.mxu0 0.0
  %1202 = vmatpush1.xpose.msra.mxu0 0.0
  %1203 = vmatprep.subr.mxu0 0.0
  %1204 = vmatpush1.xpose.msra.mxu0 0.0
  %1205 = vmatprep.subr.mxu0 0.0
  %1206 = vmatpush1.xpose.msra.mxu0 0.0
  %1207 = vmatprep.subr.mxu0 0.0
  %1208 = vmatpush1.xpose.msra.mxu0 0.0
  %1209 = vmatprep.subr.mxu0 0.0
  %1210 = vmatpush1.xpose.msra.mxu0 0.0
  %1211 = vmatprep.subr.mxu0 0.0
  %1212 = vmatpush1.xpose.msra.mxu0 0.0
  %1213 = vmatprep.subr.mxu0 0.0
  %1214 = vmatpush1.xpose.msra.mxu0 0.0
  %1215 = vmatprep.subr.mxu0 0.0
  %1216 = vmatpush1.xpose.msra.mxu0 0.0
  %1217 = vmatprep.subr.mxu0 0.0
  %1218 = vmatpush1.xpose.msra.mxu0 0.0
  %1219 = vmatprep.subr.mxu0 0.0
  %1220 = vmatpush1.xpose.msra.mxu0 0.0
  %1221 = vmatprep.subr.mxu0 0.0
  %1222 = vmatpush1.xpose.msra.mxu0 0.0
  %1223 = vmatprep.subr.mxu0 0.0
  %1224 = vmatpush1.xpose.msra.mxu0 0.0
  %1225 = vmatprep.subr.mxu0 0.0
  %1226 = vmatpush1.xpose.msra.mxu0 0.0
  %1227 = vmatprep.subr.mxu0 0.0
  %1228 = vmatpush1.xpose.msra.mxu0 0.0
  %1229 = vmatprep.subr.mxu0 0.0
  %1230 = vmatpush1.xpose.msra.mxu0 0.0
  %1231 = vmatprep.subr.mxu0 0.0
  %1232 = vmatpush1.xpose.msra.mxu0 0.0
  %1233 = vmatprep.subr.mxu0 0.0
  %1234 = vmatpush1.xpose.msra.mxu0 0.0
  %1235 = vmatprep.subr.mxu0 0.0
  %1236 = vmatpush1.xpose.msra.mxu0 0.0
  %1237 = vmatprep.subr.mxu0 0.0
  %1238 = vmatpush1.xpose.msra.mxu0 0.0
  %1239 = vmatprep.mubr.f32.mxu0 0.0
  %v1240 = vand.u32 %v675, 4294901760
  %1241 = vmatmul.mubr.f32.gmra.mrb[0].mxu0 %v1240
  %v1242 = vpop.f32.mrb[0].mxu0
  %v1243 = vadd.f32 %v1153, %v1242
  %v1244 = vpop.f32.mrb[0].mxu0
  %1245 = vmatprep.mubr.f32.mxu0 0.0
  %v1246 = vand.u32 %v678, 4294901760
  %1247 = vmatmul.mubr.f32.gmra.mrb[0].mxu0 %v1246
  %v1248 = vpop.f32.mrb[0].mxu0
  %v1249 = vadd.f32 %v1159, %v1248
  %v1250 = vpop.f32.mrb[0].mxu0
  %1251 = vmatprep.mubr.f32.mxu0 0.0
  %v1252 = vand.u32 %v681, 4294901760
  %1253 = vmatmul.mubr.f32.gmra.mrb[0].mxu0 %v1252
  %v1254 = vpop.f32.mrb[0].mxu0
  %v1255 = vadd.f32 %v1165, %v1254
  %v1256 = vpop.f32.mrb[0].mxu0
  %1257 = vmatprep.mubr.f32.mxu0 0.0
  %v1258 = vand.u32 %v684, 4294901760
  %1259 = vmatmul.mubr.f32.gmra.mrb[0].mxu0 %v1258
  %v1260 = vpop.f32.mrb[0].mxu0
  %v1261 = vadd.f32 %v1171, %v1260
  %v1262 = vpop.f32.mrb[0].mxu0
  %1263 = vdwg.mxu0
  %v1264 = vld [vmem:[%s1] sm:$0xff]
  %v1265 = vld [vmem:[%s1 + $0x8] sm:$0xff]
  %v1266 = vld [vmem:[%s1 + $0x10] sm:$0xff]
  %v1267 = vld [vmem:[%s1 + $0x18] sm:$0xff]
  %v1268 = vadd.f32 %v1264, %v1243
  %v1269 = vadd.f32 %v1265, %v1249
  %v1270 = vadd.f32 %v1266, %v1255
  %v1271 = vadd.f32 %v1267, %v1261
  %v1272 = vld [vmem:[%s2] sm:$0xff]
  %v1273 = vld [vmem:[%s2 + $0x8] sm:$0xff]
  %v1274 = vld [vmem:[%s2 + $0x10] sm:$0xff]
  %v1275 = vld [vmem:[%s2 + $0x18] sm:$0xff]
  %1280 = vrot.lane.b32.xlu0 %v1268, 32
  %v1281 = vpop.permute.xlu0 %1280
  %1282 = vrot.lane.b32.xlu0 %v1269, 32
  %v1283 = vpop.permute.xlu0 %1282
  %1284 = vrot.lane.b32.xlu0 %v1270, 32
  %v1285 = vpop.permute.xlu0 %1284
  %1286 = vrot.lane.b32.xlu0 %v1271, 32
  %v1287 = vpop.permute.xlu0 %1286
  %vm1292 = vcmask 261120
  %v1293 = vsel %vm1292, %v1272, %v1281
  %v1294 = vsel %vm1292, %v1273, %v1283
  %v1295 = vsel %vm1292, %v1274, %v1285
  %v1296 = vsel %vm1292, %v1275, %v1287
  %1297 = vxpose.xlu0.b32.start [1/16] %v1293, 128
  %1298 = vxpose.xlu0.b32.cont [2/16] %v1294, 128
  %1299 = vxpose.xlu0.b32.cont [3/16] %v1295, 128
  %1300 = vxpose.xlu0.b32.cont [4/16] %v1296, 128
  %1301 = vxpose.xlu0.b32.cont [5/16] 0.0, 128
  %1302 = vxpose.xlu0.b32.cont [6/16] 0.0, 128
  %1303 = vxpose.xlu0.b32.cont [7/16] 0.0, 128
  %1304 = vxpose.xlu0.b32.cont [8/16] 0.0, 128
  %1305 = vxpose.xlu0.b32.cont [9/16] 0.0, 128
  %1306 = vxpose.xlu0.b32.cont [10/16] 0.0, 128
  %1307 = vxpose.xlu0.b32.cont [11/16] 0.0, 128
  %1308 = vxpose.xlu0.b32.cont [12/16] 0.0, 128
  %1309 = vxpose.xlu0.b32.cont [13/16] 0.0, 128
  %1310 = vxpose.xlu0.b32.cont [14/16] 0.0, 128
  %1311 = vxpose.xlu0.b32.cont [15/16] 0.0, 128
  %1312 = vxpose.xlu0.b32.end [16/16] 0.0, 128
  %v1313 = vpop.trf.xlu0
  %v1314 = vpop.trf.xlu0
  %v1315 = vpop.trf.xlu0
  %v1316 = vpop.trf.xlu0
  %v1317 = vpop.trf.xlu0
  %v1318 = vpop.trf.xlu0
  %v1319 = vpop.trf.xlu0
  %v1320 = vpop.trf.xlu0
  %v1321 = vpop.trf.xlu0
  %v1322 = vpop.trf.xlu0
  %v1323 = vpop.trf.xlu0
  %v1324 = vpop.trf.xlu0
  %v1325 = vpop.trf.xlu0
  %v1326 = vpop.trf.xlu0
  %v1327 = vpop.trf.xlu0
  %v1328 = vpop.trf.xlu0
  %v1329 = vld [vmem:[%s0] sm:$0xff]
  %v1330 = vld [vmem:[%s0 + $0x8] sm:$0xff]
  %v1331 = vld [vmem:[%s0 + $0x10] sm:$0xff]
  %v1332 = vld [vmem:[%s0 + $0x18] sm:$0xff]
  %s1333 = scalar_lea.vmem %s0, 32
  %v1334 = vld [vmem:[%s1333] sm:$0xff]
  %v1335 = vld [vmem:[%s1333 + $0x8] sm:$0xff]
  %v1336 = vld [vmem:[%s1333 + $0x10] sm:$0xff]
  %v1337 = vld [vmem:[%s1333 + $0x18] sm:$0xff]
  %1342 = vrot.lane.b32.xlu0 %v1334, 64
  %v1343 = vpop.permute.xlu0 %1342
  %1344 = vrot.lane.b32.xlu0 %v1335, 64
  %v1345 = vpop.permute.xlu0 %1344
  %1346 = vrot.lane.b32.xlu0 %v1336, 64
  %v1347 = vpop.permute.xlu0 %1346
  %1348 = vrot.lane.b32.xlu0 %v1337, 64
  %v1349 = vpop.permute.xlu0 %1348
  %vm1354 = vcmask 523264
  %v1355 = vsel %vm1354, %v1329, %v1343
  %v1356 = vsel %vm1354, %v1330, %v1345
  %v1357 = vsel %vm1354, %v1331, %v1347
  %v1358 = vsel %vm1354, %v1332, %v1349
  %v1360 = vsel %vm1292, %v1313, 0
  %v1363 = vsel %vm1292, %v1314, 0
  %v1366 = vsel %vm1292, %v1315, 0
  %v1369 = vsel %vm1292, %v1316, 0
  %v1372 = vsel %vm1292, %v1317, 0
  %1374 = vmatprep.subr.mxu0 0.0
  %v1375 = vand.u32 %v1355, 4294901760
  %1376 = vmatpush1.msra.mxu0 %v1375
  %1377 = vmatprep.subr.mxu0 0.0
  %v1378 = vand.u32 %v1356, 4294901760
  %1379 = vmatpush1.msra.mxu0 %v1378
  %1380 = vmatprep.subr.mxu0 0.0
  %v1381 = vand.u32 %v1357, 4294901760
  %1382 = vmatpush1.msra.mxu0 %v1381
  %1383 = vmatprep.subr.mxu0 0.0
  %v1384 = vand.u32 %v1358, 4294901760
  %1385 = vmatpush1.msra.mxu0 %v1384
  %1386 = vmatprep.subr.mxu0 0.0
  %1387 = vmatpush1.msra.mxu0 0.0
  %1388 = vmatprep.subr.mxu0 0.0
  %1389 = vmatpush1.msra.mxu0 0.0
  %1390 = vmatprep.subr.mxu0 0.0
  %1391 = vmatpush1.msra.mxu0 0.0
  %1392 = vmatprep.subr.mxu0 0.0
  %1393 = vmatpush1.msra.mxu0 0.0
  %1394 = vmatprep.subr.mxu0 0.0
  %1395 = vmatpush1.msra.mxu0 0.0
  %1396 = vmatprep.subr.mxu0 0.0
  %1397 = vmatpush1.msra.mxu0 0.0
  %1398 = vmatprep.subr.mxu0 0.0
  %1399 = vmatpush1.msra.mxu0 0.0
  %1400 = vmatprep.subr.mxu0 0.0
  %1401 = vmatpush1.msra.mxu0 0.0
  %1402 = vmatprep.subr.mxu0 0.0
  %1403 = vmatpush1.msra.mxu0 0.0
  %1404 = vmatprep.subr.mxu0 0.0
  %1405 = vmatpush1.msra.mxu0 0.0
  %1406 = vmatprep.subr.mxu0 0.0
  %1407 = vmatpush1.msra.mxu0 0.0
  %1408 = vmatprep.subr.mxu0 0.0
  %1409 = vmatpush1.msra.mxu0 0.0
  %1410 = vmatprep.subr.mxu0 0.0
  %1411 = vmatpush1.msra.mxu0 0.0
  %1412 = vmatprep.subr.mxu0 0.0
  %1413 = vmatpush1.msra.mxu0 0.0
  %1414 = vmatprep.subr.mxu0 0.0
  %1415 = vmatpush1.msra.mxu0 0.0
  %1416 = vmatprep.subr.mxu0 0.0
  %1417 = vmatpush1.msra.mxu0 0.0
  %1418 = vmatprep.subr.mxu0 0.0
  %1419 = vmatpush1.msra.mxu0 0.0
  %1420 = vmatprep.subr.mxu0 0.0
  %1421 = vmatpush1.msra.mxu0 0.0
  %1422 = vmatprep.subr.mxu0 0.0
  %1423 = vmatpush1.msra.mxu0 0.0
  %1424 = vmatprep.subr.mxu0 0.0
  %1425 = vmatpush1.msra.mxu0 0.0
  %1426 = vmatprep.subr.mxu0 0.0
  %1427 = vmatpush1.msra.mxu0 0.0
  %1428 = vmatprep.subr.mxu0 0.0
  %1429 = vmatpush1.msra.mxu0 0.0
  %1430 = vmatprep.subr.mxu0 0.0
  %1431 = vmatpush1.msra.mxu0 0.0
  %1432 = vmatprep.subr.mxu0 0.0
  %1433 = vmatpush1.msra.mxu0 0.0
  %1434 = vmatprep.subr.mxu0 0.0
  %1435 = vmatpush1.msra.mxu0 0.0
  %1436 = vmatprep.subr.mxu0 0.0
  %1437 = vmatpush1.msra.mxu0 0.0
  %1438 = vmatprep.subr.mxu0 0.0
  %1439 = vmatpush1.msra.mxu0 0.0
  %1440 = vmatprep.subr.mxu0 0.0
  %1441 = vmatpush1.msra.mxu0 0.0
  %1442 = vmatprep.mubr.f32.mxu0 0.0
  %v1443 = vand.u32 %v1360, 4294901760
  %v1444 = vsub.f32 %v1360, %v1443
  %v1445 = vand.u32 %v1444, 4294901760
  %v1446 = vsub.f32 %v1444, %v1445
  %v1447 = vand.u32 %v1446, 4294901760
  %1448 = vmatmul.mubr.f32.gmra.mrb[0].mxu0 %v1447
  %v1449 = vpop.f32.mrb[0].mxu0
  %v1450 = vadd.f32 0.0, %v1449
  %v1451 = vpop.f32.mrb[0].mxu0
  %1452 = vmatprep.mubr.f32.mxu0 0.0
  %v1453 = vand.u32 %v1363, 4294901760
  %v1454 = vsub.f32 %v1363, %v1453
  %v1455 = vand.u32 %v1454, 4294901760
  %v1456 = vsub.f32 %v1454, %v1455
  %v1457 = vand.u32 %v1456, 4294901760
  %1458 = vmatmul.mubr.f32.gmra.mrb[0].mxu0 %v1457
  %v1459 = vpop.f32.mrb[0].mxu0
  %v1460 = vadd.f32 0.0, %v1459
  %v1461 = vpop.f32.mrb[0].mxu0
  %1462 = vmatprep.mubr.f32.mxu0 0.0
  %v1463 = vand.u32 %v1366, 4294901760
  %v1464 = vsub.f32 %v1366, %v1463
  %v1465 = vand.u32 %v1464, 4294901760
  %v1466 = vsub.f32 %v1464, %v1465
  %v1467 = vand.u32 %v1466, 4294901760
  %1468 = vmatmul.mubr.f32.gmra.mrb[0].mxu0 %v1467
  %v1469 = vpop.f32.mrb[0].mxu0
  %v1470 = vadd.f32 0.0, %v1469
  %v1471 = vpop.f32.mrb[0].mxu0
  %1472 = vmatprep.mubr.f32.mxu0 0.0
  %v1473 = vand.u32 %v1369, 4294901760
  %v1474 = vsub.f32 %v1369, %v1473
  %v1475 = vand.u32 %v1474, 4294901760
  %v1476 = vsub.f32 %v1474, %v1475
  %v1477 = vand.u32 %v1476, 4294901760
  %1478 = vmatmul.mubr.f32.gmra.mrb[0].mxu0 %v1477
  %v1479 = vpop.f32.mrb[0].mxu0
  %v1480 = vadd.f32 0.0, %v1479
  %v1481 = vpop.f32.mrb[0].mxu0
  %1482 = vmatprep.mubr.f32.mxu0 0.0
  %v1483 = vand.u32 %v1372, 4294901760
  %v1484 = vsub.f32 %v1372, %v1483
  %v1485 = vand.u32 %v1484, 4294901760
  %v1486 = vsub.f32 %v1484, %v1485
  %v1487 = vand.u32 %v1486, 4294901760
  %1488 = vmatmul.mubr.f32.gmra.mrb[0].mxu0 %v1487
  %v1489 = vpop.f32.mrb[0].mxu0
  %v1490 = vadd.f32 0.0, %v1489
  %v1491 = vpop.f32.mrb[0].mxu0
  %1492 = vdwg.mxu0
  %1493 = vmatprep.subr.mxu0 0.0
  %v1494 = vand.u32 %v1355, 4294901760
  %v1495 = vsub.f32 %v1355, %v1494
  %v1496 = vand.u32 %v1495, 4294901760
  %v1497 = vsub.f32 %v1495, %v1496
  %v1498 = vand.u32 %v1497, 4294901760
  %1499 = vmatpush1.msra.mxu0 %v1498
  %1500 = vmatprep.subr.mxu0 0.0
  %v1501 = vand.u32 %v1356, 4294901760
  %v1502 = vsub.f32 %v1356, %v1501
  %v1503 = vand.u32 %v1502, 4294901760
  %v1504 = vsub.f32 %v1502, %v1503
  %v1505 = vand.u32 %v1504, 4294901760
  %1506 = vmatpush1.msra.mxu0 %v1505
  %1507 = vmatprep.subr.mxu0 0.0
  %v1508 = vand.u32 %v1357, 4294901760
  %v1509 = vsub.f32 %v1357, %v1508
  %v1510 = vand.u32 %v1509, 4294901760
  %v1511 = vsub.f32 %v1509, %v1510
  %v1512 = vand.u32 %v1511, 4294901760
  %1513 = vmatpush1.msra.mxu0 %v1512
  %1514 = vmatprep.subr.mxu0 0.0
  %v1515 = vand.u32 %v1358, 4294901760
  %v1516 = vsub.f32 %v1358, %v1515
  %v1517 = vand.u32 %v1516, 4294901760
  %v1518 = vsub.f32 %v1516, %v1517
  %v1519 = vand.u32 %v1518, 4294901760
  %1520 = vmatpush1.msra.mxu0 %v1519
  %1521 = vmatprep.subr.mxu0 0.0
  %1522 = vmatpush1.msra.mxu0 0.0
  %1523 = vmatprep.subr.mxu0 0.0
  %1524 = vmatpush1.msra.mxu0 0.0
  %1525 = vmatprep.subr.mxu0 0.0
  %1526 = vmatpush1.msra.mxu0 0.0
  %1527 = vmatprep.subr.mxu0 0.0
  %1528 = vmatpush1.msra.mxu0 0.0
  %1529 = vmatprep.subr.mxu0 0.0
  %1530 = vmatpush1.msra.mxu0 0.0
  %1531 = vmatprep.subr.mxu0 0.0
  %1532 = vmatpush1.msra.mxu0 0.0
  %1533 = vmatprep.subr.mxu0 0.0
  %1534 = vmatpush1.msra.mxu0 0.0
  %1535 = vmatprep.subr.mxu0 0.0
  %1536 = vmatpush1.msra.mxu0 0.0
  %1537 = vmatprep.subr.mxu0 0.0
  %1538 = vmatpush1.msra.mxu0 0.0
  %1539 = vmatprep.subr.mxu0 0.0
  %1540 = vmatpush1.msra.mxu0 0.0
  %1541 = vmatprep.subr.mxu0 0.0
  %1542 = vmatpush1.msra.mxu0 0.0
  %1543 = vmatprep.subr.mxu0 0.0
  %1544 = vmatpush1.msra.mxu0 0.0
  %1545 = vmatprep.subr.mxu0 0.0
  %1546 = vmatpush1.msra.mxu0 0.0
  %1547 = vmatprep.subr.mxu0 0.0
  %1548 = vmatpush1.msra.mxu0 0.0
  %1549 = vmatprep.subr.mxu0 0.0
  %1550 = vmatpush1.msra.mxu0 0.0
  %1551 = vmatprep.subr.mxu0 0.0
  %1552 = vmatpush1.msra.mxu0 0.0
  %1553 = vmatprep.subr.mxu0 0.0
  %1554 = vmatpush1.msra.mxu0 0.0
  %1555 = vmatprep.subr.mxu0 0.0
  %1556 = vmatpush1.msra.mxu0 0.0
  %1557 = vmatprep.subr.mxu0 0.0
  %1558 = vmatpush1.msra.mxu0 0.0
  %1559 = vmatprep.subr.mxu0 0.0
  %1560 = vmatpush1.msra.mxu0 0.0
  %1561 = vmatprep.subr.mxu0 0.0
  %1562 = vmatpush1.msra.mxu0 0.0
  %1563 = vmatprep.subr.mxu0 0.0
  %1564 = vmatpush1.msra.mxu0 0.0
  %1565 = vmatprep.subr.mxu0 0.0
  %1566 = vmatpush1.msra.mxu0 0.0
  %1567 = vmatprep.subr.mxu0 0.0
  %1568 = vmatpush1.msra.mxu0 0.0
  %1569 = vmatprep.subr.mxu0 0.0
  %1570 = vmatpush1.msra.mxu0 0.0
  %1571 = vmatprep.subr.mxu0 0.0
  %1572 = vmatpush1.msra.mxu0 0.0
  %1573 = vmatprep.subr.mxu0 0.0
  %1574 = vmatpush1.msra.mxu0 0.0
  %1575 = vmatprep.subr.mxu0 0.0
  %1576 = vmatpush1.msra.mxu0 0.0
  %1577 = vmatprep.mubr.f32.mxu0 0.0
  %v1578 = vand.u32 %v1360, 4294901760
  %1579 = vmatmul.mubr.f32.gmra.mrb[0].mxu0 %v1578
  %v1580 = vpop.f32.mrb[0].mxu0
  %v1581 = vadd.f32 %v1450, %v1580
  %v1582 = vpop.f32.mrb[0].mxu0
  %1583 = vmatprep.mubr.f32.mxu0 0.0
  %v1584 = vand.u32 %v1363, 4294901760
  %1585 = vmatmul.mubr.f32.gmra.mrb[0].mxu0 %v1584
  %v1586 = vpop.f32.mrb[0].mxu0
  %v1587 = vadd.f32 %v1460, %v1586
  %v1588 = vpop.f32.mrb[0].mxu0
  %1589 = vmatprep.mubr.f32.mxu0 0.0
  %v1590 = vand.u32 %v1366, 4294901760
  %1591 = vmatmul.mubr.f32.gmra.mrb[0].mxu0 %v1590
  %v1592 = vpop.f32.mrb[0].mxu0
  %v1593 = vadd.f32 %v1470, %v1592
  %v1594 = vpop.f32.mrb[0].mxu0
  %1595 = vmatprep.mubr.f32.mxu0 0.0
  %v1596 = vand.u32 %v1369, 4294901760
  %1597 = vmatmul.mubr.f32.gmra.mrb[0].mxu0 %v1596
  %v1598 = vpop.f32.mrb[0].mxu0
  %v1599 = vadd.f32 %v1480, %v1598
  %v1600 = vpop.f32.mrb[0].mxu0
  %1601 = vmatprep.mubr.f32.mxu0 0.0
  %v1602 = vand.u32 %v1372, 4294901760
  %1603 = vmatmul.mubr.f32.gmra.mrb[0].mxu0 %v1602
  %v1604 = vpop.f32.mrb[0].mxu0
  %v1605 = vadd.f32 %v1490, %v1604
  %v1606 = vpop.f32.mrb[0].mxu0
  %1607 = vdwg.mxu0
  %1608 = vmatprep.subr.mxu0 0.0
  %v1609 = vand.u32 %v1355, 4294901760
  %v1610 = vsub.f32 %v1355, %v1609
  %1611 = vmatpush1.msra.mxu0 %v1610
  %1612 = vmatprep.subr.mxu0 0.0
  %v1613 = vand.u32 %v1356, 4294901760
  %v1614 = vsub.f32 %v1356, %v1613
  %1615 = vmatpush1.msra.mxu0 %v1614
  %1616 = vmatprep.subr.mxu0 0.0
  %v1617 = vand.u32 %v1357, 4294901760
  %v1618 = vsub.f32 %v1357, %v1617
  %1619 = vmatpush1.msra.mxu0 %v1618
  %1620 = vmatprep.subr.mxu0 0.0
  %v1621 = vand.u32 %v1358, 4294901760
  %v1622 = vsub.f32 %v1358, %v1621
  %1623 = vmatpush1.msra.mxu0 %v1622
  %1624 = vmatprep.subr.mxu0 0.0
  %1625 = vmatpush1.msra.mxu0 0.0
  %1626 = vmatprep.subr.mxu0 0.0
  %1627 = vmatpush1.msra.mxu0 0.0
  %1628 = vmatprep.subr.mxu0 0.0
  %1629 = vmatpush1.msra.mxu0 0.0
  %1630 = vmatprep.subr.mxu0 0.0
  %1631 = vmatpush1.msra.mxu0 0.0
  %1632 = vmatprep.subr.mxu0 0.0
  %1633 = vmatpush1.msra.mxu0 0.0
  %1634 = vmatprep.subr.mxu0 0.0
  %1635 = vmatpush1.msra.mxu0 0.0
  %1636 = vmatprep.subr.mxu0 0.0
  %1637 = vmatpush1.msra.mxu0 0.0
  %1638 = vmatprep.subr.mxu0 0.0
  %1639 = vmatpush1.msra.mxu0 0.0
  %1640 = vmatprep.subr.mxu0 0.0
  %1641 = vmatpush1.msra.mxu0 0.0
  %1642 = vmatprep.subr.mxu0 0.0
  %1643 = vmatpush1.msra.mxu0 0.0
  %1644 = vmatprep.subr.mxu0 0.0
  %1645 = vmatpush1.msra.mxu0 0.0
  %1646 = vmatprep.subr.mxu0 0.0
  %1647 = vmatpush1.msra.mxu0 0.0
  %1648 = vmatprep.subr.mxu0 0.0
  %1649 = vmatpush1.msra.mxu0 0.0
  %1650 = vmatprep.subr.mxu0 0.0
  %1651 = vmatpush1.msra.mxu0 0.0
  %1652 = vmatprep.subr.mxu0 0.0
  %1653 = vmatpush1.msra.mxu0 0.0
  %1654 = vmatprep.subr.mxu0 0.0
  %1655 = vmatpush1.msra.mxu0 0.0
  %1656 = vmatprep.subr.mxu0 0.0
  %1657 = vmatpush1.msra.mxu0 0.0
  %1658 = vmatprep.subr.mxu0 0.0
  %1659 = vmatpush1.msra.mxu0 0.0
  %1660 = vmatprep.subr.mxu0 0.0
  %1661 = vmatpush1.msra.mxu0 0.0
  %1662 = vmatprep.subr.mxu0 0.0
  %1663 = vmatpush1.msra.mxu0 0.0
  %1664 = vmatprep.subr.mxu0 0.0
  %1665 = vmatpush1.msra.mxu0 0.0
  %1666 = vmatprep.subr.mxu0 0.0
  %1667 = vmatpush1.msra.mxu0 0.0
  %1668 = vmatprep.subr.mxu0 0.0
  %1669 = vmatpush1.msra.mxu0 0.0
  %1670 = vmatprep.subr.mxu0 0.0
  %1671 = vmatpush1.msra.mxu0 0.0
  %1672 = vmatprep.subr.mxu0 0.0
  %1673 = vmatpush1.msra.mxu0 0.0
  %1674 = vmatprep.subr.mxu0 0.0
  %1675 = vmatpush1.msra.mxu0 0.0
  %1676 = vmatprep.subr.mxu0 0.0
  %1677 = vmatpush1.msra.mxu0 0.0
  %1678 = vmatprep.subr.mxu0 0.0
  %1679 = vmatpush1.msra.mxu0 0.0
  %1680 = vmatprep.mubr.f32.mxu0 0.0
  %v1681 = vand.u32 %v1360, 4294901760
  %v1682 = vsub.f32 %v1360, %v1681
  %1683 = vmatmul.mubr.f32.gmra.mrb[0].mxu0 %v1682
  %v1684 = vpop.f32.mrb[0].mxu0
  %v1685 = vadd.f32 %v1581, %v1684
  %v1686 = vpop.f32.mrb[0].mxu0
  %1687 = vmatprep.mubr.f32.mxu0 0.0
  %v1688 = vand.u32 %v1363, 4294901760
  %v1689 = vsub.f32 %v1363, %v1688
  %1690 = vmatmul.mubr.f32.gmra.mrb[0].mxu0 %v1689
  %v1691 = vpop.f32.mrb[0].mxu0
  %v1692 = vadd.f32 %v1587, %v1691
  %v1693 = vpop.f32.mrb[0].mxu0
  %1694 = vmatprep.mubr.f32.mxu0 0.0
  %v1695 = vand.u32 %v1366, 4294901760
  %v1696 = vsub.f32 %v1366, %v1695
  %1697 = vmatmul.mubr.f32.gmra.mrb[0].mxu0 %v1696
  %v1698 = vpop.f32.mrb[0].mxu0
  %v1699 = vadd.f32 %v1593, %v1698
  %v1700 = vpop.f32.mrb[0].mxu0
  %1701 = vmatprep.mubr.f32.mxu0 0.0
  %v1702 = vand.u32 %v1369, 4294901760
  %v1703 = vsub.f32 %v1369, %v1702
  %1704 = vmatmul.mubr.f32.gmra.mrb[0].mxu0 %v1703
  %v1705 = vpop.f32.mrb[0].mxu0
  %v1706 = vadd.f32 %v1599, %v1705
  %v1707 = vpop.f32.mrb[0].mxu0
  %1708 = vmatprep.mubr.f32.mxu0 0.0
  %v1709 = vand.u32 %v1372, 4294901760
  %v1710 = vsub.f32 %v1372, %v1709
  %1711 = vmatmul.mubr.f32.gmra.mrb[0].mxu0 %v1710
  %v1712 = vpop.f32.mrb[0].mxu0
  %v1713 = vadd.f32 %v1605, %v1712
  %v1714 = vpop.f32.mrb[0].mxu0
  %1715 = vdwg.mxu0
  %1716 = vmatprep.subr.mxu0 0.0
  %v1717 = vand.u32 %v1355, 4294901760
  %1718 = vmatpush1.msra.mxu0 %v1717
  %1719 = vmatprep.subr.mxu0 0.0
  %v1720 = vand.u32 %v1356, 4294901760
  %1721 = vmatpush1.msra.mxu0 %v1720
  %1722 = vmatprep.subr.mxu0 0.0
  %v1723 = vand.u32 %v1357, 4294901760
  %1724 = vmatpush1.msra.mxu0 %v1723
  %1725 = vmatprep.subr.mxu0 0.0
  %v1726 = vand.u32 %v1358, 4294901760
  %1727 = vmatpush1.msra.mxu0 %v1726
  %1728 = vmatprep.subr.mxu0 0.0
  %1729 = vmatpush1.msra.mxu0 0.0
  %1730 = vmatprep.subr.mxu0 0.0
  %1731 = vmatpush1.msra.mxu0 0.0
  %1732 = vmatprep.subr.mxu0 0.0
  %1733 = vmatpush1.msra.mxu0 0.0
  %1734 = vmatprep.subr.mxu0 0.0
  %1735 = vmatpush1.msra.mxu0 0.0
  %1736 = vmatprep.subr.mxu0 0.0
  %1737 = vmatpush1.msra.mxu0 0.0
  %1738 = vmatprep.subr.mxu0 0.0
  %1739 = vmatpush1.msra.mxu0 0.0
  %1740 = vmatprep.subr.mxu0 0.0
  %1741 = vmatpush1.msra.mxu0 0.0
  %1742 = vmatprep.subr.mxu0 0.0
  %1743 = vmatpush1.msra.mxu0 0.0
  %1744 = vmatprep.subr.mxu0 0.0
  %1745 = vmatpush1.msra.mxu0 0.0
  %1746 = vmatprep.subr.mxu0 0.0
  %1747 = vmatpush1.msra.mxu0 0.0
  %1748 = vmatprep.subr.mxu0 0.0
  %1749 = vmatpush1.msra.mxu0 0.0
  %1750 = vmatprep.subr.mxu0 0.0
  %1751 = vmatpush1.msra.mxu0 0.0
  %1752 = vmatprep.subr.mxu0 0.0
  %1753 = vmatpush1.msra.mxu0 0.0
  %1754 = vmatprep.subr.mxu0 0.0
  %1755 = vmatpush1.msra.mxu0 0.0
  %1756 = vmatprep.subr.mxu0 0.0
  %1757 = vmatpush1.msra.mxu0 0.0
  %1758 = vmatprep.subr.mxu0 0.0
  %1759 = vmatpush1.msra.mxu0 0.0
  %1760 = vmatprep.subr.mxu0 0.0
  %1761 = vmatpush1.msra.mxu0 0.0
  %1762 = vmatprep.subr.mxu0 0.0
  %1763 = vmatpush1.msra.mxu0 0.0
  %1764 = vmatprep.subr.mxu0 0.0
  %1765 = vmatpush1.msra.mxu0 0.0
  %1766 = vmatprep.subr.mxu0 0.0
  %1767 = vmatpush1.msra.mxu0 0.0
  %1768 = vmatprep.subr.mxu0 0.0
  %1769 = vmatpush1.msra.mxu0 0.0
  %1770 = vmatprep.subr.mxu0 0.0
  %1771 = vmatpush1.msra.mxu0 0.0
  %1772 = vmatprep.subr.mxu0 0.0
  %1773 = vmatpush1.msra.mxu0 0.0
  %1774 = vmatprep.subr.mxu0 0.0
  %1775 = vmatpush1.msra.mxu0 0.0
  %1776 = vmatprep.subr.mxu0 0.0
  %1777 = vmatpush1.msra.mxu0 0.0
  %1778 = vmatprep.subr.mxu0 0.0
  %1779 = vmatpush1.msra.mxu0 0.0
  %1780 = vmatprep.subr.mxu0 0.0
  %1781 = vmatpush1.msra.mxu0 0.0
  %1782 = vmatprep.subr.mxu0 0.0
  %1783 = vmatpush1.msra.mxu0 0.0
  %1784 = vmatprep.mubr.f32.mxu0 0.0
  %v1785 = vand.u32 %v1360, 4294901760
  %v1786 = vsub.f32 %v1360, %v1785
  %v1787 = vand.u32 %v1786, 4294901760
  %1788 = vmatmul.mubr.f32.gmra.mrb[0].mxu0 %v1787
  %v1789 = vpop.f32.mrb[0].mxu0
  %v1790 = vadd.f32 %v1685, %v1789
  %v1791 = vpop.f32.mrb[0].mxu0
  %1792 = vmatprep.mubr.f32.mxu0 0.0
  %v1793 = vand.u32 %v1363, 4294901760
  %v1794 = vsub.f32 %v1363, %v1793
  %v1795 = vand.u32 %v1794, 4294901760
  %1796 = vmatmul.mubr.f32.gmra.mrb[0].mxu0 %v1795
  %v1797 = vpop.f32.mrb[0].mxu0
  %v1798 = vadd.f32 %v1692, %v1797
  %v1799 = vpop.f32.mrb[0].mxu0
  %1800 = vmatprep.mubr.f32.mxu0 0.0
  %v1801 = vand.u32 %v1366, 4294901760
  %v1802 = vsub.f32 %v1366, %v1801
  %v1803 = vand.u32 %v1802, 4294901760
  %1804 = vmatmul.mubr.f32.gmra.mrb[0].mxu0 %v1803
  %v1805 = vpop.f32.mrb[0].mxu0
  %v1806 = vadd.f32 %v1699, %v1805
  %v1807 = vpop.f32.mrb[0].mxu0
  %1808 = vmatprep.mubr.f32.mxu0 0.0
  %v1809 = vand.u32 %v1369, 4294901760
  %v1810 = vsub.f32 %v1369, %v1809
  %v1811 = vand.u32 %v1810, 4294901760
  %1812 = vmatmul.mubr.f32.gmra.mrb[0].mxu0 %v1811
  %v1813 = vpop.f32.mrb[0].mxu0
  %v1814 = vadd.f32 %v1706, %v1813
  %v1815 = vpop.f32.mrb[0].mxu0
  %1816 = vmatprep.mubr.f32.mxu0 0.0
  %v1817 = vand.u32 %v1372, 4294901760
  %v1818 = vsub.f32 %v1372, %v1817
  %v1819 = vand.u32 %v1818, 4294901760
  %1820 = vmatmul.mubr.f32.gmra.mrb[0].mxu0 %v1819
  %v1821 = vpop.f32.mrb[0].mxu0
  %v1822 = vadd.f32 %v1713, %v1821
  %v1823 = vpop.f32.mrb[0].mxu0
  %1824 = vdwg.mxu0
  %1825 = vmatprep.subr.mxu0 0.0
  %v1826 = vand.u32 %v1355, 4294901760
  %v1827 = vsub.f32 %v1355, %v1826
  %v1828 = vand.u32 %v1827, 4294901760
  %1829 = vmatpush1.msra.mxu0 %v1828
  %1830 = vmatprep.subr.mxu0 0.0
  %v1831 = vand.u32 %v1356, 4294901760
  %v1832 = vsub.f32 %v1356, %v1831
  %v1833 = vand.u32 %v1832, 4294901760
  %1834 = vmatpush1.msra.mxu0 %v1833
  %1835 = vmatprep.subr.mxu0 0.0
  %v1836 = vand.u32 %v1357, 4294901760
  %v1837 = vsub.f32 %v1357, %v1836
  %v1838 = vand.u32 %v1837, 4294901760
  %1839 = vmatpush1.msra.mxu0 %v1838
  %1840 = vmatprep.subr.mxu0 0.0
  %v1841 = vand.u32 %v1358, 4294901760
  %v1842 = vsub.f32 %v1358, %v1841
  %v1843 = vand.u32 %v1842, 4294901760
  %1844 = vmatpush1.msra.mxu0 %v1843
  %1845 = vmatprep.subr.mxu0 0.0
  %1846 = vmatpush1.msra.mxu0 0.0
  %1847 = vmatprep.subr.mxu0 0.0
  %1848 = vmatpush1.msra.mxu0 0.0
  %1849 = vmatprep.subr.mxu0 0.0
  %1850 = vmatpush1.msra.mxu0 0.0
  %1851 = vmatprep.subr.mxu0 0.0
  %1852 = vmatpush1.msra.mxu0 0.0
  %1853 = vmatprep.subr.mxu0 0.0
  %1854 = vmatpush1.msra.mxu0 0.0
  %1855 = vmatprep.subr.mxu0 0.0
  %1856 = vmatpush1.msra.mxu0 0.0
  %1857 = vmatprep.subr.mxu0 0.0
  %1858 = vmatpush1.msra.mxu0 0.0
  %1859 = vmatprep.subr.mxu0 0.0
  %1860 = vmatpush1.msra.mxu0 0.0
  %1861 = vmatprep.subr.mxu0 0.0
  %1862 = vmatpush1.msra.mxu0 0.0
  %1863 = vmatprep.subr.mxu0 0.0
  %1864 = vmatpush1.msra.mxu0 0.0
  %1865 = vmatprep.subr.mxu0 0.0
  %1866 = vmatpush1.msra.mxu0 0.0
  %1867 = vmatprep.subr.mxu0 0.0
  %1868 = vmatpush1.msra.mxu0 0.0
  %1869 = vmatprep.subr.mxu0 0.0
  %1870 = vmatpush1.msra.mxu0 0.0
  %1871 = vmatprep.subr.mxu0 0.0
  %1872 = vmatpush1.msra.mxu0 0.0
  %1873 = vmatprep.subr.mxu0 0.0
  %1874 = vmatpush1.msra.mxu0 0.0
  %1875 = vmatprep.subr.mxu0 0.0
  %1876 = vmatpush1.msra.mxu0 0.0
  %1877 = vmatprep.subr.mxu0 0.0
  %1878 = vmatpush1.msra.mxu0 0.0
  %1879 = vmatprep.subr.mxu0 0.0
  %1880 = vmatpush1.msra.mxu0 0.0
  %1881 = vmatprep.subr.mxu0 0.0
  %1882 = vmatpush1.msra.mxu0 0.0
  %1883 = vmatprep.subr.mxu0 0.0
  %1884 = vmatpush1.msra.mxu0 0.0
  %1885 = vmatprep.subr.mxu0 0.0
  %1886 = vmatpush1.msra.mxu0 0.0
  %1887 = vmatprep.subr.mxu0 0.0
  %1888 = vmatpush1.msra.mxu0 0.0
  %1889 = vmatprep.subr.mxu0 0.0
  %1890 = vmatpush1.msra.mxu0 0.0
  %1891 = vmatprep.subr.mxu0 0.0
  %1892 = vmatpush1.msra.mxu0 0.0
  %1893 = vmatprep.subr.mxu0 0.0
  %1894 = vmatpush1.msra.mxu0 0.0
  %1895 = vmatprep.subr.mxu0 0.0
  %1896 = vmatpush1.msra.mxu0 0.0
  %1897 = vmatprep.subr.mxu0 0.0
  %1898 = vmatpush1.msra.mxu0 0.0
  %1899 = vmatprep.subr.mxu0 0.0
  %1900 = vmatpush1.msra.mxu0 0.0
  %1901 = vmatprep.mubr.f32.mxu0 0.0
  %v1902 = vand.u32 %v1360, 4294901760
  %1903 = vmatmul.mubr.f32.gmra.mrb[0].mxu0 %v1902
  %v1904 = vpop.f32.mrb[0].mxu0
  %v1905 = vadd.f32 %v1790, %v1904
  %v1906 = vpop.f32.mrb[0].mxu0
  %1907 = vmatprep.mubr.f32.mxu0 0.0
  %v1908 = vand.u32 %v1363, 4294901760
  %1909 = vmatmul.mubr.f32.gmra.mrb[0].mxu0 %v1908
  %v1910 = vpop.f32.mrb[0].mxu0
  %v1911 = vadd.f32 %v1798, %v1910
  %v1912 = vpop.f32.mrb[0].mxu0
  %1913 = vmatprep.mubr.f32.mxu0 0.0
  %v1914 = vand.u32 %v1366, 4294901760
  %1915 = vmatmul.mubr.f32.gmra.mrb[0].mxu0 %v1914
  %v1916 = vpop.f32.mrb[0].mxu0
  %v1917 = vadd.f32 %v1806, %v1916
  %v1918 = vpop.f32.mrb[0].mxu0
  %1919 = vmatprep.mubr.f32.mxu0 0.0
  %v1920 = vand.u32 %v1369, 4294901760
  %1921 = vmatmul.mubr.f32.gmra.mrb[0].mxu0 %v1920
  %v1922 = vpop.f32.mrb[0].mxu0
  %v1923 = vadd.f32 %v1814, %v1922
  %v1924 = vpop.f32.mrb[0].mxu0
  %1925 = vmatprep.mubr.f32.mxu0 0.0
  %v1926 = vand.u32 %v1372, 4294901760
  %1927 = vmatmul.mubr.f32.gmra.mrb[0].mxu0 %v1926
  %v1928 = vpop.f32.mrb[0].mxu0
  %v1929 = vadd.f32 %v1822, %v1928
  %v1930 = vpop.f32.mrb[0].mxu0
  %1931 = vdwg.mxu0
  %1932 = vmatprep.subr.mxu0 0.0
  %v1933 = vand.u32 %v1355, 4294901760
  %1934 = vmatpush1.msra.mxu0 %v1933
  %1935 = vmatprep.subr.mxu0 0.0
  %v1936 = vand.u32 %v1356, 4294901760
  %1937 = vmatpush1.msra.mxu0 %v1936
  %1938 = vmatprep.subr.mxu0 0.0
  %v1939 = vand.u32 %v1357, 4294901760
  %1940 = vmatpush1.msra.mxu0 %v1939
  %1941 = vmatprep.subr.mxu0 0.0
  %v1942 = vand.u32 %v1358, 4294901760
  %1943 = vmatpush1.msra.mxu0 %v1942
  %1944 = vmatprep.subr.mxu0 0.0
  %1945 = vmatpush1.msra.mxu0 0.0
  %1946 = vmatprep.subr.mxu0 0.0
  %1947 = vmatpush1.msra.mxu0 0.0
  %1948 = vmatprep.subr.mxu0 0.0
  %1949 = vmatpush1.msra.mxu0 0.0
  %1950 = vmatprep.subr.mxu0 0.0
  %1951 = vmatpush1.msra.mxu0 0.0
  %1952 = vmatprep.subr.mxu0 0.0
  %1953 = vmatpush1.msra.mxu0 0.0
  %1954 = vmatprep.subr.mxu0 0.0
  %1955 = vmatpush1.msra.mxu0 0.0
  %1956 = vmatprep.subr.mxu0 0.0
  %1957 = vmatpush1.msra.mxu0 0.0
  %1958 = vmatprep.subr.mxu0 0.0
  %1959 = vmatpush1.msra.mxu0 0.0
  %1960 = vmatprep.subr.mxu0 0.0
  %1961 = vmatpush1.msra.mxu0 0.0
  %1962 = vmatprep.subr.mxu0 0.0
  %1963 = vmatpush1.msra.mxu0 0.0
  %1964 = vmatprep.subr.mxu0 0.0
  %1965 = vmatpush1.msra.mxu0 0.0
  %1966 = vmatprep.subr.mxu0 0.0
  %1967 = vmatpush1.msra.mxu0 0.0
  %1968 = vmatprep.subr.mxu0 0.0
  %1969 = vmatpush1.msra.mxu0 0.0
  %1970 = vmatprep.subr.mxu0 0.0
  %1971 = vmatpush1.msra.mxu0 0.0
  %1972 = vmatprep.subr.mxu0 0.0
  %1973 = vmatpush1.msra.mxu0 0.0
  %1974 = vmatprep.subr.mxu0 0.0
  %1975 = vmatpush1.msra.mxu0 0.0
  %1976 = vmatprep.subr.mxu0 0.0
  %1977 = vmatpush1.msra.mxu0 0.0
  %1978 = vmatprep.subr.mxu0 0.0
  %1979 = vmatpush1.msra.mxu0 0.0
  %1980 = vmatprep.subr.mxu0 0.0
  %1981 = vmatpush1.msra.mxu0 0.0
  %1982 = vmatprep.subr.mxu0 0.0
  %1983 = vmatpush1.msra.mxu0 0.0
  %1984 = vmatprep.subr.mxu0 0.0
  %1985 = vmatpush1.msra.mxu0 0.0
  %1986 = vmatprep.subr.mxu0 0.0
  %1987 = vmatpush1.msra.mxu0 0.0
  %1988 = vmatprep.subr.mxu0 0.0
  %1989 = vmatpush1.msra.mxu0 0.0
  %1990 = vmatprep.subr.mxu0 0.0
  %1991 = vmatpush1.msra.mxu0 0.0
  %1992 = vmatprep.subr.mxu0 0.0
  %1993 = vmatpush1.msra.mxu0 0.0
  %1994 = vmatprep.subr.mxu0 0.0
  %1995 = vmatpush1.msra.mxu0 0.0
  %1996 = vmatprep.subr.mxu0 0.0
  %1997 = vmatpush1.msra.mxu0 0.0
  %1998 = vmatprep.subr.mxu0 0.0
  %1999 = vmatpush1.msra.mxu0 0.0
  %2000 = vmatprep.mubr.f32.mxu0 0.0
  %v2001 = vand.u32 %v1360, 4294901760
  %2002 = vmatmul.mubr.f32.gmra.mrb[0].mxu0 %v2001
  %v2003 = vpop.f32.mrb[0].mxu0
  %v2004 = vadd.f32 %v1905, %v2003
  %v2005 = vpop.f32.mrb[0].mxu0
  %2006 = vmatprep.mubr.f32.mxu0 0.0
  %v2007 = vand.u32 %v1363, 4294901760
  %2008 = vmatmul.mubr.f32.gmra.mrb[0].mxu0 %v2007
  %v2009 = vpop.f32.mrb[0].mxu0
  %v2010 = vadd.f32 %v1911, %v2009
  %v2011 = vpop.f32.mrb[0].mxu0
  %2012 = vmatprep.mubr.f32.mxu0 0.0
  %v2013 = vand.u32 %v1366, 4294901760
  %2014 = vmatmul.mubr.f32.gmra.mrb[0].mxu0 %v2013
  %v2015 = vpop.f32.mrb[0].mxu0
  %v2016 = vadd.f32 %v1917, %v2015
  %v2017 = vpop.f32.mrb[0].mxu0
  %2018 = vmatprep.mubr.f32.mxu0 0.0
  %v2019 = vand.u32 %v1369, 4294901760
  %2020 = vmatmul.mubr.f32.gmra.mrb[0].mxu0 %v2019
  %v2021 = vpop.f32.mrb[0].mxu0
  %v2022 = vadd.f32 %v1923, %v2021
  %v2023 = vpop.f32.mrb[0].mxu0
  %2024 = vmatprep.mubr.f32.mxu0 0.0
  %v2025 = vand.u32 %v1372, 4294901760
  %2026 = vmatmul.mubr.f32.gmra.mrb[0].mxu0 %v2025
  %v2027 = vpop.f32.mrb[0].mxu0
  %v2028 = vadd.f32 %v1929, %v2027
  %v2029 = vpop.f32.mrb[0].mxu0
  %2030 = vdwg.mxu0
  %vm2031 = vcmask 1046528
  %v2032 = vsel %vm2031, %v2028, -inf
  %v2033 = vrot.slane %v2032, 4
  %v2034 = vmax.f32 %v2032, %v2033
  %v2035 = vrot.slane %v2034, 2
  %v2036 = vmax.f32 %v2034, %v2035
  %v2037 = vrot.slane %v2036, 1
  %v2038 = vmax.f32 %v2036, %v2037
  %v2039 = vsub.f32 %v2028, %v2038
  %v2040 = vmul.f32 %v2039, 1.442695
  %v2041 = vpow.pop %v2040
  %v2042 = vsel %vm2031, %v2041, 0.0
  %v2043 = vrot.slane %v2042, 4
  %v2044 = vadd.f32 %v2042, %v2043
  %v2045 = vrot.slane %v2044, 2
  %v2046 = vadd.f32 %v2044, %v2045
  %v2047 = vrot.slane %v2046, 1
  %v2048 = vadd.f32 %v2046, %v2047
  %v2049 = vrcp.pop %v2048
  %v2050 = vmul.f32 %v2041, %v2049
  %v2052 = vsel %vm1354, %v2004, 0
  %v2055 = vsel %vm1354, %v2010, 0
  %v2058 = vsel %vm1354, %v2016, 0
  %v2061 = vsel %vm1354, %v2022, 0
  %v2064 = vsel %vm1354, %v2050, 0
  %2066 = vmatprep.subr.mxu0 0.0
  %v2067 = vand.u32 %v2064, 4294901760
  %2068 = vmatpush1.xpose.msra.mxu0 %v2067
  %2069 = vmatprep.subr.mxu0 0.0
  %2070 = vmatpush1.xpose.msra.mxu0 0.0
  %2071 = vmatprep.subr.mxu0 0.0
  %2072 = vmatpush1.xpose.msra.mxu0 0.0
  %2073 = vmatprep.subr.mxu0 0.0
  %2074 = vmatpush1.xpose.msra.mxu0 0.0
  %2075 = vmatprep.subr.mxu0 0.0
  %2076 = vmatpush1.xpose.msra.mxu0 0.0
  %2077 = vmatprep.subr.mxu0 0.0
  %2078 = vmatpush1.xpose.msra.mxu0 0.0
  %2079 = vmatprep.subr.mxu0 0.0
  %2080 = vmatpush1.xpose.msra.mxu0 0.0
  %2081 = vmatprep.subr.mxu0 0.0
  %2082 = vmatpush1.xpose.msra.mxu0 0.0
  %2083 = vmatprep.subr.mxu0 0.0
  %2084 = vmatpush1.xpose.msra.mxu0 0.0
  %2085 = vmatprep.subr.mxu0 0.0
  %2086 = vmatpush1.xpose.msra.mxu0 0.0
  %2087 = vmatprep.subr.mxu0 0.0
  %2088 = vmatpush1.xpose.msra.mxu0 0.0
  %2089 = vmatprep.subr.mxu0 0.0
  %2090 = vmatpush1.xpose.msra.mxu0 0.0
  %2091 = vmatprep.subr.mxu0 0.0
  %2092 = vmatpush1.xpose.msra.mxu0 0.0
  %2093 = vmatprep.subr.mxu0 0.0
  %2094 = vmatpush1.xpose.msra.mxu0 0.0
  %2095 = vmatprep.subr.mxu0 0.0
  %2096 = vmatpush1.xpose.msra.mxu0 0.0
  %2097 = vmatprep.subr.mxu0 0.0
  %2098 = vmatpush1.xpose.msra.mxu0 0.0
  %2099 = vmatprep.subr.mxu0 0.0
  %2100 = vmatpush1.xpose.msra.mxu0 0.0
  %2101 = vmatprep.subr.mxu0 0.0
  %2102 = vmatpush1.xpose.msra.mxu0 0.0
  %2103 = vmatprep.subr.mxu0 0.0
  %2104 = vmatpush1.xpose.msra.mxu0 0.0
  %2105 = vmatprep.subr.mxu0 0.0
  %2106 = vmatpush1.xpose.msra.mxu0 0.0
  %2107 = vmatprep.subr.mxu0 0.0
  %2108 = vmatpush1.xpose.msra.mxu0 0.0
  %2109 = vmatprep.subr.mxu0 0.0
  %2110 = vmatpush1.xpose.msra.mxu0 0.0
  %2111 = vmatprep.subr.mxu0 0.0
  %2112 = vmatpush1.xpose.msra.mxu0 0.0
  %2113 = vmatprep.subr.mxu0 0.0
  %2114 = vmatpush1.xpose.msra.mxu0 0.0
  %2115 = vmatprep.subr.mxu0 0.0
  %2116 = vmatpush1.xpose.msra.mxu0 0.0
  %2117 = vmatprep.subr.mxu0 0.0
  %2118 = vmatpush1.xpose.msra.mxu0 0.0
  %2119 = vmatprep.subr.mxu0 0.0
  %2120 = vmatpush1.xpose.msra.mxu0 0.0
  %2121 = vmatprep.subr.mxu0 0.0
  %2122 = vmatpush1.xpose.msra.mxu0 0.0
  %2123 = vmatprep.subr.mxu0 0.0
  %2124 = vmatpush1.xpose.msra.mxu0 0.0
  %2125 = vmatprep.subr.mxu0 0.0
  %2126 = vmatpush1.xpose.msra.mxu0 0.0
  %2127 = vmatprep.subr.mxu0 0.0
  %2128 = vmatpush1.xpose.msra.mxu0 0.0
  %2129 = vmatprep.subr.mxu0 0.0
  %2130 = vmatpush1.xpose.msra.mxu0 0.0
  %2131 = vmatprep.mubr.f32.mxu0 0.0
  %v2132 = vand.u32 %v2052, 4294901760
  %v2133 = vsub.f32 %v2052, %v2132
  %v2134 = vand.u32 %v2133, 4294901760
  %v2135 = vsub.f32 %v2133, %v2134
  %v2136 = vand.u32 %v2135, 4294901760
  %2137 = vmatmul.mubr.f32.gmra.mrb[0].mxu0 %v2136
  %v2138 = vpop.f32.mrb[0].mxu0
  %v2139 = vadd.f32 0.0, %v2138
  %v2140 = vpop.f32.mrb[0].mxu0
  %2141 = vmatprep.mubr.f32.mxu0 0.0
  %v2142 = vand.u32 %v2055, 4294901760
  %v2143 = vsub.f32 %v2055, %v2142
  %v2144 = vand.u32 %v2143, 4294901760
  %v2145 = vsub.f32 %v2143, %v2144
  %v2146 = vand.u32 %v2145, 4294901760
  %2147 = vmatmul.mubr.f32.gmra.mrb[0].mxu0 %v2146
  %v2148 = vpop.f32.mrb[0].mxu0
  %v2149 = vadd.f32 0.0, %v2148
  %v2150 = vpop.f32.mrb[0].mxu0
  %2151 = vmatprep.mubr.f32.mxu0 0.0
  %v2152 = vand.u32 %v2058, 4294901760
  %v2153 = vsub.f32 %v2058, %v2152
  %v2154 = vand.u32 %v2153, 4294901760
  %v2155 = vsub.f32 %v2153, %v2154
  %v2156 = vand.u32 %v2155, 4294901760
  %2157 = vmatmul.mubr.f32.gmra.mrb[0].mxu0 %v2156
  %v2158 = vpop.f32.mrb[0].mxu0
  %v2159 = vadd.f32 0.0, %v2158
  %v2160 = vpop.f32.mrb[0].mxu0
  %2161 = vmatprep.mubr.f32.mxu0 0.0
  %v2162 = vand.u32 %v2061, 4294901760
  %v2163 = vsub.f32 %v2061, %v2162
  %v2164 = vand.u32 %v2163, 4294901760
  %v2165 = vsub.f32 %v2163, %v2164
  %v2166 = vand.u32 %v2165, 4294901760
  %2167 = vmatmul.mubr.f32.gmra.mrb[0].mxu0 %v2166
  %v2168 = vpop.f32.mrb[0].mxu0
  %v2169 = vadd.f32 0.0, %v2168
  %v2170 = vpop.f32.mrb[0].mxu0
  %2171 = vdwg.mxu0
  %2172 = vmatprep.subr.mxu0 0.0
  %v2173 = vand.u32 %v2064, 4294901760
  %v2174 = vsub.f32 %v2064, %v2173
  %v2175 = vand.u32 %v2174, 4294901760
  %v2176 = vsub.f32 %v2174, %v2175
  %v2177 = vand.u32 %v2176, 4294901760
  %2178 = vmatpush1.xpose.msra.mxu0 %v2177
  %2179 = vmatprep.subr.mxu0 0.0
  %2180 = vmatpush1.xpose.msra.mxu0 0.0
  %2181 = vmatprep.subr.mxu0 0.0
  %2182 = vmatpush1.xpose.msra.mxu0 0.0
  %2183 = vmatprep.subr.mxu0 0.0
  %2184 = vmatpush1.xpose.msra.mxu0 0.0
  %2185 = vmatprep.subr.mxu0 0.0
  %2186 = vmatpush1.xpose.msra.mxu0 0.0
  %2187 = vmatprep.subr.mxu0 0.0
  %2188 = vmatpush1.xpose.msra.mxu0 0.0
  %2189 = vmatprep.subr.mxu0 0.0
  %2190 = vmatpush1.xpose.msra.mxu0 0.0
  %2191 = vmatprep.subr.mxu0 0.0
  %2192 = vmatpush1.xpose.msra.mxu0 0.0
  %2193 = vmatprep.subr.mxu0 0.0
  %2194 = vmatpush1.xpose.msra.mxu0 0.0
  %2195 = vmatprep.subr.mxu0 0.0
  %2196 = vmatpush1.xpose.msra.mxu0 0.0
  %2197 = vmatprep.subr.mxu0 0.0
  %2198 = vmatpush1.xpose.msra.mxu0 0.0
  %2199 = vmatprep.subr.mxu0 0.0
  %2200 = vmatpush1.xpose.msra.mxu0 0.0
  %2201 = vmatprep.subr.mxu0 0.0
  %2202 = vmatpush1.xpose.msra.mxu0 0.0
  %2203 = vmatprep.subr.mxu0 0.0
  %2204 = vmatpush1.xpose.msra.mxu0 0.0
  %2205 = vmatprep.subr.mxu0 0.0
  %2206 = vmatpush1.xpose.msra.mxu0 0.0
  %2207 = vmatprep.subr.mxu0 0.0
  %2208 = vmatpush1.xpose.msra.mxu0 0.0
  %2209 = vmatprep.subr.mxu0 0.0
  %2210 = vmatpush1.xpose.msra.mxu0 0.0
  %2211 = vmatprep.subr.mxu0 0.0
  %2212 = vmatpush1.xpose.msra.mxu0 0.0
  %2213 = vmatprep.subr.mxu0 0.0
  %2214 = vmatpush1.xpose.msra.mxu0 0.0
  %2215 = vmatprep.subr.mxu0 0.0
  %2216 = vmatpush1.xpose.msra.mxu0 0.0
  %2217 = vmatprep.subr.mxu0 0.0
  %2218 = vmatpush1.xpose.msra.mxu0 0.0
  %2219 = vmatprep.subr.mxu0 0.0
  %2220 = vmatpush1.xpose.msra.mxu0 0.0
  %2221 = vmatprep.subr.mxu0 0.0
  %2222 = vmatpush1.xpose.msra.mxu0 0.0
  %2223 = vmatprep.subr.mxu0 0.0
  %2224 = vmatpush1.xpose.msra.mxu0 0.0
  %2225 = vmatprep.subr.mxu0 0.0
  %2226 = vmatpush1.xpose.msra.mxu0 0.0
  %2227 = vmatprep.subr.mxu0 0.0
  %2228 = vmatpush1.xpose.msra.mxu0 0.0
  %2229 = vmatprep.subr.mxu0 0.0
  %2230 = vmatpush1.xpose.msra.mxu0 0.0
  %2231 = vmatprep.subr.mxu0 0.0
  %2232 = vmatpush1.xpose.msra.mxu0 0.0
  %2233 = vmatprep.subr.mxu0 0.0
  %2234 = vmatpush1.xpose.msra.mxu0 0.0
  %2235 = vmatprep.subr.mxu0 0.0
  %2236 = vmatpush1.xpose.msra.mxu0 0.0
  %2237 = vmatprep.subr.mxu0 0.0
  %2238 = vmatpush1.xpose.msra.mxu0 0.0
  %2239 = vmatprep.subr.mxu0 0.0
  %2240 = vmatpush1.xpose.msra.mxu0 0.0
  %2241 = vmatprep.mubr.f32.mxu0 0.0
  %v2242 = vand.u32 %v2052, 4294901760
  %2243 = vmatmul.mubr.f32.gmra.mrb[0].mxu0 %v2242
  %v2244 = vpop.f32.mrb[0].mxu0
  %v2245 = vadd.f32 %v2139, %v2244
  %v2246 = vpop.f32.mrb[0].mxu0
  %2247 = vmatprep.mubr.f32.mxu0 0.0
  %v2248 = vand.u32 %v2055, 4294901760
  %2249 = vmatmul.mubr.f32.gmra.mrb[0].mxu0 %v2248
  %v2250 = vpop.f32.mrb[0].mxu0
  %v2251 = vadd.f32 %v2149, %v2250
  %v2252 = vpop.f32.mrb[0].mxu0
  %2253 = vmatprep.mubr.f32.mxu0 0.0
  %v2254 = vand.u32 %v2058, 4294901760
  %2255 = vmatmul.mubr.f32.gmra.mrb[0].mxu0 %v2254
  %v2256 = vpop.f32.mrb[0].mxu0
  %v2257 = vadd.f32 %v2159, %v2256
  %v2258 = vpop.f32.mrb[0].mxu0
  %2259 = vmatprep.mubr.f32.mxu0 0.0
  %v2260 = vand.u32 %v2061, 4294901760
  %2261 = vmatmul.mubr.f32.gmra.mrb[0].mxu0 %v2260
  %v2262 = vpop.f32.mrb[0].mxu0
  %v2263 = vadd.f32 %v2169, %v2262
  %v2264 = vpop.f32.mrb[0].mxu0
  %2265 = vdwg.mxu0
  %2266 = vmatprep.subr.mxu0 0.0
  %v2267 = vand.u32 %v2064, 4294901760
  %v2268 = vsub.f32 %v2064, %v2267
  %2269 = vmatpush1.xpose.msra.mxu0 %v2268
  %2270 = vmatprep.subr.mxu0 0.0
  %2271 = vmatpush1.xpose.msra.mxu0 0.0
  %2272 = vmatprep.subr.mxu0 0.0
  %2273 = vmatpush1.xpose.msra.mxu0 0.0
  %2274 = vmatprep.subr.mxu0 0.0
  %2275 = vmatpush1.xpose.msra.mxu0 0.0
  %2276 = vmatprep.subr.mxu0 0.0
  %2277 = vmatpush1.xpose.msra.mxu0 0.0
  %2278 = vmatprep.subr.mxu0 0.0
  %2279 = vmatpush1.xpose.msra.mxu0 0.0
  %2280 = vmatprep.subr.mxu0 0.0
  %2281 = vmatpush1.xpose.msra.mxu0 0.0
  %2282 = vmatprep.subr.mxu0 0.0
  %2283 = vmatpush1.xpose.msra.mxu0 0.0
  %2284 = vmatprep.subr.mxu0 0.0
  %2285 = vmatpush1.xpose.msra.mxu0 0.0
  %2286 = vmatprep.subr.mxu0 0.0
  %2287 = vmatpush1.xpose.msra.mxu0 0.0
  %2288 = vmatprep.subr.mxu0 0.0
  %2289 = vmatpush1.xpose.msra.mxu0 0.0
  %2290 = vmatprep.subr.mxu0 0.0
  %2291 = vmatpush1.xpose.msra.mxu0 0.0
  %2292 = vmatprep.subr.mxu0 0.0
  %2293 = vmatpush1.xpose.msra.mxu0 0.0
  %2294 = vmatprep.subr.mxu0 0.0
  %2295 = vmatpush1.xpose.msra.mxu0 0.0
  %2296 = vmatprep.subr.mxu0 0.0
  %2297 = vmatpush1.xpose.msra.mxu0 0.0
  %2298 = vmatprep.subr.mxu0 0.0
  %2299 = vmatpush1.xpose.msra.mxu0 0.0
  %2300 = vmatprep.subr.mxu0 0.0
  %2301 = vmatpush1.xpose.msra.mxu0 0.0
  %2302 = vmatprep.subr.mxu0 0.0
  %2303 = vmatpush1.xpose.msra.mxu0 0.0
  %2304 = vmatprep.subr.mxu0 0.0
  %2305 = vmatpush1.xpose.msra.mxu0 0.0
  %2306 = vmatprep.subr.mxu0 0.0
  %2307 = vmatpush1.xpose.msra.mxu0 0.0
  %2308 = vmatprep.subr.mxu0 0.0
  %2309 = vmatpush1.xpose.msra.mxu0 0.0
  %2310 = vmatprep.subr.mxu0 0.0
  %2311 = vmatpush1.xpose.msra.mxu0 0.0
  %2312 = vmatprep.subr.mxu0 0.0
  %2313 = vmatpush1.xpose.msra.mxu0 0.0
  %2314 = vmatprep.subr.mxu0 0.0
  %2315 = vmatpush1.xpose.msra.mxu0 0.0
  %2316 = vmatprep.subr.mxu0 0.0
  %2317 = vmatpush1.xpose.msra.mxu0 0.0
  %2318 = vmatprep.subr.mxu0 0.0
  %2319 = vmatpush1.xpose.msra.mxu0 0.0
  %2320 = vmatprep.subr.mxu0 0.0
  %2321 = vmatpush1.xpose.msra.mxu0 0.0
  %2322 = vmatprep.subr.mxu0 0.0
  %2323 = vmatpush1.xpose.msra.mxu0 0.0
  %2324 = vmatprep.subr.mxu0 0.0
  %2325 = vmatpush1.xpose.msra.mxu0 0.0
  %2326 = vmatprep.subr.mxu0 0.0
  %2327 = vmatpush1.xpose.msra.mxu0 0.0
  %2328 = vmatprep.subr.mxu0 0.0
  %2329 = vmatpush1.xpose.msra.mxu0 0.0
  %2330 = vmatprep.subr.mxu0 0.0
  %2331 = vmatpush1.xpose.msra.mxu0 0.0
  %2332 = vmatprep.mubr.f32.mxu0 0.0
  %v2333 = vand.u32 %v2052, 4294901760
  %v2334 = vsub.f32 %v2052, %v2333
  %2335 = vmatmul.mubr.f32.gmra.mrb[0].mxu0 %v2334
  %v2336 = vpop.f32.mrb[0].mxu0
  %v2337 = vadd.f32 %v2245, %v2336
  %v2338 = vpop.f32.mrb[0].mxu0
  %2339 = vmatprep.mubr.f32.mxu0 0.0
  %v2340 = vand.u32 %v2055, 4294901760
  %v2341 = vsub.f32 %v2055, %v2340
  %2342 = vmatmul.mubr.f32.gmra.mrb[0].mxu0 %v2341
  %v2343 = vpop.f32.mrb[0].mxu0
  %v2344 = vadd.f32 %v2251, %v2343
  %v2345 = vpop.f32.mrb[0].mxu0
  %2346 = vmatprep.mubr.f32.mxu0 0.0
  %v2347 = vand.u32 %v2058, 4294901760
  %v2348 = vsub.f32 %v2058, %v2347
  %2349 = vmatmul.mubr.f32.gmra.mrb[0].mxu0 %v2348
  %v2350 = vpop.f32.mrb[0].mxu0
  %v2351 = vadd.f32 %v2257, %v2350
  %v2352 = vpop.f32.mrb[0].mxu0
  %2353 = vmatprep.mubr.f32.mxu0 0.0
  %v2354 = vand.u32 %v2061, 4294901760
  %v2355 = vsub.f32 %v2061, %v2354
  %2356 = vmatmul.mubr.f32.gmra.mrb[0].mxu0 %v2355
  %v2357 = vpop.f32.mrb[0].mxu0
  %v2358 = vadd.f32 %v2263, %v2357
  %v2359 = vpop.f32.mrb[0].mxu0
  %2360 = vdwg.mxu0
  %2361 = vmatprep.subr.mxu0 0.0
  %v2362 = vand.u32 %v2064, 4294901760
  %2363 = vmatpush1.xpose.msra.mxu0 %v2362
  %2364 = vmatprep.subr.mxu0 0.0
  %2365 = vmatpush1.xpose.msra.mxu0 0.0
  %2366 = vmatprep.subr.mxu0 0.0
  %2367 = vmatpush1.xpose.msra.mxu0 0.0
  %2368 = vmatprep.subr.mxu0 0.0
  %2369 = vmatpush1.xpose.msra.mxu0 0.0
  %2370 = vmatprep.subr.mxu0 0.0
  %2371 = vmatpush1.xpose.msra.mxu0 0.0
  %2372 = vmatprep.subr.mxu0 0.0
  %2373 = vmatpush1.xpose.msra.mxu0 0.0
  %2374 = vmatprep.subr.mxu0 0.0
  %2375 = vmatpush1.xpose.msra.mxu0 0.0
  %2376 = vmatprep.subr.mxu0 0.0
  %2377 = vmatpush1.xpose.msra.mxu0 0.0
  %2378 = vmatprep.subr.mxu0 0.0
  %2379 = vmatpush1.xpose.msra.mxu0 0.0
  %2380 = vmatprep.subr.mxu0 0.0
  %2381 = vmatpush1.xpose.msra.mxu0 0.0
  %2382 = vmatprep.subr.mxu0 0.0
  %2383 = vmatpush1.xpose.msra.mxu0 0.0
  %2384 = vmatprep.subr.mxu0 0.0
  %2385 = vmatpush1.xpose.msra.mxu0 0.0
  %2386 = vmatprep.subr.mxu0 0.0
  %2387 = vmatpush1.xpose.msra.mxu0 0.0
  %2388 = vmatprep.subr.mxu0 0.0
  %2389 = vmatpush1.xpose.msra.mxu0 0.0
  %2390 = vmatprep.subr.mxu0 0.0
  %2391 = vmatpush1.xpose.msra.mxu0 0.0
  %2392 = vmatprep.subr.mxu0 0.0
  %2393 = vmatpush1.xpose.msra.mxu0 0.0
  %2394 = vmatprep.subr.mxu0 0.0
  %2395 = vmatpush1.xpose.msra.mxu0 0.0
  %2396 = vmatprep.subr.mxu0 0.0
  %2397 = vmatpush1.xpose.msra.mxu0 0.0
  %2398 = vmatprep.subr.mxu0 0.0
  %2399 = vmatpush1.xpose.msra.mxu0 0.0
  %2400 = vmatprep.subr.mxu0 0.0
  %2401 = vmatpush1.xpose.msra.mxu0 0.0
  %2402 = vmatprep.subr.mxu0 0.0
  %2403 = vmatpush1.xpose.msra.mxu0 0.0
  %2404 = vmatprep.subr.mxu0 0.0
  %2405 = vmatpush1.xpose.msra.mxu0 0.0
  %2406 = vmatprep.subr.mxu0 0.0
  %2407 = vmatpush1.xpose.msra.mxu0 0.0
  %2408 = vmatprep.subr.mxu0 0.0
  %2409 = vmatpush1.xpose.msra.mxu0 0.0
  %2410 = vmatprep.subr.mxu0 0.0
  %2411 = vmatpush1.xpose.msra.mxu0 0.0
  %2412 = vmatprep.subr.mxu0 0.0
  %2413 = vmatpush1.xpose.msra.mxu0 0.0
  %2414 = vmatprep.subr.mxu0 0.0
  %2415 = vmatpush1.xpose.msra.mxu0 0.0
  %2416 = vmatprep.subr.mxu0 0.0
  %2417 = vmatpush1.xpose.msra.mxu0 0.0
  %2418 = vmatprep.subr.mxu0 0.0
  %2419 = vmatpush1.xpose.msra.mxu0 0.0
  %2420 = vmatprep.subr.mxu0 0.0
  %2421 = vmatpush1.xpose.msra.mxu0 0.0
  %2422 = vmatprep.subr.mxu0 0.0
  %2423 = vmatpush1.xpose.msra.mxu0 0.0
  %2424 = vmatprep.subr.mxu0 0.0
  %2425 = vmatpush1.xpose.msra.mxu0 0.0
  %2426 = vmatprep.mubr.f32.mxu0 0.0
  %v2427 = vand.u32 %v2052, 4294901760
  %v2428 = vsub.f32 %v2052, %v2427
  %v2429 = vand.u32 %v2428, 4294901760
  %2430 = vmatmul.mubr.f32.gmra.mrb[0].mxu0 %v2429
  %v2431 = vpop.f32.mrb[0].mxu0
  %v2432 = vadd.f32 %v2337, %v2431
  %v2433 = vpop.f32.mrb[0].mxu0
  %2434 = vmatprep.mubr.f32.mxu0 0.0
  %v2435 = vand.u32 %v2055, 4294901760
  %v2436 = vsub.f32 %v2055, %v2435
  %v2437 = vand.u32 %v2436, 4294901760
  %2438 = vmatmul.mubr.f32.gmra.mrb[0].mxu0 %v2437
  %v2439 = vpop.f32.mrb[0].mxu0
  %v2440 = vadd.f32 %v2344, %v2439
  %v2441 = vpop.f32.mrb[0].mxu0
  %2442 = vmatprep.mubr.f32.mxu0 0.0
  %v2443 = vand.u32 %v2058, 4294901760
  %v2444 = vsub.f32 %v2058, %v2443
  %v2445 = vand.u32 %v2444, 4294901760
  %2446 = vmatmul.mubr.f32.gmra.mrb[0].mxu0 %v2445
  %v2447 = vpop.f32.mrb[0].mxu0
  %v2448 = vadd.f32 %v2351, %v2447
  %v2449 = vpop.f32.mrb[0].mxu0
  %2450 = vmatprep.mubr.f32.mxu0 0.0
  %v2451 = vand.u32 %v2061, 4294901760
  %v2452 = vsub.f32 %v2061, %v2451
  %v2453 = vand.u32 %v2452, 4294901760
  %2454 = vmatmul.mubr.f32.gmra.mrb[0].mxu0 %v2453
  %v2455 = vpop.f32.mrb[0].mxu0
  %v2456 = vadd.f32 %v2358, %v2455
  %v2457 = vpop.f32.mrb[0].mxu0
  %2458 = vdwg.mxu0
  %2459 = vmatprep.subr.mxu0 0.0
  %v2460 = vand.u32 %v2064, 4294901760
  %v2461 = vsub.f32 %v2064, %v2460
  %v2462 = vand.u32 %v2461, 4294901760
  %2463 = vmatpush1.xpose.msra.mxu0 %v2462
  %2464 = vmatprep.subr.mxu0 0.0
  %2465 = vmatpush1.xpose.msra.mxu0 0.0
  %2466 = vmatprep.subr.mxu0 0.0
  %2467 = vmatpush1.xpose.msra.mxu0 0.0
  %2468 = vmatprep.subr.mxu0 0.0
  %2469 = vmatpush1.xpose.msra.mxu0 0.0
  %2470 = vmatprep.subr.mxu0 0.0
  %2471 = vmatpush1.xpose.msra.mxu0 0.0
  %2472 = vmatprep.subr.mxu0 0.0
  %2473 = vmatpush1.xpose.msra.mxu0 0.0
  %2474 = vmatprep.subr.mxu0 0.0
  %2475 = vmatpush1.xpose.msra.mxu0 0.0
  %2476 = vmatprep.subr.mxu0 0.0
  %2477 = vmatpush1.xpose.msra.mxu0 0.0
  %2478 = vmatprep.subr.mxu0 0.0
  %2479 = vmatpush1.xpose.msra.mxu0 0.0
  %2480 = vmatprep.subr.mxu0 0.0
  %2481 = vmatpush1.xpose.msra.mxu0 0.0
  %2482 = vmatprep.subr.mxu0 0.0
  %2483 = vmatpush1.xpose.msra.mxu0 0.0
  %2484 = vmatprep.subr.mxu0 0.0
  %2485 = vmatpush1.xpose.msra.mxu0 0.0
  %2486 = vmatprep.subr.mxu0 0.0
  %2487 = vmatpush1.xpose.msra.mxu0 0.0
  %2488 = vmatprep.subr.mxu0 0.0
  %2489 = vmatpush1.xpose.msra.mxu0 0.0
  %2490 = vmatprep.subr.mxu0 0.0
  %2491 = vmatpush1.xpose.msra.mxu0 0.0
  %2492 = vmatprep.subr.mxu0 0.0
  %2493 = vmatpush1.xpose.msra.mxu0 0.0
  %2494 = vmatprep.subr.mxu0 0.0
  %2495 = vmatpush1.xpose.msra.mxu0 0.0
  %2496 = vmatprep.subr.mxu0 0.0
  %2497 = vmatpush1.xpose.msra.mxu0 0.0
  %2498 = vmatprep.subr.mxu0 0.0
  %2499 = vmatpush1.xpose.msra.mxu0 0.0
  %2500 = vmatprep.subr.mxu0 0.0
  %2501 = vmatpush1.xpose.msra.mxu0 0.0
  %2502 = vmatprep.subr.mxu0 0.0
  %2503 = vmatpush1.xpose.msra.mxu0 0.0
  %2504 = vmatprep.subr.mxu0 0.0
  %2505 = vmatpush1.xpose.msra.mxu0 0.0
  %2506 = vmatprep.subr.mxu0 0.0
  %2507 = vmatpush1.xpose.msra.mxu0 0.0
  %2508 = vmatprep.subr.mxu0 0.0
  %2509 = vmatpush1.xpose.msra.mxu0 0.0
  %2510 = vmatprep.subr.mxu0 0.0
  %2511 = vmatpush1.xpose.msra.mxu0 0.0
  %2512 = vmatprep.subr.mxu0 0.0
  %2513 = vmatpush1.xpose.msra.mxu0 0.0
  %2514 = vmatprep.subr.mxu0 0.0
  %2515 = vmatpush1.xpose.msra.mxu0 0.0
  %2516 = vmatprep.subr.mxu0 0.0
  %2517 = vmatpush1.xpose.msra.mxu0 0.0
  %2518 = vmatprep.subr.mxu0 0.0
  %2519 = vmatpush1.xpose.msra.mxu0 0.0
  %2520 = vmatprep.subr.mxu0 0.0
  %2521 = vmatpush1.xpose.msra.mxu0 0.0
  %2522 = vmatprep.subr.mxu0 0.0
  %2523 = vmatpush1.xpose.msra.mxu0 0.0
  %2524 = vmatprep.subr.mxu0 0.0
  %2525 = vmatpush1.xpose.msra.mxu0 0.0
  %2526 = vmatprep.mubr.f32.mxu0 0.0
  %v2527 = vand.u32 %v2052, 4294901760
  %2528 = vmatmul.mubr.f32.gmra.mrb[0].mxu0 %v2527
  %v2529 = vpop.f32.mrb[0].mxu0
  %v2530 = vadd.f32 %v2432, %v2529
  %v2531 = vpop.f32.mrb[0].mxu0
  %2532 = vmatprep.mubr.f32.mxu0 0.0
  %v2533 = vand.u32 %v2055, 4294901760
  %2534 = vmatmul.mubr.f32.gmra.mrb[0].mxu0 %v2533
  %v2535 = vpop.f32.mrb[0].mxu0
  %v2536 = vadd.f32 %v2440, %v2535
  %v2537 = vpop.f32.mrb[0].mxu0
  %2538 = vmatprep.mubr.f32.mxu0 0.0
  %v2539 = vand.u32 %v2058, 4294901760
  %2540 = vmatmul.mubr.f32.gmra.mrb[0].mxu0 %v2539
  %v2541 = vpop.f32.mrb[0].mxu0
  %v2542 = vadd.f32 %v2448, %v2541
  %v2543 = vpop.f32.mrb[0].mxu0
  %2544 = vmatprep.mubr.f32.mxu0 0.0
  %v2545 = vand.u32 %v2061, 4294901760
  %2546 = vmatmul.mubr.f32.gmra.mrb[0].mxu0 %v2545
  %v2547 = vpop.f32.mrb[0].mxu0
  %v2548 = vadd.f32 %v2456, %v2547
  %v2549 = vpop.f32.mrb[0].mxu0
  %2550 = vdwg.mxu0
  %2551 = vmatprep.subr.mxu0 0.0
  %v2552 = vand.u32 %v2064, 4294901760
  %2553 = vmatpush1.xpose.msra.mxu0 %v2552
  %2554 = vmatprep.subr.mxu0 0.0
  %2555 = vmatpush1.xpose.msra.mxu0 0.0
  %2556 = vmatprep.subr.mxu0 0.0
  %2557 = vmatpush1.xpose.msra.mxu0 0.0
  %2558 = vmatprep.subr.mxu0 0.0
  %2559 = vmatpush1.xpose.msra.mxu0 0.0
  %2560 = vmatprep.subr.mxu0 0.0
  %2561 = vmatpush1.xpose.msra.mxu0 0.0
  %2562 = vmatprep.subr.mxu0 0.0
  %2563 = vmatpush1.xpose.msra.mxu0 0.0
  %2564 = vmatprep.subr.mxu0 0.0
  %2565 = vmatpush1.xpose.msra.mxu0 0.0
  %2566 = vmatprep.subr.mxu0 0.0
  %2567 = vmatpush1.xpose.msra.mxu0 0.0
  %2568 = vmatprep.subr.mxu0 0.0
  %2569 = vmatpush1.xpose.msra.mxu0 0.0
  %2570 = vmatprep.subr.mxu0 0.0
  %2571 = vmatpush1.xpose.msra.mxu0 0.0
  %2572 = vmatprep.subr.mxu0 0.0
  %2573 = vmatpush1.xpose.msra.mxu0 0.0
  %2574 = vmatprep.subr.mxu0 0.0
  %2575 = vmatpush1.xpose.msra.mxu0 0.0
  %2576 = vmatprep.subr.mxu0 0.0
  %2577 = vmatpush1.xpose.msra.mxu0 0.0
  %2578 = vmatprep.subr.mxu0 0.0
  %2579 = vmatpush1.xpose.msra.mxu0 0.0
  %2580 = vmatprep.subr.mxu0 0.0
  %2581 = vmatpush1.xpose.msra.mxu0 0.0
  %2582 = vmatprep.subr.mxu0 0.0
  %2583 = vmatpush1.xpose.msra.mxu0 0.0
  %2584 = vmatprep.subr.mxu0 0.0
  %2585 = vmatpush1.xpose.msra.mxu0 0.0
  %2586 = vmatprep.subr.mxu0 0.0
  %2587 = vmatpush1.xpose.msra.mxu0 0.0
  %2588 = vmatprep.subr.mxu0 0.0
  %2589 = vmatpush1.xpose.msra.mxu0 0.0
  %2590 = vmatprep.subr.mxu0 0.0
  %2591 = vmatpush1.xpose.msra.mxu0 0.0
  %2592 = vmatprep.subr.mxu0 0.0
  %2593 = vmatpush1.xpose.msra.mxu0 0.0
  %2594 = vmatprep.subr.mxu0 0.0
  %2595 = vmatpush1.xpose.msra.mxu0 0.0
  %2596 = vmatprep.subr.mxu0 0.0
  %2597 = vmatpush1.xpose.msra.mxu0 0.0
  %2598 = vmatprep.subr.mxu0 0.0
  %2599 = vmatpush1.xpose.msra.mxu0 0.0
  %2600 = vmatprep.subr.mxu0 0.0
  %2601 = vmatpush1.xpose.msra.mxu0 0.0
  %2602 = vmatprep.subr.mxu0 0.0
  %2603 = vmatpush1.xpose.msra.mxu0 0.0
  %2604 = vmatprep.subr.mxu0 0.0
  %2605 = vmatpush1.xpose.msra.mxu0 0.0
  %2606 = vmatprep.subr.mxu0 0.0
  %2607 = vmatpush1.xpose.msra.mxu0 0.0
  %2608 = vmatprep.subr.mxu0 0.0
  %2609 = vmatpush1.xpose.msra.mxu0 0.0
  %2610 = vmatprep.subr.mxu0 0.0
  %2611 = vmatpush1.xpose.msra.mxu0 0.0
  %2612 = vmatprep.subr.mxu0 0.0
  %2613 = vmatpush1.xpose.msra.mxu0 0.0
  %2614 = vmatprep.subr.mxu0 0.0
  %2615 = vmatpush1.xpose.msra.mxu0 0.0
  %2616 = vmatprep.mubr.f32.mxu0 0.0
  %v2617 = vand.u32 %v2052, 4294901760
  %2618 = vmatmul.mubr.f32.gmra.mrb[0].mxu0 %v2617
  %v2619 = vpop.f32.mrb[0].mxu0
  %v2620 = vadd.f32 %v2530, %v2619
  %v2621 = vpop.f32.mrb[0].mxu0
  %2622 = vmatprep.mubr.f32.mxu0 0.0
  %v2623 = vand.u32 %v2055, 4294901760
  %2624 = vmatmul.mubr.f32.gmra.mrb[0].mxu0 %v2623
  %v2625 = vpop.f32.mrb[0].mxu0
  %v2626 = vadd.f32 %v2536, %v2625
  %v2627 = vpop.f32.mrb[0].mxu0
  %2628 = vmatprep.mubr.f32.mxu0 0.0
  %v2629 = vand.u32 %v2058, 4294901760
  %2630 = vmatmul.mubr.f32.gmra.mrb[0].mxu0 %v2629
  %v2631 = vpop.f32.mrb[0].mxu0
  %v2632 = vadd.f32 %v2542, %v2631
  %v2633 = vpop.f32.mrb[0].mxu0
  %2634 = vmatprep.mubr.f32.mxu0 0.0
  %v2635 = vand.u32 %v2061, 4294901760
  %2636 = vmatmul.mubr.f32.gmra.mrb[0].mxu0 %v2635
  %v2637 = vpop.f32.mrb[0].mxu0
  %v2638 = vadd.f32 %v2548, %v2637
  %v2639 = vpop.f32.mrb[0].mxu0
  %2640 = vdwg.mxu0
  %v2641 = vmax.f32 %v2620, 0.0
  %v2642 = vmax.f32 %v2626, 0.0
  %v2643 = vmax.f32 %v2632, 0.0
  %v2644 = vmax.f32 %v2638, 0.0
  %2645 = vxpose.xlu0.b32.start [1/16] %v2641, 128
  %2646 = vxpose.xlu0.b32.cont [2/16] %v2642, 128
  %2647 = vxpose.xlu0.b32.cont [3/16] %v2643, 128
  %2648 = vxpose.xlu0.b32.cont [4/16] %v2644, 128
  %2649 = vxpose.xlu0.b32.cont [5/16] 0.0, 128
  %2650 = vxpose.xlu0.b32.cont [6/16] 0.0, 128
  %2651 = vxpose.xlu0.b32.cont [7/16] 0.0, 128
  %2652 = vxpose.xlu0.b32.cont [8/16] 0.0, 128
  %2653 = vxpose.xlu0.b32.cont [9/16] 0.0, 128
  %2654 = vxpose.xlu0.b32.cont [10/16] 0.0, 128
  %2655 = vxpose.xlu0.b32.cont [11/16] 0.0, 128
  %2656 = vxpose.xlu0.b32.cont [12/16] 0.0, 128
  %2657 = vxpose.xlu0.b32.cont [13/16] 0.0, 128
  %2658 = vxpose.xlu0.b32.cont [14/16] 0.0, 128
  %2659 = vxpose.xlu0.b32.cont [15/16] 0.0, 128
  %2660 = vxpose.xlu0.b32.end [16/16] 0.0, 128
  %v2661 = vpop.trf.xlu0
  %v2662 = vpop.trf.xlu0
  %v2663 = vpop.trf.xlu0
  %v2664 = vpop.trf.xlu0
  %v2665 = vpop.trf.xlu0
  %v2666 = vpop.trf.xlu0
  %v2667 = vpop.trf.xlu0
  %v2668 = vpop.trf.xlu0
  %v2669 = vpop.trf.xlu0
  %v2670 = vpop.trf.xlu0
  %v2671 = vpop.trf.xlu0
  %v2672 = vpop.trf.xlu0
  %v2673 = vpop.trf.xlu0
  %v2674 = vpop.trf.xlu0
  %v2675 = vpop.trf.xlu0
  %v2676 = vpop.trf.xlu0
  %vm2677 = vcmask 260096
  %2678 = vst.msk [vmem:[%s8] sm:$0x7f] %vm2677, %v2661
  %2679 = vrot.lane.b32.xlu0 %v2004, 64
  %v2680 = vpop.permute.xlu0 %2679
  %2681 = vrot.lane.b32.xlu0 %v2010, 64
  %v2682 = vpop.permute.xlu0 %2681
  %2683 = vrot.lane.b32.xlu0 %v2016, 64
  %v2684 = vpop.permute.xlu0 %2683
  %2685 = vrot.lane.b32.xlu0 %v2022, 64
  %v2686 = vpop.permute.xlu0 %2685
  %2687 = vrot.lane.b32.xlu0 %v2050, 64
  %v2688 = vpop.permute.xlu0 %2687
  %v2689 = vsel %vm1354, %v2680, 0
  %v2691 = vsel %vm1354, %v2682, 0
  %v2693 = vsel %vm1354, %v2684, 0
  %v2695 = vsel %vm1354, %v2686, 0
  %v2697 = vsel %vm1354, %v2688, 0
  %2699 = vmatprep.subr.mxu0 0.0
  %v2700 = vand.u32 %v2697, 4294901760
  %2701 = vmatpush1.xpose.msra.mxu0 %v2700
  %2702 = vmatprep.subr.mxu0 0.0
  %2703 = vmatpush1.xpose.msra.mxu0 0.0
  %2704 = vmatprep.subr.mxu0 0.0
  %2705 = vmatpush1.xpose.msra.mxu0 0.0
  %2706 = vmatprep.subr.mxu0 0.0
  %2707 = vmatpush1.xpose.msra.mxu0 0.0
  %2708 = vmatprep.subr.mxu0 0.0
  %2709 = vmatpush1.xpose.msra.mxu0 0.0
  %2710 = vmatprep.subr.mxu0 0.0
  %2711 = vmatpush1.xpose.msra.mxu0 0.0
  %2712 = vmatprep.subr.mxu0 0.0
  %2713 = vmatpush1.xpose.msra.mxu0 0.0
  %2714 = vmatprep.subr.mxu0 0.0
  %2715 = vmatpush1.xpose.msra.mxu0 0.0
  %2716 = vmatprep.subr.mxu0 0.0
  %2717 = vmatpush1.xpose.msra.mxu0 0.0
  %2718 = vmatprep.subr.mxu0 0.0
  %2719 = vmatpush1.xpose.msra.mxu0 0.0
  %2720 = vmatprep.subr.mxu0 0.0
  %2721 = vmatpush1.xpose.msra.mxu0 0.0
  %2722 = vmatprep.subr.mxu0 0.0
  %2723 = vmatpush1.xpose.msra.mxu0 0.0
  %2724 = vmatprep.subr.mxu0 0.0
  %2725 = vmatpush1.xpose.msra.mxu0 0.0
  %2726 = vmatprep.subr.mxu0 0.0
  %2727 = vmatpush1.xpose.msra.mxu0 0.0
  %2728 = vmatprep.subr.mxu0 0.0
  %2729 = vmatpush1.xpose.msra.mxu0 0.0
  %2730 = vmatprep.subr.mxu0 0.0
  %2731 = vmatpush1.xpose.msra.mxu0 0.0
  %2732 = vmatprep.subr.mxu0 0.0
  %2733 = vmatpush1.xpose.msra.mxu0 0.0
  %2734 = vmatprep.subr.mxu0 0.0
  %2735 = vmatpush1.xpose.msra.mxu0 0.0
  %2736 = vmatprep.subr.mxu0 0.0
  %2737 = vmatpush1.xpose.msra.mxu0 0.0
  %2738 = vmatprep.subr.mxu0 0.0
  %2739 = vmatpush1.xpose.msra.mxu0 0.0
  %2740 = vmatprep.subr.mxu0 0.0
  %2741 = vmatpush1.xpose.msra.mxu0 0.0
  %2742 = vmatprep.subr.mxu0 0.0
  %2743 = vmatpush1.xpose.msra.mxu0 0.0
  %2744 = vmatprep.subr.mxu0 0.0
  %2745 = vmatpush1.xpose.msra.mxu0 0.0
  %2746 = vmatprep.subr.mxu0 0.0
  %2747 = vmatpush1.xpose.msra.mxu0 0.0
  %2748 = vmatprep.subr.mxu0 0.0
  %2749 = vmatpush1.xpose.msra.mxu0 0.0
  %2750 = vmatprep.subr.mxu0 0.0
  %2751 = vmatpush1.xpose.msra.mxu0 0.0
  %2752 = vmatprep.subr.mxu0 0.0
  %2753 = vmatpush1.xpose.msra.mxu0 0.0
  %2754 = vmatprep.subr.mxu0 0.0
  %2755 = vmatpush1.xpose.msra.mxu0 0.0
  %2756 = vmatprep.subr.mxu0 0.0
  %2757 = vmatpush1.xpose.msra.mxu0 0.0
  %2758 = vmatprep.subr.mxu0 0.0
  %2759 = vmatpush1.xpose.msra.mxu0 0.0
  %2760 = vmatprep.subr.mxu0 0.0
  %2761 = vmatpush1.xpose.msra.mxu0 0.0
  %2762 = vmatprep.subr.mxu0 0.0
  %2763 = vmatpush1.xpose.msra.mxu0 0.0
  %2764 = vmatprep.mubr.f32.mxu0 0.0
  %v2765 = vand.u32 %v2689, 4294901760
  %v2766 = vsub.f32 %v2689, %v2765
  %v2767 = vand.u32 %v2766, 4294901760
  %v2768 = vsub.f32 %v2766, %v2767
  %v2769 = vand.u32 %v2768, 4294901760
  %2770 = vmatmul.mubr.f32.gmra.mrb[0].mxu0 %v2769
  %v2771 = vpop.f32.mrb[0].mxu0
  %v2772 = vadd.f32 0.0, %v2771
  %v2773 = vpop.f32.mrb[0].mxu0
  %2774 = vmatprep.mubr.f32.mxu0 0.0
  %v2775 = vand.u32 %v2691, 4294901760
  %v2776 = vsub.f32 %v2691, %v2775
  %v2777 = vand.u32 %v2776, 4294901760
  %v2778 = vsub.f32 %v2776, %v2777
  %v2779 = vand.u32 %v2778, 4294901760
  %2780 = vmatmul.mubr.f32.gmra.mrb[0].mxu0 %v2779
  %v2781 = vpop.f32.mrb[0].mxu0
  %v2782 = vadd.f32 0.0, %v2781
  %v2783 = vpop.f32.mrb[0].mxu0
  %2784 = vmatprep.mubr.f32.mxu0 0.0
  %v2785 = vand.u32 %v2693, 4294901760
  %v2786 = vsub.f32 %v2693, %v2785
  %v2787 = vand.u32 %v2786, 4294901760
  %v2788 = vsub.f32 %v2786, %v2787
  %v2789 = vand.u32 %v2788, 4294901760
  %2790 = vmatmul.mubr.f32.gmra.mrb[0].mxu0 %v2789
  %v2791 = vpop.f32.mrb[0].mxu0
  %v2792 = vadd.f32 0.0, %v2791
  %v2793 = vpop.f32.mrb[0].mxu0
  %2794 = vmatprep.mubr.f32.mxu0 0.0
  %v2795 = vand.u32 %v2695, 4294901760
  %v2796 = vsub.f32 %v2695, %v2795
  %v2797 = vand.u32 %v2796, 4294901760
  %v2798 = vsub.f32 %v2796, %v2797
  %v2799 = vand.u32 %v2798, 4294901760
  %2800 = vmatmul.mubr.f32.gmra.mrb[0].mxu0 %v2799
  %v2801 = vpop.f32.mrb[0].mxu0
  %v2802 = vadd.f32 0.0, %v2801
  %v2803 = vpop.f32.mrb[0].mxu0
  %2804 = vdwg.mxu0
  %2805 = vmatprep.subr.mxu0 0.0
  %v2806 = vand.u32 %v2697, 4294901760
  %v2807 = vsub.f32 %v2697, %v2806
  %v2808 = vand.u32 %v2807, 4294901760
  %v2809 = vsub.f32 %v2807, %v2808
  %v2810 = vand.u32 %v2809, 4294901760
  %2811 = vmatpush1.xpose.msra.mxu0 %v2810
  %2812 = vmatprep.subr.mxu0 0.0
  %2813 = vmatpush1.xpose.msra.mxu0 0.0
  %2814 = vmatprep.subr.mxu0 0.0
  %2815 = vmatpush1.xpose.msra.mxu0 0.0
  %2816 = vmatprep.subr.mxu0 0.0
  %2817 = vmatpush1.xpose.msra.mxu0 0.0
  %2818 = vmatprep.subr.mxu0 0.0
  %2819 = vmatpush1.xpose.msra.mxu0 0.0
  %2820 = vmatprep.subr.mxu0 0.0
  %2821 = vmatpush1.xpose.msra.mxu0 0.0
  %2822 = vmatprep.subr.mxu0 0.0
  %2823 = vmatpush1.xpose.msra.mxu0 0.0
  %2824 = vmatprep.subr.mxu0 0.0
  %2825 = vmatpush1.xpose.msra.mxu0 0.0
  %2826 = vmatprep.subr.mxu0 0.0
  %2827 = vmatpush1.xpose.msra.mxu0 0.0
  %2828 = vmatprep.subr.mxu0 0.0
  %2829 = vmatpush1.xpose.msra.mxu0 0.0
  %2830 = vmatprep.subr.mxu0 0.0
  %2831 = vmatpush1.xpose.msra.mxu0 0.0
  %2832 = vmatprep.subr.mxu0 0.0
  %2833 = vmatpush1.xpose.msra.mxu0 0.0
  %2834 = vmatprep.subr.mxu0 0.0
  %2835 = vmatpush1.xpose.msra.mxu0 0.0
  %2836 = vmatprep.subr.mxu0 0.0
  %2837 = vmatpush1.xpose.msra.mxu0 0.0
  %2838 = vmatprep.subr.mxu0 0.0
  %2839 = vmatpush1.xpose.msra.mxu0 0.0
  %2840 = vmatprep.subr.mxu0 0.0
  %2841 = vmatpush1.xpose.msra.mxu0 0.0
  %2842 = vmatprep.subr.mxu0 0.0
  %2843 = vmatpush1.xpose.msra.mxu0 0.0
  %2844 = vmatprep.subr.mxu0 0.0
  %2845 = vmatpush1.xpose.msra.mxu0 0.0
  %2846 = vmatprep.subr.mxu0 0.0
  %2847 = vmatpush1.xpose.msra.mxu0 0.0
  %2848 = vmatprep.subr.mxu0 0.0
  %2849 = vmatpush1.xpose.msra.mxu0 0.0
  %2850 = vmatprep.subr.mxu0 0.0
  %2851 = vmatpush1.xpose.msra.mxu0 0.0
  %2852 = vmatprep.subr.mxu0 0.0
  %2853 = vmatpush1.xpose.msra.mxu0 0.0
  %2854 = vmatprep.subr.mxu0 0.0
  %2855 = vmatpush1.xpose.msra.mxu0 0.0
  %2856 = vmatprep.subr.mxu0 0.0
  %2857 = vmatpush1.xpose.msra.mxu0 0.0
  %2858 = vmatprep.subr.mxu0 0.0
  %2859 = vmatpush1.xpose.msra.mxu0 0.0
  %2860 = vmatprep.subr.mxu0 0.0
  %2861 = vmatpush1.xpose.msra.mxu0 0.0
  %2862 = vmatprep.subr.mxu0 0.0
  %2863 = vmatpush1.xpose.msra.mxu0 0.0
  %2864 = vmatprep.subr.mxu0 0.0
  %2865 = vmatpush1.xpose.msra.mxu0 0.0
  %2866 = vmatprep.subr.mxu0 0.0
  %2867 = vmatpush1.xpose.msra.mxu0 0.0
  %2868 = vmatprep.subr.mxu0 0.0
  %2869 = vmatpush1.xpose.msra.mxu0 0.0
  %2870 = vmatprep.subr.mxu0 0.0
  %2871 = vmatpush1.xpose.msra.mxu0 0.0
  %2872 = vmatprep.subr.mxu0 0.0
  %2873 = vmatpush1.xpose.msra.mxu0 0.0
  %2874 = vmatprep.mubr.f32.mxu0 0.0
  %v2875 = vand.u32 %v2689, 4294901760
  %2876 = vmatmul.mubr.f32.gmra.mrb[0].mxu0 %v2875
  %v2877 = vpop.f32.mrb[0].mxu0
  %v2878 = vadd.f32 %v2772, %v2877
  %v2879 = vpop.f32.mrb[0].mxu0
  %2880 = vmatprep.mubr.f32.mxu0 0.0
  %v2881 = vand.u32 %v2691, 4294901760
  %2882 = vmatmul.mubr.f32.gmra.mrb[0].mxu0 %v2881
  %v2883 = vpop.f32.mrb[0].mxu0
  %v2884 = vadd.f32 %v2782, %v2883
  %v2885 = vpop.f32.mrb[0].mxu0
  %2886 = vmatprep.mubr.f32.mxu0 0.0
  %v2887 = vand.u32 %v2693, 4294901760
  %2888 = vmatmul.mubr.f32.gmra.mrb[0].mxu0 %v2887
  %v2889 = vpop.f32.mrb[0].mxu0
  %v2890 = vadd.f32 %v2792, %v2889
  %v2891 = vpop.f32.mrb[0].mxu0
  %2892 = vmatprep.mubr.f32.mxu0 0.0
  %v2893 = vand.u32 %v2695, 4294901760
  %2894 = vmatmul.mubr.f32.gmra.mrb[0].mxu0 %v2893
  %v2895 = vpop.f32.mrb[0].mxu0
  %v2896 = vadd.f32 %v2802, %v2895
  %v2897 = vpop.f32.mrb[0].mxu0
  %2898 = vdwg.mxu0
  %2899 = vmatprep.subr.mxu0 0.0
  %v2900 = vand.u32 %v2697, 4294901760
  %v2901 = vsub.f32 %v2697, %v2900
  %2902 = vmatpush1.xpose.msra.mxu0 %v2901
  %2903 = vmatprep.subr.mxu0 0.0
  %2904 = vmatpush1.xpose.msra.mxu0 0.0
  %2905 = vmatprep.subr.mxu0 0.0
  %2906 = vmatpush1.xpose.msra.mxu0 0.0
  %2907 = vmatprep.subr.mxu0 0.0
  %2908 = vmatpush1.xpose.msra.mxu0 0.0
  %2909 = vmatprep.subr.mxu0 0.0
  %2910 = vmatpush1.xpose.msra.mxu0 0.0
  %2911 = vmatprep.subr.mxu0 0.0
  %2912 = vmatpush1.xpose.msra.mxu0 0.0
  %2913 = vmatprep.subr.mxu0 0.0
  %2914 = vmatpush1.xpose.msra.mxu0 0.0
  %2915 = vmatprep.subr.mxu0 0.0
  %2916 = vmatpush1.xpose.msra.mxu0 0.0
  %2917 = vmatprep.subr.mxu0 0.0
  %2918 = vmatpush1.xpose.msra.mxu0 0.0
  %2919 = vmatprep.subr.mxu0 0.0
  %2920 = vmatpush1.xpose.msra.mxu0 0.0
  %2921 = vmatprep.subr.mxu0 0.0
  %2922 = vmatpush1.xpose.msra.mxu0 0.0
  %2923 = vmatprep.subr.mxu0 0.0
  %2924 = vmatpush1.xpose.msra.mxu0 0.0
  %2925 = vmatprep.subr.mxu0 0.0
  %2926 = vmatpush1.xpose.msra.mxu0 0.0
  %2927 = vmatprep.subr.mxu0 0.0
  %2928 = vmatpush1.xpose.msra.mxu0 0.0
  %2929 = vmatprep.subr.mxu0 0.0
  %2930 = vmatpush1.xpose.msra.mxu0 0.0
  %2931 = vmatprep.subr.mxu0 0.0
  %2932 = vmatpush1.xpose.msra.mxu0 0.0
  %2933 = vmatprep.subr.mxu0 0.0
  %2934 = vmatpush1.xpose.msra.mxu0 0.0
  %2935 = vmatprep.subr.mxu0 0.0
  %2936 = vmatpush1.xpose.msra.mxu0 0.0
  %2937 = vmatprep.subr.mxu0 0.0
  %2938 = vmatpush1.xpose.msra.mxu0 0.0
  %2939 = vmatprep.subr.mxu0 0.0
  %2940 = vmatpush1.xpose.msra.mxu0 0.0
  %2941 = vmatprep.subr.mxu0 0.0
  %2942 = vmatpush1.xpose.msra.mxu0 0.0
  %2943 = vmatprep.subr.mxu0 0.0
  %2944 = vmatpush1.xpose.msra.mxu0 0.0
  %2945 = vmatprep.subr.mxu0 0.0
  %2946 = vmatpush1.xpose.msra.mxu0 0.0
  %2947 = vmatprep.subr.mxu0 0.0
  %2948 = vmatpush1.xpose.msra.mxu0 0.0
  %2949 = vmatprep.subr.mxu0 0.0
  %2950 = vmatpush1.xpose.msra.mxu0 0.0
  %2951 = vmatprep.subr.mxu0 0.0
  %2952 = vmatpush1.xpose.msra.mxu0 0.0
  %2953 = vmatprep.subr.mxu0 0.0
  %2954 = vmatpush1.xpose.msra.mxu0 0.0
  %2955 = vmatprep.subr.mxu0 0.0
  %2956 = vmatpush1.xpose.msra.mxu0 0.0
  %2957 = vmatprep.subr.mxu0 0.0
  %2958 = vmatpush1.xpose.msra.mxu0 0.0
  %2959 = vmatprep.subr.mxu0 0.0
  %2960 = vmatpush1.xpose.msra.mxu0 0.0
  %2961 = vmatprep.subr.mxu0 0.0
  %2962 = vmatpush1.xpose.msra.mxu0 0.0
  %2963 = vmatprep.subr.mxu0 0.0
  %2964 = vmatpush1.xpose.msra.mxu0 0.0
  %2965 = vmatprep.mubr.f32.mxu0 0.0
  %v2966 = vand.u32 %v2689, 4294901760
  %v2967 = vsub.f32 %v2689, %v2966
  %2968 = vmatmul.mubr.f32.gmra.mrb[0].mxu0 %v2967
  %v2969 = vpop.f32.mrb[0].mxu0
  %v2970 = vadd.f32 %v2878, %v2969
  %v2971 = vpop.f32.mrb[0].mxu0
  %2972 = vmatprep.mubr.f32.mxu0 0.0
  %v2973 = vand.u32 %v2691, 4294901760
  %v2974 = vsub.f32 %v2691, %v2973
  %2975 = vmatmul.mubr.f32.gmra.mrb[0].mxu0 %v2974
  %v2976 = vpop.f32.mrb[0].mxu0
  %v2977 = vadd.f32 %v2884, %v2976
  %v2978 = vpop.f32.mrb[0].mxu0
  %2979 = vmatprep.mubr.f32.mxu0 0.0
  %v2980 = vand.u32 %v2693, 4294901760
  %v2981 = vsub.f32 %v2693, %v2980
  %2982 = vmatmul.mubr.f32.gmra.mrb[0].mxu0 %v2981
  %v2983 = vpop.f32.mrb[0].mxu0
  %v2984 = vadd.f32 %v2890, %v2983
  %v2985 = vpop.f32.mrb[0].mxu0
  %2986 = vmatprep.mubr.f32.mxu0 0.0
  %v2987 = vand.u32 %v2695, 4294901760
  %v2988 = vsub.f32 %v2695, %v2987
  %2989 = vmatmul.mubr.f32.gmra.mrb[0].mxu0 %v2988
  %v2990 = vpop.f32.mrb[0].mxu0
  %v2991 = vadd.f32 %v2896, %v2990
  %v2992 = vpop.f32.mrb[0].mxu0
  %2993 = vdwg.mxu0
  %2994 = vmatprep.subr.mxu0 0.0
  %v2995 = vand.u32 %v2697, 4294901760
  %2996 = vmatpush1.xpose.msra.mxu0 %v2995
  %2997 = vmatprep.subr.mxu0 0.0
  %2998 = vmatpush1.xpose.msra.mxu0 0.0
  %2999 = vmatprep.subr.mxu0 0.0
  %3000 = vmatpush1.xpose.msra.mxu0 0.0
  %3001 = vmatprep.subr.mxu0 0.0
  %3002 = vmatpush1.xpose.msra.mxu0 0.0
  %3003 = vmatprep.subr.mxu0 0.0
  %3004 = vmatpush1.xpose.msra.mxu0 0.0
  %3005 = vmatprep.subr.mxu0 0.0
  %3006 = vmatpush1.xpose.msra.mxu0 0.0
  %3007 = vmatprep.subr.mxu0 0.0
  %3008 = vmatpush1.xpose.msra.mxu0 0.0
  %3009 = vmatprep.subr.mxu0 0.0
  %3010 = vmatpush1.xpose.msra.mxu0 0.0
  %3011 = vmatprep.subr.mxu0 0.0
  %3012 = vmatpush1.xpose.msra.mxu0 0.0
  %3013 = vmatprep.subr.mxu0 0.0
  %3014 = vmatpush1.xpose.msra.mxu0 0.0
  %3015 = vmatprep.subr.mxu0 0.0
  %3016 = vmatpush1.xpose.msra.mxu0 0.0
  %3017 = vmatprep.subr.mxu0 0.0
  %3018 = vmatpush1.xpose.msra.mxu0 0.0
  %3019 = vmatprep.subr.mxu0 0.0
  %3020 = vmatpush1.xpose.msra.mxu0 0.0
  %3021 = vmatprep.subr.mxu0 0.0
  %3022 = vmatpush1.xpose.msra.mxu0 0.0
  %3023 = vmatprep.subr.mxu0 0.0
  %3024 = vmatpush1.xpose.msra.mxu0 0.0
  %3025 = vmatprep.subr.mxu0 0.0
  %3026 = vmatpush1.xpose.msra.mxu0 0.0
  %3027 = vmatprep.subr.mxu0 0.0
  %3028 = vmatpush1.xpose.msra.mxu0 0.0
  %3029 = vmatprep.subr.mxu0 0.0
  %3030 = vmatpush1.xpose.msra.mxu0 0.0
  %3031 = vmatprep.subr.mxu0 0.0
  %3032 = vmatpush1.xpose.msra.mxu0 0.0
  %3033 = vmatprep.subr.mxu0 0.0
  %3034 = vmatpush1.xpose.msra.mxu0 0.0
  %3035 = vmatprep.subr.mxu0 0.0
  %3036 = vmatpush1.xpose.msra.mxu0 0.0
  %3037 = vmatprep.subr.mxu0 0.0
  %3038 = vmatpush1.xpose.msra.mxu0 0.0
  %3039 = vmatprep.subr.mxu0 0.0
  %3040 = vmatpush1.xpose.msra.mxu0 0.0
  %3041 = vmatprep.subr.mxu0 0.0
  %3042 = vmatpush1.xpose.msra.mxu0 0.0
  %3043 = vmatprep.subr.mxu0 0.0
  %3044 = vmatpush1.xpose.msra.mxu0 0.0
  %3045 = vmatprep.subr.mxu0 0.0
  %3046 = vmatpush1.xpose.msra.mxu0 0.0
  %3047 = vmatprep.subr.mxu0 0.0
  %3048 = vmatpush1.xpose.msra.mxu0 0.0
  %3049 = vmatprep.subr.mxu0 0.0
  %3050 = vmatpush1.xpose.msra.mxu0 0.0
  %3051 = vmatprep.subr.mxu0 0.0
  %3052 = vmatpush1.xpose.msra.mxu0 0.0
  %3053 = vmatprep.subr.mxu0 0.0
  %3054 = vmatpush1.xpose.msra.mxu0 0.0
  %3055 = vmatprep.subr.mxu0 0.0
  %3056 = vmatpush1.xpose.msra.mxu0 0.0
  %3057 = vmatprep.subr.mxu0 0.0
  %3058 = vmatpush1.xpose.msra.mxu0 0.0
  %3059 = vmatprep.mubr.f32.mxu0 0.0
  %v3060 = vand.u32 %v2689, 4294901760
  %v3061 = vsub.f32 %v2689, %v3060
  %v3062 = vand.u32 %v3061, 4294901760
  %3063 = vmatmul.mubr.f32.gmra.mrb[0].mxu0 %v3062
  %v3064 = vpop.f32.mrb[0].mxu0
  %v3065 = vadd.f32 %v2970, %v3064
  %v3066 = vpop.f32.mrb[0].mxu0
  %3067 = vmatprep.mubr.f32.mxu0 0.0
  %v3068 = vand.u32 %v2691, 4294901760
  %v3069 = vsub.f32 %v2691, %v3068
  %v3070 = vand.u32 %v3069, 4294901760
  %3071 = vmatmul.mubr.f32.gmra.mrb[0].mxu0 %v3070
  %v3072 = vpop.f32.mrb[0].mxu0
  %v3073 = vadd.f32 %v2977, %v3072
  %v3074 = vpop.f32.mrb[0].mxu0
  %3075 = vmatprep.mubr.f32.mxu0 0.0
  %v3076 = vand.u32 %v2693, 4294901760
  %v3077 = vsub.f32 %v2693, %v3076
  %v3078 = vand.u32 %v3077, 4294901760
  %3079 = vmatmul.mubr.f32.gmra.mrb[0].mxu0 %v3078
  %v3080 = vpop.f32.mrb[0].mxu0
  %v3081 = vadd.f32 %v2984, %v3080
  %v3082 = vpop.f32.mrb[0].mxu0
  %3083 = vmatprep.mubr.f32.mxu0 0.0
  %v3084 = vand.u32 %v2695, 4294901760
  %v3085 = vsub.f32 %v2695, %v3084
  %v3086 = vand.u32 %v3085, 4294901760
  %3087 = vmatmul.mubr.f32.gmra.mrb[0].mxu0 %v3086
  %v3088 = vpop.f32.mrb[0].mxu0
  %v3089 = vadd.f32 %v2991, %v3088
  %v3090 = vpop.f32.mrb[0].mxu0
  %3091 = vdwg.mxu0
  %3092 = vmatprep.subr.mxu0 0.0
  %v3093 = vand.u32 %v2697, 4294901760
  %v3094 = vsub.f32 %v2697, %v3093
  %v3095 = vand.u32 %v3094, 4294901760
  %3096 = vmatpush1.xpose.msra.mxu0 %v3095
  %3097 = vmatprep.subr.mxu0 0.0
  %3098 = vmatpush1.xpose.msra.mxu0 0.0
  %3099 = vmatprep.subr.mxu0 0.0
  %3100 = vmatpush1.xpose.msra.mxu0 0.0
  %3101 = vmatprep.subr.mxu0 0.0
  %3102 = vmatpush1.xpose.msra.mxu0 0.0
  %3103 = vmatprep.subr.mxu0 0.0
  %3104 = vmatpush1.xpose.msra.mxu0 0.0
  %3105 = vmatprep.subr.mxu0 0.0
  %3106 = vmatpush1.xpose.msra.mxu0 0.0
  %3107 = vmatprep.subr.mxu0 0.0
  %3108 = vmatpush1.xpose.msra.mxu0 0.0
  %3109 = vmatprep.subr.mxu0 0.0
  %3110 = vmatpush1.xpose.msra.mxu0 0.0
  %3111 = vmatprep.subr.mxu0 0.0
  %3112 = vmatpush1.xpose.msra.mxu0 0.0
  %3113 = vmatprep.subr.mxu0 0.0
  %3114 = vmatpush1.xpose.msra.mxu0 0.0
  %3115 = vmatprep.subr.mxu0 0.0
  %3116 = vmatpush1.xpose.msra.mxu0 0.0
  %3117 = vmatprep.subr.mxu0 0.0
  %3118 = vmatpush1.xpose.msra.mxu0 0.0
  %3119 = vmatprep.subr.mxu0 0.0
  %3120 = vmatpush1.xpose.msra.mxu0 0.0
  %3121 = vmatprep.subr.mxu0 0.0
  %3122 = vmatpush1.xpose.msra.mxu0 0.0
  %3123 = vmatprep.subr.mxu0 0.0
  %3124 = vmatpush1.xpose.msra.mxu0 0.0
  %3125 = vmatprep.subr.mxu0 0.0
  %3126 = vmatpush1.xpose.msra.mxu0 0.0
  %3127 = vmatprep.subr.mxu0 0.0
  %3128 = vmatpush1.xpose.msra.mxu0 0.0
  %3129 = vmatprep.subr.mxu0 0.0
  %3130 = vmatpush1.xpose.msra.mxu0 0.0
  %3131 = vmatprep.subr.mxu0 0.0
  %3132 = vmatpush1.xpose.msra.mxu0 0.0
  %3133 = vmatprep.subr.mxu0 0.0
  %3134 = vmatpush1.xpose.msra.mxu0 0.0
  %3135 = vmatprep.subr.mxu0 0.0
  %3136 = vmatpush1.xpose.msra.mxu0 0.0
  %3137 = vmatprep.subr.mxu0 0.0
  %3138 = vmatpush1.xpose.msra.mxu0 0.0
  %3139 = vmatprep.subr.mxu0 0.0
  %3140 = vmatpush1.xpose.msra.mxu0 0.0
  %3141 = vmatprep.subr.mxu0 0.0
  %3142 = vmatpush1.xpose.msra.mxu0 0.0
  %3143 = vmatprep.subr.mxu0 0.0
  %3144 = vmatpush1.xpose.msra.mxu0 0.0
  %3145 = vmatprep.subr.mxu0 0.0
  %3146 = vmatpush1.xpose.msra.mxu0 0.0
  %3147 = vmatprep.subr.mxu0 0.0
  %3148 = vmatpush1.xpose.msra.mxu0 0.0
  %3149 = vmatprep.subr.mxu0 0.0
  %3150 = vmatpush1.xpose.msra.mxu0 0.0
  %3151 = vmatprep.subr.mxu0 0.0
  %3152 = vmatpush1.xpose.msra.mxu0 0.0
  %3153 = vmatprep.subr.mxu0 0.0
  %3154 = vmatpush1.xpose.msra.mxu0 0.0
  %3155 = vmatprep.subr.mxu0 0.0
  %3156 = vmatpush1.xpose.msra.mxu0 0.0
  %3157 = vmatprep.subr.mxu0 0.0
  %3158 = vmatpush1.xpose.msra.mxu0 0.0
  %3159 = vmatprep.mubr.f32.mxu0 0.0
  %v3160 = vand.u32 %v2689, 4294901760
  %3161 = vmatmul.mubr.f32.gmra.mrb[0].mxu0 %v3160
  %v3162 = vpop.f32.mrb[0].mxu0
  %v3163 = vadd.f32 %v3065, %v3162
  %v3164 = vpop.f32.mrb[0].mxu0
  %3165 = vmatprep.mubr.f32.mxu0 0.0
  %v3166 = vand.u32 %v2691, 4294901760
  %3167 = vmatmul.mubr.f32.gmra.mrb[0].mxu0 %v3166
  %v3168 = vpop.f32.mrb[0].mxu0
  %v3169 = vadd.f32 %v3073, %v3168
  %v3170 = vpop.f32.mrb[0].mxu0
  %3171 = vmatprep.mubr.f32.mxu0 0.0
  %v3172 = vand.u32 %v2693, 4294901760
  %3173 = vmatmul.mubr.f32.gmra.mrb[0].mxu0 %v3172
  %v3174 = vpop.f32.mrb[0].mxu0
  %v3175 = vadd.f32 %v3081, %v3174
  %v3176 = vpop.f32.mrb[0].mxu0
  %3177 = vmatprep.mubr.f32.mxu0 0.0
  %v3178 = vand.u32 %v2695, 4294901760
  %3179 = vmatmul.mubr.f32.gmra.mrb[0].mxu0 %v3178
  %v3180 = vpop.f32.mrb[0].mxu0
  %v3181 = vadd.f32 %v3089, %v3180
  %v3182 = vpop.f32.mrb[0].mxu0
  %3183 = vdwg.mxu0
  %3184 = vmatprep.subr.mxu0 0.0
  %v3185 = vand.u32 %v2697, 4294901760
  %3186 = vmatpush1.xpose.msra.mxu0 %v3185
  %3187 = vmatprep.subr.mxu0 0.0
  %3188 = vmatpush1.xpose.msra.mxu0 0.0
  %3189 = vmatprep.subr.mxu0 0.0
  %3190 = vmatpush1.xpose.msra.mxu0 0.0
  %3191 = vmatprep.subr.mxu0 0.0
  %3192 = vmatpush1.xpose.msra.mxu0 0.0
  %3193 = vmatprep.subr.mxu0 0.0
  %3194 = vmatpush1.xpose.msra.mxu0 0.0
  %3195 = vmatprep.subr.mxu0 0.0
  %3196 = vmatpush1.xpose.msra.mxu0 0.0
  %3197 = vmatprep.subr.mxu0 0.0
  %3198 = vmatpush1.xpose.msra.mxu0 0.0
  %3199 = vmatprep.subr.mxu0 0.0
  %3200 = vmatpush1.xpose.msra.mxu0 0.0
  %3201 = vmatprep.subr.mxu0 0.0
  %3202 = vmatpush1.xpose.msra.mxu0 0.0
  %3203 = vmatprep.subr.mxu0 0.0
  %3204 = vmatpush1.xpose.msra.mxu0 0.0
  %3205 = vmatprep.subr.mxu0 0.0
  %3206 = vmatpush1.xpose.msra.mxu0 0.0
  %3207 = vmatprep.subr.mxu0 0.0
  %3208 = vmatpush1.xpose.msra.mxu0 0.0
  %3209 = vmatprep.subr.mxu0 0.0
  %3210 = vmatpush1.xpose.msra.mxu0 0.0
  %3211 = vmatprep.subr.mxu0 0.0
  %3212 = vmatpush1.xpose.msra.mxu0 0.0
  %3213 = vmatprep.subr.mxu0 0.0
  %3214 = vmatpush1.xpose.msra.mxu0 0.0
  %3215 = vmatprep.subr.mxu0 0.0
  %3216 = vmatpush1.xpose.msra.mxu0 0.0
  %3217 = vmatprep.subr.mxu0 0.0
  %3218 = vmatpush1.xpose.msra.mxu0 0.0
  %3219 = vmatprep.subr.mxu0 0.0
  %3220 = vmatpush1.xpose.msra.mxu0 0.0
  %3221 = vmatprep.subr.mxu0 0.0
  %3222 = vmatpush1.xpose.msra.mxu0 0.0
  %3223 = vmatprep.subr.mxu0 0.0
  %3224 = vmatpush1.xpose.msra.mxu0 0.0
  %3225 = vmatprep.subr.mxu0 0.0
  %3226 = vmatpush1.xpose.msra.mxu0 0.0
  %3227 = vmatprep.subr.mxu0 0.0
  %3228 = vmatpush1.xpose.msra.mxu0 0.0
  %3229 = vmatprep.subr.mxu0 0.0
  %3230 = vmatpush1.xpose.msra.mxu0 0.0
  %3231 = vmatprep.subr.mxu0 0.0
  %3232 = vmatpush1.xpose.msra.mxu0 0.0
  %3233 = vmatprep.subr.mxu0 0.0
  %3234 = vmatpush1.xpose.msra.mxu0 0.0
  %3235 = vmatprep.subr.mxu0 0.0
  %3236 = vmatpush1.xpose.msra.mxu0 0.0
  %3237 = vmatprep.subr.mxu0 0.0
  %3238 = vmatpush1.xpose.msra.mxu0 0.0
  %3239 = vmatprep.subr.mxu0 0.0
  %3240 = vmatpush1.xpose.msra.mxu0 0.0
  %3241 = vmatprep.subr.mxu0 0.0
  %3242 = vmatpush1.xpose.msra.mxu0 0.0
  %3243 = vmatprep.subr.mxu0 0.0
  %3244 = vmatpush1.xpose.msra.mxu0 0.0
  %3245 = vmatprep.subr.mxu0 0.0
  %3246 = vmatpush1.xpose.msra.mxu0 0.0
  %3247 = vmatprep.subr.mxu0 0.0
  %3248 = vmatpush1.xpose.msra.mxu0 0.0
  %3249 = vmatprep.mubr.f32.mxu0 0.0
  %v3250 = vand.u32 %v2689, 4294901760
  %3251 = vmatmul.mubr.f32.gmra.mrb[0].mxu0 %v3250
  %v3252 = vpop.f32.mrb[0].mxu0
  %v3253 = vadd.f32 %v3163, %v3252
  %v3254 = vpop.f32.mrb[0].mxu0
  %3255 = vmatprep.mubr.f32.mxu0 0.0
  %v3256 = vand.u32 %v2691, 4294901760
  %3257 = vmatmul.mubr.f32.gmra.mrb[0].mxu0 %v3256
  %v3258 = vpop.f32.mrb[0].mxu0
  %v3259 = vadd.f32 %v3169, %v3258
  %v3260 = vpop.f32.mrb[0].mxu0
  %3261 = vmatprep.mubr.f32.mxu0 0.0
  %v3262 = vand.u32 %v2693, 4294901760
  %3263 = vmatmul.mubr.f32.gmra.mrb[0].mxu0 %v3262
  %v3264 = vpop.f32.mrb[0].mxu0
  %v3265 = vadd.f32 %v3175, %v3264
  %v3266 = vpop.f32.mrb[0].mxu0
  %3267 = vmatprep.mubr.f32.mxu0 0.0
  %v3268 = vand.u32 %v2695, 4294901760
  %3269 = vmatmul.mubr.f32.gmra.mrb[0].mxu0 %v3268
  %v3270 = vpop.f32.mrb[0].mxu0
  %v3271 = vadd.f32 %v3181, %v3270
  %v3272 = vpop.f32.mrb[0].mxu0
  %3273 = vdwg.mxu0
  %v3274 = vmax.f32 %v3253, 0.0
  %v3275 = vmax.f32 %v3259, 0.0
  %v3276 = vmax.f32 %v3265, 0.0
  %v3277 = vmax.f32 %v3271, 0.0
  %3278 = vxpose.xlu0.b32.start [1/16] %v3274, 128
  %3279 = vxpose.xlu0.b32.cont [2/16] %v3275, 128
  %3280 = vxpose.xlu0.b32.cont [3/16] %v3276, 128
  %3281 = vxpose.xlu0.b32.cont [4/16] %v3277, 128
  %3282 = vxpose.xlu0.b32.cont [5/16] 0.0, 128
  %3283 = vxpose.xlu0.b32.cont [6/16] 0.0, 128
  %3284 = vxpose.xlu0.b32.cont [7/16] 0.0, 128
  %3285 = vxpose.xlu0.b32.cont [8/16] 0.0, 128
  %3286 = vxpose.xlu0.b32.cont [9/16] 0.0, 128
  %3287 = vxpose.xlu0.b32.cont [10/16] 0.0, 128
  %3288 = vxpose.xlu0.b32.cont [11/16] 0.0, 128
  %3289 = vxpose.xlu0.b32.cont [12/16] 0.0, 128
  %3290 = vxpose.xlu0.b32.cont [13/16] 0.0, 128
  %3291 = vxpose.xlu0.b32.cont [14/16] 0.0, 128
  %3292 = vxpose.xlu0.b32.cont [15/16] 0.0, 128
  %3293 = vxpose.xlu0.b32.end [16/16] 0.0, 128
  %v3294 = vpop.trf.xlu0
  %v3295 = vpop.trf.xlu0
  %v3296 = vpop.trf.xlu0
  %v3297 = vpop.trf.xlu0
  %v3298 = vpop.trf.xlu0
  %v3299 = vpop.trf.xlu0
  %v3300 = vpop.trf.xlu0
  %v3301 = vpop.trf.xlu0
  %v3302 = vpop.trf.xlu0
  %v3303 = vpop.trf.xlu0
  %v3304 = vpop.trf.xlu0
  %v3305 = vpop.trf.xlu0
  %v3306 = vpop.trf.xlu0
  %v3307 = vpop.trf.xlu0
  %v3308 = vpop.trf.xlu0
  %v3309 = vpop.trf.xlu0
  %s3310 = scalar_lea.vmem %s8, 8
  %3311 = vst.msk [vmem:[%s3310] sm:$0x7f] %vm2677, %v3294
  // Predicated region
  $region34: #{featuremaps_to_graph_transfer.1} parent=0 // pred_check
    _
  $region35: #{featuremaps_to_graph_transfer.1} parent=0 // pred_check_branch
    %3313 = sbr.rel (0) target = $region37
  $region36: #{featuremaps_to_graph_transfer.1} parent=0 // pred_region
    _
  $region37: #{featuremaps_to_graph_transfer.1} parent=0 // pred_fallthru
    _
  // Predicated region
  $region38: #{featuremaps_to_graph_transfer.1} parent=0 // pred_check
    _
  $region39: #{featuremaps_to_graph_transfer.1} parent=0 // pred_check_branch
    %3315 = sbr.rel (0) target = $region41
  $region40: #{featuremaps_to_graph_transfer.1} parent=0 // pred_region
    _
  $region41: #{featuremaps_to_graph_transfer.1} parent=0 // pred_fallthru
    _

</llo_original>
